<compile_context>
chip_gen: v7x
topology: tpu7x:2x2x1
jax: 0.10.0
libtpu: 0.0.40
codegen_flags: <defaults>
</compile_context>

<pallas_src>
import functools
import math

import jax
import jax.numpy as jnp
from jax.experimental import pallas as pl
from jax.experimental.pallas import tpu as pltpu

HIDDEN = 32
H_PAD = 128              # lane-dense hidden width (logical hidden lives in cols [:HIDDEN])
IN_PAD = 128             # lane-dense input-feature width
OUT_PAD = 128            # lane-dense output head width (col 0 is the real target)
NEG_SLOPE_ATT = 0.2      # leaky_relu inside GATv2 attention (PyG default)
NEG_SLOPE_INTER = 0.01   # F.leaky_relu default between conv layers

# Rows of the packed f32 "vecs" slab (all small [1,128] vectors in one input).
ROW_NODE_B, ROW_EDGE_B, ROW_LIN_B = 0, 1, 2


def _row_base(layer):
    return 3 + 4 * layer          # +0: lin_l bias, +1: lin_r bias, +2: conv bias, +3: att


def _vmem():
    return pl.BlockSpec(memory_space=pltpu.MemorySpace.VMEM)


def _mm(a, w_bf16):
    """MXU matmul: f32 activation cast to bf16, bf16 weight (pre-packed in HBM), f32 accumulate."""
    return jnp.dot(a.astype(jnp.bfloat16), w_bf16, preferred_element_type=jnp.float32)


def _leaky(x, slope):
    return jnp.where(x > 0, x, slope * x)


def _elementwise_dtype():
    """bf16 attention elementwise math only on chips with a bf16 VPU (v6e / v7x)."""
    try:
        kind = jax.devices()[0].device_kind.lower()
    except Exception:
        kind = ""
    return jnp.bfloat16 if ("v6" in kind or "v7" in kind) else jnp.float32


# --------------------------- fused forward kernel --------------------------- #
def _fused_gnn_kernel(x_ref, ea_ref, scat_ref, mask_ref,
                      small_w_ref, layer_w_ref, vecs_ref, o_ref,
                      *, num_layers, n, ew_dtype):
    vecs = vecs_ref[...]                                          # [R, 128] f32 bias/att slab

    # --- encoders (bf16 MXU operands, f32 accumulation) ---
    h = _mm(x_ref[...], small_w_ref[0]) + vecs[ROW_NODE_B:ROW_NODE_B + 1, :]       # [N, Hp]
    e_enc = _mm(ea_ref[...], small_w_ref[1]) + vecs[ROW_EDGE_B:ROW_EDGE_B + 1, :]  # [Ep, Hp]

    # --- dense [target*N+source, Hp] edge embedding, built once (hoisted out of layer loop).
    #     Kept f32: the 1/deg mean-fill entries of scat are value-bearing (review concern).
    ee_flat = jnp.dot(scat_ref[...], e_enc, preferred_element_type=jnp.float32)    # [N*N, Hp]

    mask = mask_ref[...]                                          # [N, N] additive (0 / -1e30)

    for l in range(num_layers):                                   # static unroll (2 layers)
        base = _row_base(l)
        bl = vecs[base + 0:base + 1, :]
        br = vecs[base + 1:base + 2, :]
        cb = vecs[base + 2:base + 3, :]
        att = vecs[base + 3:base + 4, :]

        w = layer_w_ref[l]                                        # [Hp, 4*Hp] bf16 (Wl|Wr|Wres|We)
        node_out = _mm(h, w[:, :3 * H_PAD])                       # fused lin_l / lin_r / residual
        xl = node_out[:, 0 * H_PAD:1 * H_PAD] + bl                # source-side    [N, Hp]
        xr = node_out[:, 1 * H_PAD:2 * H_PAD] + br                # target-side    [N, Hp]
        res = node_out[:, 2 * H_PAD:3 * H_PAD]                    # residual proj  [N, Hp]

        pe = _mm(ee_flat, w[:, 3 * H_PAD:])                       # lin_edge       [N*N, Hp]
        pe3 = pe.reshape(n, n, H_PAD)                             # [N, N, Hp] (minor dim kept)

        # e[i,j] = leaky_relu(x_l[j] + x_r[i] + lin_edge(edge_attr)[i,j]); elementwise phase
        # in bf16 where the VPU supports it, f32 on v5e.
        e = (xl.astype(ew_dtype)[None, :, :]
             + xr.astype(ew_dtype)[:, None, :]
             + pe3.astype(ew_dtype))                              # [N, N, Hp]
        e = _leaky(e, NEG_SLOPE_ATT)
        prod = (e * att.astype(ew_dtype)[None, :, :]).astype(jnp.float32)
        logits = jnp.sum(prod, axis=-1) + mask                    # [N, N] masked scores (f32)
        # TODO(synk): if a bundle dump shows the 2 XLU slots saturating, move this lane reduce
        # onto the MXU as e.reshape(N*N, Hp) @ att_mat.

        m = jnp.max(logits, axis=1, keepdims=True)                # finite: self-loops present
        p = jnp.exp(logits - m)                                   # masked entries -> exactly 0
        denom = jnp.sum(p, axis=1, keepdims=True)
        alpha = p * pl.reciprocal(denom, approx=True)             # softmax over sources (EUP)

        # Aggregation + residual + bias kept f32 (value-bearing; review parity concern).
        out = jnp.dot(alpha, xl, preferred_element_type=jnp.float32) + res + cb
        if l < num_layers - 1:                                    # F.leaky_relu between layers
            out = _leaky(out, NEG_SLOPE_INTER)
        # TODO(synk): inter-layer F.dropout omitted (eval-mode semantics; identity).
        h = out

    o_ref[...] = _mm(h, small_w_ref[2]) + vecs[ROW_LIN_B:ROW_LIN_B + 1, :]   # lane-dense store


def gnn_forward(params, x, ea_p, scat, mask):
    n = x.shape[0]
    num_layers = params["layer_w"].shape[0]
    e_pad = scat.shape[1]

    # Pad node features to a lane-dense 128-wide slab (encoder rows beyond node_in are zero).
    x_p = jnp.zeros((n, IN_PAD), jnp.float32).at[:, :x.shape[1]].set(x)

    inputs = (x_p, ea_p, scat, mask,
              params["small_w"], params["layer_w"], params["vecs"])

    flops = 2 * (n * IN_PAD * H_PAD                        # node encoder
                 + e_pad * IN_PAD * H_PAD                  # edge encoder
                 + n * n * e_pad * H_PAD                   # dense edge build
                 + num_layers * (n * H_PAD * 3 * H_PAD     # fused node matmul
                                 + n * n * H_PAD * H_PAD   # lin_edge
                                 + n * n * H_PAD           # attention reduce
                                 + n * n * H_PAD)          # aggregation
                 + n * H_PAD * OUT_PAD)                    # output head
    bytes_accessed = sum(math.prod(a.shape) * jnp.dtype(a.dtype).itemsize for a in inputs)
    bytes_accessed += n * OUT_PAD * 4

    kernel = functools.partial(_fused_gnn_kernel, num_layers=num_layers, n=n,
                               ew_dtype=_elementwise_dtype())
    out = pl.pallas_call(
        kernel,
        out_shape=jax.ShapeDtypeStruct((n, OUT_PAD), jnp.float32),
        in_specs=[_vmem()] * len(inputs),
        out_specs=_vmem(),
        cost_estimate=pl.CostEstimate(flops=flops,
                                      transcendentals=num_layers * n * n,
                                      bytes_accessed=bytes_accessed),
    )(*inputs)
    return out[:, 0]                                              # .squeeze(1)


# --------------------------- graph glue (plain JAX, run once per graph) ------ #
def build_mask_bias(src, dst, n):
    """Additive attention mask: 0 for edges (target<-source) and self-loops, -1e30 elsewhere."""
    mask = jnp.full((n, n), -1e30, jnp.float32)
    mask = mask.at[dst, src].set(0.0)
    idx = jnp.arange(n)
    return mask.at[idx, idx].set(0.0)                             # add_self_loops=True


def build_scatter_matrix(src, dst, n, num_e, e_pad):
    """S: [N*N, E_pad] so that S @ encoded_edges is the dense [target*N+source, H] edge tensor.
    Edge rows get 1 in that edge's column; self-loop rows get 1/deg_in for every incoming edge,
    i.e. fill_value='mean' over the encoded incoming edge attrs (mean commutes with the matmul).
    Columns >= num_e are zero padding (lane-dense contraction dim for the MXU)."""
    cols = jnp.arange(num_e)
    scat = jnp.zeros((n * n, e_pad), jnp.float32).at[dst * n + src, cols].set(1.0)
    deg = jnp.zeros((n,), jnp.float32).at[dst].add(1.0)
    inv_deg = jnp.where(deg > 0, 1.0 / jnp.maximum(deg, 1.0), 0.0)
    # TODO(synk): PyG removes pre-existing self-loop edges before the mean fill; this keeps them
    # (not exercised by the test graph, which has no self-loops).
    return scat.at[dst * n + dst, cols].add(inv_deg[dst])


def prepare_graph(edge_index, edge_attr, n):
    """Graph-static preprocessing, hoisted out of the per-call forward path."""
    src, dst = edge_index[0], edge_index[1]
    num_e, edge_dim = edge_attr.shape
    e_pad = max(128, ((num_e + 127) // 128) * 128)
    ea_p = jnp.zeros((e_pad, IN_PAD), jnp.float32).at[:num_e, :edge_dim].set(edge_attr)
    scat = build_scatter_matrix(src, dst, n, num_e, e_pad)
    mask = build_mask_bias(src, dst, n)
    return ea_p, scat, mask


# ------------------------------- parameters ---------------------------------- #
def _kaiming(key, shape, fan_in):
    return (jnp.sqrt(2.0 / fan_in) * jax.random.normal(key, shape)).astype(jnp.float32)


def _pad2(w, rows, cols):
    return jnp.zeros((rows, cols), jnp.float32).at[:w.shape[0], :w.shape[1]].set(w)


def init_params(key, node_in, edge_in, hidden, target, num_layers):
    keys = iter(jax.random.split(key, 3 + num_layers * 5))

    node_w = _pad2(_kaiming(next(keys), (node_in, hidden), node_in), IN_PAD, H_PAD)
    edge_w = _pad2(_kaiming(next(keys), (edge_in, hidden), edge_in), IN_PAD, H_PAD)
    lin_w = _pad2(_kaiming(next(keys), (hidden, target), hidden), H_PAD, OUT_PAD)
    small_w = jnp.stack([node_w, edge_w, lin_w]).astype(jnp.bfloat16)       # [3, 128, 128] bf16

    n_rows = ((3 + 4 * num_layers + 7) // 8) * 8                            # sublane-aligned
    vecs = jnp.zeros((n_rows, H_PAD), jnp.float32)
    # NOTE: Linear / conv biases left at zero (PyTorch only kaiming-inits params with dim > 1;
    # zero biases keep the same semantics as the previous, validated version).

    slabs = []
    for l in range(num_layers):
        wl = _pad2(_kaiming(next(keys), (hidden, hidden), hidden), H_PAD, H_PAD)
        wr = _pad2(_kaiming(next(keys), (hidden, hidden), hidden), H_PAD, H_PAD)
        wres = _pad2(_kaiming(next(keys), (hidden, hidden), hidden), H_PAD, H_PAD)
        we = _pad2(_kaiming(next(keys), (hidden, hidden), hidden), H_PAD, H_PAD)
        slabs.append(jnp.concatenate([wl, wr, wres, we], axis=1))           # [128, 512]
        att = _kaiming(next(keys), (1, hidden), hidden)
        vecs = vecs.at[_row_base(l) + 3, :hidden].set(att[0])
    layer_w = jnp.stack(slabs).astype(jnp.bfloat16)                         # [L, 128, 512] bf16

    # NOTE: the reference module passes edge_dim=edge_in to GATv2Conv while feeding it the
    # hidden-size *encoded* edge_attr, so edge_in == hidden keeps that consistent.
    return {"small_w": small_w, "layer_w": layer_w, "vecs": vecs}


# ---------------------------------- main -------------------------------------- #
if __name__ == "__main__":
    N, NODE_IN, EDGE_IN, TARGET, LAYERS = 16, 8, HIDDEN, 1, 2

    key = jax.random.PRNGKey(0)
    k_x, k_e, k_p = jax.random.split(key, 3)

    x = jax.random.normal(k_x, (N, NODE_IN), dtype=jnp.float32)

    # Deterministic edge list: each node j has outgoing edges to (j+1)%N, (j+2)%N, (j+5)%N.
    offsets = jnp.array([1, 2, 5], dtype=jnp.int32)
    src = jnp.repeat(jnp.arange(N, dtype=jnp.int32), 3)
    dst = (src + jnp.tile(offsets, N)) % N
    edge_index = jnp.stack([src, dst]).astype(jnp.int32)          # [2, E], row0=src, row1=dst
    edge_attr = jax.random.normal(k_e, (src.shape[0], EDGE_IN), dtype=jnp.float32)

    params = init_params(k_p, NODE_IN, EDGE_IN, HIDDEN, TARGET, LAYERS)

    # Static-graph preprocessing done ONCE, outside the jitted forward path.
    ea_p, scat, mask = prepare_graph(edge_index, edge_attr, N)

    fwd = jax.jit(gnn_forward)
    out = fwd(params, x, ea_p, scat, mask)
    out = jax.block_until_ready(out)
    assert out.shape == (N,) and out.dtype == jnp.float32
    print("KERNEL_OK")
</pallas_src>

<mosaic_0001>
module attributes {stable_mosaic.version = 11 : i64} {
  func.func @_fused_gnn_kernel(%arg0: memref<16x128xf32, #tpu.memory_space<vmem>>, %arg1: memref<128x128xf32, #tpu.memory_space<vmem>>, %arg2: memref<256x128xf32, #tpu.memory_space<vmem>>, %arg3: memref<16x16xf32, #tpu.memory_space<vmem>>, %arg4: memref<3x128x128xbf16, #tpu.memory_space<vmem>>, %arg5: memref<2x128x512xbf16, #tpu.memory_space<vmem>>, %arg6: memref<16x128xf32, #tpu.memory_space<vmem>>, %arg7: memref<16x128xf32, #tpu.memory_space<vmem>>) attributes {dimension_semantics = [], scalar_prefetch = 0 : i64, scratch_operands = 0 : i64, tpu.core_type = #tpu.core_type<tc>} {
    %c0 = arith.constant 0 : index
    %c0_0 = arith.constant 0 : index
    %0 = vector.load %arg6[%c0, %c0_0] : memref<16x128xf32, #tpu.memory_space<vmem>>, vector<16x128xf32>
    %c0_1 = arith.constant 0 : index
    %c0_2 = arith.constant 0 : index
    %1 = vector.load %arg0[%c0_1, %c0_2] : memref<16x128xf32, #tpu.memory_space<vmem>>, vector<16x128xf32>
    %c0_3 = arith.constant 0 : index
    %c0_4 = arith.constant 0 : index
    %c0_5 = arith.constant 0 : index
    %2 = vector.load %arg4[%c0_3, %c0_4, %c0_5] : memref<3x128x128xbf16, #tpu.memory_space<vmem>>, vector<1x128x128xbf16>
    %3 = vector.shape_cast %2 : vector<1x128x128xbf16> to vector<128x128xbf16>
    %4 = arith.truncf %1 : vector<16x128xf32> to vector<16x128xbf16>
    %cst = arith.constant dense<0.000000e+00> : vector<16x128xf32>
    %5 = tpu.matmul %4, %3, %cst {dimension_numbers = #tpu.dot_dimension_numbers<[1], [0], [0], [1], [0, 0, 1, 1], [], []>} : vector<16x128xbf16>, vector<128x128xbf16>, vector<16x128xf32> -> vector<16x128xf32>
    %6 = vector.extract_strided_slice %0 {offsets = [0, 0], sizes = [1, 128], strides = [1, 1]} : vector<16x128xf32> to vector<1x128xf32>
    %7 = vector.broadcast %6 : vector<1x128xf32> to vector<16x128xf32>
    %8 = arith.addf %5, %7 : vector<16x128xf32>
    %c0_6 = arith.constant 0 : index
    %c0_7 = arith.constant 0 : index
    %9 = vector.load %arg1[%c0_6, %c0_7] : memref<128x128xf32, #tpu.memory_space<vmem>>, vector<128x128xf32>
    %c1 = arith.constant 1 : index
    %c0_8 = arith.constant 0 : index
    %c0_9 = arith.constant 0 : index
    %10 = vector.load %arg4[%c1, %c0_8, %c0_9] : memref<3x128x128xbf16, #tpu.memory_space<vmem>>, vector<1x128x128xbf16>
    %11 = vector.shape_cast %10 : vector<1x128x128xbf16> to vector<128x128xbf16>
    %12 = arith.truncf %9 : vector<128x128xf32> to vector<128x128xbf16>
    %cst_10 = arith.constant dense<0.000000e+00> : vector<128x128xf32>
    %13 = tpu.matmul %12, %11, %cst_10 {dimension_numbers = #tpu.dot_dimension_numbers<[1], [0], [0], [1], [0, 0, 1, 1], [], []>} : vector<128x128xbf16>, vector<128x128xbf16>, vector<128x128xf32> -> vector<128x128xf32>
    %14 = vector.extract_strided_slice %0 {offsets = [1, 0], sizes = [1, 128], strides = [1, 1]} : vector<16x128xf32> to vector<1x128xf32>
    %15 = vector.broadcast %14 : vector<1x128xf32> to vector<128x128xf32>
    %16 = arith.addf %13, %15 : vector<128x128xf32>
    %c0_11 = arith.constant 0 : index
    %c0_12 = arith.constant 0 : index
    %17 = vector.load %arg2[%c0_11, %c0_12] : memref<256x128xf32, #tpu.memory_space<vmem>>, vector<256x128xf32>
    %cst_13 = arith.constant dense<0.000000e+00> : vector<256x128xf32>
    %18 = tpu.matmul %17, %16, %cst_13 {dimension_numbers = #tpu.dot_dimension_numbers<[1], [0], [0], [1], [0, 0, 1, 1], [], []>} : vector<256x128xf32>, vector<128x128xf32>, vector<256x128xf32> -> vector<256x128xf32>
    %c0_14 = arith.constant 0 : index
    %c0_15 = arith.constant 0 : index
    %19 = vector.load %arg3[%c0_14, %c0_15] : memref<16x16xf32, #tpu.memory_space<vmem>>, vector<16x16xf32>
    %20 = vector.extract_strided_slice %0 {offsets = [3, 0], sizes = [1, 128], strides = [1, 1]} : vector<16x128xf32> to vector<1x128xf32>
    %21 = vector.extract_strided_slice %0 {offsets = [4, 0], sizes = [1, 128], strides = [1, 1]} : vector<16x128xf32> to vector<1x128xf32>
    %22 = vector.extract_strided_slice %0 {offsets = [5, 0], sizes = [1, 128], strides = [1, 1]} : vector<16x128xf32> to vector<1x128xf32>
    %23 = vector.extract_strided_slice %0 {offsets = [6, 0], sizes = [1, 128], strides = [1, 1]} : vector<16x128xf32> to vector<1x128xf32>
    %c0_16 = arith.constant 0 : index
    %c0_17 = arith.constant 0 : index
    %c0_18 = arith.constant 0 : index
    %24 = vector.load %arg5[%c0_16, %c0_17, %c0_18] : memref<2x128x512xbf16, #tpu.memory_space<vmem>>, vector<1x128x512xbf16>
    %25 = vector.shape_cast %24 : vector<1x128x512xbf16> to vector<128x512xbf16>
    %26 = vector.extract_strided_slice %25 {offsets = [0, 0], sizes = [128, 384], strides = [1, 1]} : vector<128x512xbf16> to vector<128x384xbf16>
    %27 = arith.truncf %8 : vector<16x128xf32> to vector<16x128xbf16>
    %cst_19 = arith.constant dense<0.000000e+00> : vector<16x384xf32>
    %28 = tpu.matmul %27, %26, %cst_19 {dimension_numbers = #tpu.dot_dimension_numbers<[1], [0], [0], [1], [0, 0, 1, 1], [], []>} : vector<16x128xbf16>, vector<128x384xbf16>, vector<16x384xf32> -> vector<16x384xf32>
    %29 = vector.extract_strided_slice %28 {offsets = [0, 0], sizes = [16, 128], strides = [1, 1]} : vector<16x384xf32> to vector<16x128xf32>
    %30 = vector.broadcast %20 : vector<1x128xf32> to vector<16x128xf32>
    %31 = arith.addf %29, %30 : vector<16x128xf32>
    %32 = vector.extract_strided_slice %28 {offsets = [0, 128], sizes = [16, 128], strides = [1, 1]} : vector<16x384xf32> to vector<16x128xf32>
    %33 = vector.broadcast %21 : vector<1x128xf32> to vector<16x128xf32>
    %34 = arith.addf %32, %33 : vector<16x128xf32>
    %35 = vector.extract_strided_slice %28 {offsets = [0, 256], sizes = [16, 128], strides = [1, 1]} : vector<16x384xf32> to vector<16x128xf32>
    %36 = vector.extract_strided_slice %25 {offsets = [0, 384], sizes = [128, 128], strides = [1, 1]} : vector<128x512xbf16> to vector<128x128xbf16>
    %37 = arith.truncf %18 : vector<256x128xf32> to vector<256x128xbf16>
    %cst_20 = arith.constant dense<0.000000e+00> : vector<256x128xf32>
    %38 = tpu.matmul %37, %36, %cst_20 {dimension_numbers = #tpu.dot_dimension_numbers<[1], [0], [0], [1], [0, 0, 1, 1], [], []>} : vector<256x128xbf16>, vector<128x128xbf16>, vector<256x128xf32> -> vector<256x128xf32>
    %39 = vector.shape_cast %38 : vector<256x128xf32> to vector<16x16x128xf32>
    %40 = vector.shape_cast %31 : vector<16x128xf32> to vector<1x16x128xf32>
    %41 = vector.shape_cast %34 : vector<16x128xf32> to vector<16x1x128xf32>
    %42 = vector.broadcast %40 : vector<1x16x128xf32> to vector<16x16x128xf32>
    %43 = vector.broadcast %41 : vector<16x1x128xf32> to vector<16x16x128xf32>
    %44 = arith.addf %42, %43 : vector<16x16x128xf32>
    %45 = arith.addf %44, %39 : vector<16x16x128xf32>
    %cst_21 = arith.constant 0.000000e+00 : f32
    %46 = vector.broadcast %cst_21 : f32 to vector<16x16x128xf32>
    %47 = arith.cmpf ogt, %45, %46 : vector<16x16x128xf32>
    %cst_22 = arith.constant 2.000000e-01 : f32
    %48 = vector.broadcast %cst_22 : f32 to vector<16x16x128xf32>
    %49 = arith.mulf %48, %45 : vector<16x16x128xf32>
    %50 = arith.select %47, %45, %49 : vector<16x16x128xi1>, vector<16x16x128xf32>
    %51 = vector.shape_cast %23 : vector<1x128xf32> to vector<1x1x128xf32>
    %52 = vector.broadcast %51 : vector<1x1x128xf32> to vector<16x16x128xf32>
    %53 = arith.mulf %50, %52 : vector<16x16x128xf32>
    %cst_23 = arith.constant dense<0.000000e+00> : vector<16x16xf32>
    %54 = vector.multi_reduction <add>, %53, %cst_23 [2] : vector<16x16x128xf32> to vector<16x16xf32>
    %55 = arith.addf %54, %19 : vector<16x16xf32>
    %cst_24 = arith.constant dense<0xFF800000> : vector<16xf32>
    %56 = vector.multi_reduction <maximumf>, %55, %cst_24 [1] : vector<16x16xf32> to vector<16xf32>
    %57 = vector.shape_cast %56 : vector<16xf32> to vector<16x1xf32>
    %58 = vector.broadcast %57 : vector<16x1xf32> to vector<16x16xf32>
    %59 = arith.subf %55, %58 : vector<16x16xf32>
    %60 = math.exp %59 : vector<16x16xf32>
    %cst_25 = arith.constant dense<0.000000e+00> : vector<16xf32>
    %61 = vector.multi_reduction <add>, %60, %cst_25 [1] : vector<16x16xf32> to vector<16xf32>
    %62 = vector.shape_cast %61 : vector<16xf32> to vector<16x1xf32>
    %63 = tpu.reciprocal %62 {approx = true} : vector<16x1xf32> -> vector<16x1xf32>
    %64 = vector.broadcast %63 : vector<16x1xf32> to vector<16x16xf32>
    %65 = arith.mulf %60, %64 : vector<16x16xf32>
    %cst_26 = arith.constant dense<0.000000e+00> : vector<16x128xf32>
    %66 = tpu.matmul %65, %31, %cst_26 {dimension_numbers = #tpu.dot_dimension_numbers<[1], [0], [0], [1], [0, 0, 1, 1], [], []>} : vector<16x16xf32>, vector<16x128xf32>, vector<16x128xf32> -> vector<16x128xf32>
    %67 = arith.addf %66, %35 : vector<16x128xf32>
    %68 = vector.broadcast %22 : vector<1x128xf32> to vector<16x128xf32>
    %69 = arith.addf %67, %68 : vector<16x128xf32>
    %cst_27 = arith.constant 0.000000e+00 : f32
    %70 = vector.broadcast %cst_27 : f32 to vector<16x128xf32>
    %71 = arith.cmpf ogt, %69, %70 : vector<16x128xf32>
    %cst_28 = arith.constant 0.00999999977 : f32
    %72 = vector.broadcast %cst_28 : f32 to vector<16x128xf32>
    %73 = arith.mulf %72, %69 : vector<16x128xf32>
    %74 = arith.select %71, %69, %73 : vector<16x128xi1>, vector<16x128xf32>
    %75 = vector.extract_strided_slice %0 {offsets = [7, 0], sizes = [1, 128], strides = [1, 1]} : vector<16x128xf32> to vector<1x128xf32>
    %76 = vector.extract_strided_slice %0 {offsets = [8, 0], sizes = [1, 128], strides = [1, 1]} : vector<16x128xf32> to vector<1x128xf32>
    %77 = vector.extract_strided_slice %0 {offsets = [9, 0], sizes = [1, 128], strides = [1, 1]} : vector<16x128xf32> to vector<1x128xf32>
    %78 = vector.extract_strided_slice %0 {offsets = [10, 0], sizes = [1, 128], strides = [1, 1]} : vector<16x128xf32> to vector<1x128xf32>
    %c1_29 = arith.constant 1 : index
    %c0_30 = arith.constant 0 : index
    %c0_31 = arith.constant 0 : index
    %79 = vector.load %arg5[%c1_29, %c0_30, %c0_31] : memref<2x128x512xbf16, #tpu.memory_space<vmem>>, vector<1x128x512xbf16>
    %80 = vector.shape_cast %79 : vector<1x128x512xbf16> to vector<128x512xbf16>
    %81 = vector.extract_strided_slice %80 {offsets = [0, 0], sizes = [128, 384], strides = [1, 1]} : vector<128x512xbf16> to vector<128x384xbf16>
    %82 = arith.truncf %74 : vector<16x128xf32> to vector<16x128xbf16>
    %cst_32 = arith.constant dense<0.000000e+00> : vector<16x384xf32>
    %83 = tpu.matmul %82, %81, %cst_32 {dimension_numbers = #tpu.dot_dimension_numbers<[1], [0], [0], [1], [0, 0, 1, 1], [], []>} : vector<16x128xbf16>, vector<128x384xbf16>, vector<16x384xf32> -> vector<16x384xf32>
    %84 = vector.extract_strided_slice %83 {offsets = [0, 0], sizes = [16, 128], strides = [1, 1]} : vector<16x384xf32> to vector<16x128xf32>
    %85 = vector.broadcast %75 : vector<1x128xf32> to vector<16x128xf32>
    %86 = arith.addf %84, %85 : vector<16x128xf32>
    %87 = vector.extract_strided_slice %83 {offsets = [0, 128], sizes = [16, 128], strides = [1, 1]} : vector<16x384xf32> to vector<16x128xf32>
    %88 = vector.broadcast %76 : vector<1x128xf32> to vector<16x128xf32>
    %89 = arith.addf %87, %88 : vector<16x128xf32>
    %90 = vector.extract_strided_slice %83 {offsets = [0, 256], sizes = [16, 128], strides = [1, 1]} : vector<16x384xf32> to vector<16x128xf32>
    %91 = vector.extract_strided_slice %80 {offsets = [0, 384], sizes = [128, 128], strides = [1, 1]} : vector<128x512xbf16> to vector<128x128xbf16>
    %92 = arith.truncf %18 : vector<256x128xf32> to vector<256x128xbf16>
    %cst_33 = arith.constant dense<0.000000e+00> : vector<256x128xf32>
    %93 = tpu.matmul %92, %91, %cst_33 {dimension_numbers = #tpu.dot_dimension_numbers<[1], [0], [0], [1], [0, 0, 1, 1], [], []>} : vector<256x128xbf16>, vector<128x128xbf16>, vector<256x128xf32> -> vector<256x128xf32>
    %94 = vector.shape_cast %93 : vector<256x128xf32> to vector<16x16x128xf32>
    %95 = vector.shape_cast %86 : vector<16x128xf32> to vector<1x16x128xf32>
    %96 = vector.shape_cast %89 : vector<16x128xf32> to vector<16x1x128xf32>
    %97 = vector.broadcast %95 : vector<1x16x128xf32> to vector<16x16x128xf32>
    %98 = vector.broadcast %96 : vector<16x1x128xf32> to vector<16x16x128xf32>
    %99 = arith.addf %97, %98 : vector<16x16x128xf32>
    %100 = arith.addf %99, %94 : vector<16x16x128xf32>
    %cst_34 = arith.constant 0.000000e+00 : f32
    %101 = vector.broadcast %cst_34 : f32 to vector<16x16x128xf32>
    %102 = arith.cmpf ogt, %100, %101 : vector<16x16x128xf32>
    %cst_35 = arith.constant 2.000000e-01 : f32
    %103 = vector.broadcast %cst_35 : f32 to vector<16x16x128xf32>
    %104 = arith.mulf %103, %100 : vector<16x16x128xf32>
    %105 = arith.select %102, %100, %104 : vector<16x16x128xi1>, vector<16x16x128xf32>
    %106 = vector.shape_cast %78 : vector<1x128xf32> to vector<1x1x128xf32>
    %107 = vector.broadcast %106 : vector<1x1x128xf32> to vector<16x16x128xf32>
    %108 = arith.mulf %105, %107 : vector<16x16x128xf32>
    %cst_36 = arith.constant dense<0.000000e+00> : vector<16x16xf32>
    %109 = vector.multi_reduction <add>, %108, %cst_36 [2] : vector<16x16x128xf32> to vector<16x16xf32>
    %110 = arith.addf %109, %19 : vector<16x16xf32>
    %cst_37 = arith.constant dense<0xFF800000> : vector<16xf32>
    %111 = vector.multi_reduction <maximumf>, %110, %cst_37 [1] : vector<16x16xf32> to vector<16xf32>
    %112 = vector.shape_cast %111 : vector<16xf32> to vector<16x1xf32>
    %113 = vector.broadcast %112 : vector<16x1xf32> to vector<16x16xf32>
    %114 = arith.subf %110, %113 : vector<16x16xf32>
    %115 = math.exp %114 : vector<16x16xf32>
    %cst_38 = arith.constant dense<0.000000e+00> : vector<16xf32>
    %116 = vector.multi_reduction <add>, %115, %cst_38 [1] : vector<16x16xf32> to vector<16xf32>
    %117 = vector.shape_cast %116 : vector<16xf32> to vector<16x1xf32>
    %118 = tpu.reciprocal %117 {approx = true} : vector<16x1xf32> -> vector<16x1xf32>
    %119 = vector.broadcast %118 : vector<16x1xf32> to vector<16x16xf32>
    %120 = arith.mulf %115, %119 : vector<16x16xf32>
    %cst_39 = arith.constant dense<0.000000e+00> : vector<16x128xf32>
    %121 = tpu.matmul %120, %86, %cst_39 {dimension_numbers = #tpu.dot_dimension_numbers<[1], [0], [0], [1], [0, 0, 1, 1], [], []>} : vector<16x16xf32>, vector<16x128xf32>, vector<16x128xf32> -> vector<16x128xf32>
    %122 = arith.addf %121, %90 : vector<16x128xf32>
    %123 = vector.broadcast %77 : vector<1x128xf32> to vector<16x128xf32>
    %124 = arith.addf %122, %123 : vector<16x128xf32>
    %c2 = arith.constant 2 : index
    %c0_40 = arith.constant 0 : index
    %c0_41 = arith.constant 0 : index
    %125 = vector.load %arg4[%c2, %c0_40, %c0_41] : memref<3x128x128xbf16, #tpu.memory_space<vmem>>, vector<1x128x128xbf16>
    %126 = vector.shape_cast %125 : vector<1x128x128xbf16> to vector<128x128xbf16>
    %127 = arith.truncf %124 : vector<16x128xf32> to vector<16x128xbf16>
    %cst_42 = arith.constant dense<0.000000e+00> : vector<16x128xf32>
    %128 = tpu.matmul %127, %126, %cst_42 {dimension_numbers = #tpu.dot_dimension_numbers<[1], [0], [0], [1], [0, 0, 1, 1], [], []>} : vector<16x128xbf16>, vector<128x128xbf16>, vector<16x128xf32> -> vector<16x128xf32>
    %129 = vector.extract_strided_slice %0 {offsets = [2, 0], sizes = [1, 128], strides = [1, 1]} : vector<16x128xf32> to vector<1x128xf32>
    %130 = vector.broadcast %129 : vector<1x128xf32> to vector<16x128xf32>
    %131 = arith.addf %128, %130 : vector<16x128xf32>
    %c0_43 = arith.constant 0 : index
    %c0_44 = arith.constant 0 : index
    %132 = vector.load %arg7[%c0_43, %c0_44] : memref<16x128xf32, #tpu.memory_space<vmem>>, vector<16x128xf32>
    tpu.vector_store %arg7[%c0_43, %c0_44], %131 {strides = array<i32>} : memref<16x128xf32, #tpu.memory_space<vmem>>, vector<16x128xf32>,
    return
  }
}

</mosaic_0001>

<llo_original>
// kernel: gnn_forward.1
$region0: #{gnn_forward.1}
  #allocation0 [shape = 'u32[]', space=smem, size = 0x4, offset = 0x4, fixed_abs, tag = 'smem constant byte address 0x4 - core index']
  #allocation1 [shape = 'u32[144,128]{1,0:T(1,128)}', space=vmem, size = 0x12000, scoped, tag = 'internal scratch']
  %s0 = inlined_call_operand.vmem [shape: f32[16,128], index: 0, kind: input, shape index: {}]
  %s1 = inlined_call_operand.hbm [shape: f32[128,128], index: 1, kind: input, shape index: {}]
  %s2 = inlined_call_operand.hbm [shape: f32[256,128], index: 2, kind: input, shape index: {}]
  %s3 = inlined_call_operand.vmem [shape: f32[16,16], index: 3, kind: input, shape index: {}]
  %s4 = inlined_call_operand.hbm [shape: bf16[3,128,128], index: 4, kind: input, shape index: {}]
  %s5 = inlined_call_operand.hbm [shape: bf16[2,128,512], index: 5, kind: input, shape index: {}]
  %s6 = inlined_call_operand.vmem [shape: f32[16,128], index: 6, kind: input, shape index: {}]
  %s7 = inlined_call_operand.vmem [shape: f32[16,128], index: 7, kind: output, shape index: {}]
  %s8 = sld [smem:[#allocation0]]
  $region54: #{gnn_forward.1} parent=0
    _
  %s10 = ssub.s32 1, %s8
  %s11 = scalar_select 0, %s10, %s8
  $region1: #{gnn_forward.1} parent=0
    #allocation2 [shape = 'u8[65536]{0}', space=vmem, size = 0x10000, scoped, tag = 'input window, operand 1, single buffered']
    #allocation3 [shape = 's32[1]{0}', space=sflag, size = 0x4, scoped, tag = 'scoped memory for gnn_forward.1']
    #allocation4 [shape = 'u8[131072]{0}', space=vmem, size = 0x20000, scoped, tag = 'input window, operand 2, single buffered']
    #allocation5 [shape = 's32[1]{0}', space=sflag, size = 0x4, scoped, tag = 'scoped memory for gnn_forward.1']
    #allocation6 [shape = 'u8[98304]{0}', space=vmem, size = 0x18000, scoped, tag = 'input window, operand 4, single buffered']
    #allocation7 [shape = 'u8[262144]{0}', space=vmem, size = 0x40000, scoped, tag = 'input window, operand 5, single buffered']
    #allocation8 [shape = 's32[1]{0}', space=sflag, size = 0x4, scoped, tag = 'scoped memory for gnn_forward.1']
    %12 = vsyncpa [#allocation3], 0
    %13 = vsyncpa [#allocation5], 0
    %14 = vsyncpa [#allocation8], 0
    // Predicated region
    $region2: #{gnn_forward.1} parent=1 // pred_check
      _
    $region3: #{gnn_forward.1} parent=1 // pred_check_branch
      %16 = sbr.rel (0) target = $region5
    $region4: #{gnn_forward.1} parent=1 // pred_region
      _
    $region5: #{gnn_forward.1} parent=1 // pred_fallthru
      _
    // Predicated region
    $region6: #{gnn_forward.1} parent=1 // pred_check
      _
    $region7: #{gnn_forward.1} parent=1 // pred_check_branch
      %18 = sbr.rel (0) target = $region9
    $region8: #{gnn_forward.1} parent=1 // pred_region
      %s20 = ssub.s32 2048, 2048
      %21 = vsyncadd [#allocation3], %s20
      %s22 = sshll.u32 [#allocation2], 4
      %s23 = int_to_ptr.vmem [resolvable:$true] %s22
      %28 = dma.hbm_to_vmem [thread:$0]  %s1, 2048, %s23, [#allocation3], 128, 128, 8
    $region9: #{gnn_forward.1} parent=1 // pred_fallthru
      _
    // Predicated region
    $region10: #{gnn_forward.1} parent=1 // pred_check
      _
    $region11: #{gnn_forward.1} parent=1 // pred_check_branch
      %30 = sbr.rel (0) target = $region13
    $region12: #{gnn_forward.1} parent=1 // pred_region
      %s32 = ssub.s32 4096, 4096
      %33 = vsyncadd [#allocation5], %s32
      %s34 = sshll.u32 [#allocation4], 4
      %s35 = int_to_ptr.vmem [resolvable:$true] %s34
      %40 = dma.hbm_to_vmem [thread:$0]  %s2, 4096, %s35, [#allocation5], 128, 128, 8
    $region13: #{gnn_forward.1} parent=1 // pred_fallthru
      _
    // Predicated region
    $region14: #{gnn_forward.1} parent=1 // pred_check
      _
    $region15: #{gnn_forward.1} parent=1 // pred_check_branch
      %42 = sbr.rel (0) target = $region17
    $region16: #{gnn_forward.1} parent=1 // pred_region
      _
    $region17: #{gnn_forward.1} parent=1 // pred_fallthru
      _
    // Predicated region
    $region18: #{gnn_forward.1} parent=1 // pred_check
      _
    $region19: #{gnn_forward.1} parent=1 // pred_check_branch
      %44 = sbr.rel (0) target = $region21
    $region20: #{gnn_forward.1} parent=1 // pred_region
      %s46 = ssub.s32 3072, 3072
      %47 = vsyncadd [#allocation5], %s46
      %s48 = sshll.u32 [#allocation6], 4
      %s49 = int_to_ptr.vmem [resolvable:$true] %s48
      %54 = dma.hbm_to_vmem [thread:$0]  %s4, 3072, %s49, [#allocation5], 64, 64, 4
    $region21: #{gnn_forward.1} parent=1 // pred_fallthru
      _
    // Predicated region
    $region22: #{gnn_forward.1} parent=1 // pred_check
      _
    $region23: #{gnn_forward.1} parent=1 // pred_check_branch
      %56 = sbr.rel (0) target = $region25
    $region24: #{gnn_forward.1} parent=1 // pred_region
      %s58 = ssub.s32 8192, 8192
      %59 = vsyncadd [#allocation8], %s58
      %s60 = sshll.u32 [#allocation7], 4
      %s61 = int_to_ptr.vmem [resolvable:$true] %s60
      %66 = dma.hbm_to_vmem [thread:$0]  %s5, 8192, %s61, [#allocation8], 256, 256, 16
    $region25: #{gnn_forward.1} parent=1 // pred_fallthru
      _
    // Predicated region
    $region26: #{gnn_forward.1} parent=1 // pred_check
      _
    $region27: #{gnn_forward.1} parent=1 // pred_check_branch
      %68 = sbr.rel (0) target = $region29
    $region28: #{gnn_forward.1} parent=1 // pred_region
      _
    $region29: #{gnn_forward.1} parent=1 // pred_fallthru
      _
    // Predicated region
    $region30: #{gnn_forward.1} parent=1 // pred_check
      _
    $region31: #{gnn_forward.1} parent=1 // pred_check_branch
      %70 = sbr.rel (0) target = $region33
    $region32: #{gnn_forward.1} parent=1 // pred_region
      %71 = dma.done [#allocation3], 2048
    $region33: #{gnn_forward.1} parent=1 // pred_fallthru
      _
    // Predicated region
    $region34: #{gnn_forward.1} parent=1 // pred_check
      _
    $region35: #{gnn_forward.1} parent=1 // pred_check_branch
      %73 = sbr.rel (0) target = $region37
    $region36: #{gnn_forward.1} parent=1 // pred_region
      %74 = dma.done [#allocation5], 4096
    $region37: #{gnn_forward.1} parent=1 // pred_fallthru
      _
    // Predicated region
    $region38: #{gnn_forward.1} parent=1 // pred_check
      _
    $region39: #{gnn_forward.1} parent=1 // pred_check_branch
      %76 = sbr.rel (0) target = $region41
    $region40: #{gnn_forward.1} parent=1 // pred_region
      %77 = dma.done [#allocation5], 3072
    $region41: #{gnn_forward.1} parent=1 // pred_fallthru
      _
    // Predicated region
    $region42: #{gnn_forward.1} parent=1 // pred_check
      _
    $region43: #{gnn_forward.1} parent=1 // pred_check_branch
      %79 = sbr.rel (0) target = $region45
    $region44: #{gnn_forward.1} parent=1 // pred_region
      %80 = dma.done [#allocation8], 8192
    $region45: #{gnn_forward.1} parent=1 // pred_fallthru
      _
    %v82 = vld [vmem:[%s6] sm:$0xff]
    %v83 = vld [vmem:[%s6 + $0x8] sm:$0xff]
    %v84 = vld [vmem:[%s0] sm:$0xff]
    %v85 = vld [vmem:[%s0 + $0x8] sm:$0xff]
    %v86 = vld [vmem:[#allocation6] sm:$0xf]
    %v87 = vld [vmem:[#allocation6 + $0x4] sm:$0xf]
    %v88 = vld [vmem:[#allocation6 + $0x8] sm:$0xf]
    %v89 = vld [vmem:[#allocation6 + $0xc] sm:$0xf]
    %v90 = vld [vmem:[#allocation6 + $0x10] sm:$0xf]
    %v91 = vld [vmem:[#allocation6 + $0x14] sm:$0xf]
    %v92 = vld [vmem:[#allocation6 + $0x18] sm:$0xf]
    %v93 = vld [vmem:[#allocation6 + $0x1c] sm:$0xf]
    %v94 = vld [vmem:[#allocation6 + $0x20] sm:$0xf]
    %v95 = vld [vmem:[#allocation6 + $0x24] sm:$0xf]
    %v96 = vld [vmem:[#allocation6 + $0x28] sm:$0xf]
    %v97 = vld [vmem:[#allocation6 + $0x2c] sm:$0xf]
    %v98 = vld [vmem:[#allocation6 + $0x30] sm:$0xf]
    %v99 = vld [vmem:[#allocation6 + $0x34] sm:$0xf]
    %v100 = vld [vmem:[#allocation6 + $0x38] sm:$0xf]
    %v101 = vld [vmem:[#allocation6 + $0x3c] sm:$0xf]
    %v102 = vpack.c.bf16 %v85, %v84
    %v103 = vlaneseq
    %v104 = vshrl.u32 %v103, 7
    %v105 = vsub.s32 0, %v104
    %v106 = vrot.slane %v82, %v105
    %v123 = vunpack.c.l.b16 %v86
    %v124 = vunpack.c.l.b16 %v87
    %v125 = vunpack.c.l.b16 %v88
    %v126 = vunpack.c.l.b16 %v89
    %v127 = vunpack.c.l.b16 %v90
    %v128 = vunpack.c.l.b16 %v91
    %v129 = vunpack.c.l.b16 %v92
    %v130 = vunpack.c.l.b16 %v93
    %v131 = vunpack.c.l.b16 %v94
    %v132 = vunpack.c.l.b16 %v95
    %v133 = vunpack.c.l.b16 %v96
    %v134 = vunpack.c.l.b16 %v97
    %v135 = vunpack.c.l.b16 %v98
    %v136 = vunpack.c.l.b16 %v99
    %v137 = vunpack.c.l.b16 %v100
    %v138 = vunpack.c.l.b16 %v101
    %v139 = vpack.c.b16 %v124, %v123
    %v140 = vpack.c.b16 %v126, %v125
    %v141 = vpack.c.b16 %v128, %v127
    %v142 = vpack.c.b16 %v130, %v129
    %v143 = vpack.c.b16 %v132, %v131
    %v144 = vpack.c.b16 %v134, %v133
    %v145 = vpack.c.b16 %v136, %v135
    %v146 = vpack.c.b16 %v138, %v137
    %155 = vmatprep.subr.bf16.mxu0 0
    %156 = vmatpush1.bf16.msra.mxu0 %v139
    %157 = vmatprep.subr.bf16.mxu0 0
    %158 = vmatpush1.bf16.msra.mxu0 %v140
    %159 = vmatprep.subr.bf16.mxu0 0
    %160 = vmatpush1.bf16.msra.mxu0 %v141
    %161 = vmatprep.subr.bf16.mxu0 0
    %162 = vmatpush1.bf16.msra.mxu0 %v142
    %163 = vmatprep.subr.bf16.mxu0 0
    %164 = vmatpush1.bf16.msra.mxu0 %v143
    %165 = vmatprep.subr.bf16.mxu0 0
    %166 = vmatpush1.bf16.msra.mxu0 %v144
    %167 = vmatprep.subr.bf16.mxu0 0
    %168 = vmatpush1.bf16.msra.mxu0 %v145
    %169 = vmatprep.subr.bf16.mxu0 0
    %170 = vmatpush1.bf16.msra.mxu0 %v146
    %171 = vmatprep.subr.bf16.mxu0 0
    %172 = vmatpush1.bf16.msra.mxu0 0
    %173 = vmatprep.subr.bf16.mxu0 0
    %174 = vmatpush1.bf16.msra.mxu0 0
    %175 = vmatprep.subr.bf16.mxu0 0
    %176 = vmatpush1.bf16.msra.mxu0 0
    %177 = vmatprep.subr.bf16.mxu0 0
    %178 = vmatpush1.bf16.msra.mxu0 0
    %179 = vmatprep.subr.bf16.mxu0 0
    %180 = vmatpush1.bf16.msra.mxu0 0
    %181 = vmatprep.subr.bf16.mxu0 0
    %182 = vmatpush1.bf16.msra.mxu0 0
    %183 = vmatprep.subr.bf16.mxu0 0
    %184 = vmatpush1.bf16.msra.mxu0 0
    %185 = vmatprep.subr.bf16.mxu0 0
    %186 = vmatpush1.bf16.msra.mxu0 0
    %187 = vmatprep.mubr.bf16.mxu0 0
    %188 = vmatmul.mubr.bf16.gmra.mrb[0].mxu0 %v102
    %v189 = vpop.f32.mrb[0].mxu0
    %v190 = vadd.f32 %v106, %v189
    %v191 = vpop.f32.mrb[0].mxu0
    %v192 = vpop.f32.mrb[0].mxu0
    %v193 = vadd.f32 %v106, %v192
    %v194 = vpop.f32.mrb[0].mxu0
    %195 = vdwg.mxu0
    %v196 = vld [vmem:[#allocation2] sm:$0xff]
    %v197 = vld [vmem:[#allocation2 + $0x8] sm:$0xff]
    %v198 = vld [vmem:[#allocation2 + $0x10] sm:$0xff]
    %v199 = vld [vmem:[#allocation2 + $0x18] sm:$0xff]
    %v200 = vld [vmem:[#allocation2 + $0x20] sm:$0xff]
    %v201 = vld [vmem:[#allocation2 + $0x28] sm:$0xff]
    %v202 = vld [vmem:[#allocation2 + $0x30] sm:$0xff]
    %v203 = vld [vmem:[#allocation2 + $0x38] sm:$0xff]
    %v204 = vld [vmem:[#allocation2 + $0x40] sm:$0xff]
    %v205 = vld [vmem:[#allocation2 + $0x48] sm:$0xff]
    %v206 = vld [vmem:[#allocation2 + $0x50] sm:$0xff]
    %v207 = vld [vmem:[#allocation2 + $0x58] sm:$0xff]
    %v208 = vld [vmem:[#allocation2 + $0x60] sm:$0xff]
    %v209 = vld [vmem:[#allocation2 + $0x68] sm:$0xff]
    %v210 = vld [vmem:[#allocation2 + $0x70] sm:$0xff]
    %v211 = vld [vmem:[#allocation2 + $0x78] sm:$0xff]
    %s212 = scalar_lea.vmem [#allocation6], 64
    %v213 = vld [vmem:[%s212] sm:$0xf]
    %v214 = vld [vmem:[%s212 + $0x4] sm:$0xf]
    %v215 = vld [vmem:[%s212 + $0x8] sm:$0xf]
    %v216 = vld [vmem:[%s212 + $0xc] sm:$0xf]
    %v217 = vld [vmem:[%s212 + $0x10] sm:$0xf]
    %v218 = vld [vmem:[%s212 + $0x14] sm:$0xf]
    %v219 = vld [vmem:[%s212 + $0x18] sm:$0xf]
    %v220 = vld [vmem:[%s212 + $0x1c] sm:$0xf]
    %v221 = vld [vmem:[%s212 + $0x20] sm:$0xf]
    %v222 = vld [vmem:[%s212 + $0x24] sm:$0xf]
    %v223 = vld [vmem:[%s212 + $0x28] sm:$0xf]
    %v224 = vld [vmem:[%s212 + $0x2c] sm:$0xf]
    %v225 = vld [vmem:[%s212 + $0x30] sm:$0xf]
    %v226 = vld [vmem:[%s212 + $0x34] sm:$0xf]
    %v227 = vld [vmem:[%s212 + $0x38] sm:$0xf]
    %v228 = vld [vmem:[%s212 + $0x3c] sm:$0xf]
    %v229 = vpack.c.bf16 %v197, %v196
    %v230 = vpack.c.bf16 %v199, %v198
    %v231 = vpack.c.bf16 %v201, %v200
    %v232 = vpack.c.bf16 %v203, %v202
    %v233 = vpack.c.bf16 %v205, %v204
    %v234 = vpack.c.bf16 %v207, %v206
    %v235 = vpack.c.bf16 %v209, %v208
    %v236 = vpack.c.bf16 %v211, %v210
    %v237 = vlaneseq
    %v238 = vshrl.u32 %v237, 7
    %v239 = vsub.s32 1, %v238
    %v240 = vrot.slane %v82, %v239
    %v257 = vunpack.c.l.b16 %v213
    %v258 = vunpack.c.l.b16 %v214
    %v259 = vunpack.c.l.b16 %v215
    %v260 = vunpack.c.l.b16 %v216
    %v261 = vunpack.c.l.b16 %v217
    %v262 = vunpack.c.l.b16 %v218
    %v263 = vunpack.c.l.b16 %v219
    %v264 = vunpack.c.l.b16 %v220
    %v265 = vunpack.c.l.b16 %v221
    %v266 = vunpack.c.l.b16 %v222
    %v267 = vunpack.c.l.b16 %v223
    %v268 = vunpack.c.l.b16 %v224
    %v269 = vunpack.c.l.b16 %v225
    %v270 = vunpack.c.l.b16 %v226
    %v271 = vunpack.c.l.b16 %v227
    %v272 = vunpack.c.l.b16 %v228
    %v273 = vpack.c.b16 %v258, %v257
    %v274 = vpack.c.b16 %v260, %v259
    %v275 = vpack.c.b16 %v262, %v261
    %v276 = vpack.c.b16 %v264, %v263
    %v277 = vpack.c.b16 %v266, %v265
    %v278 = vpack.c.b16 %v268, %v267
    %v279 = vpack.c.b16 %v270, %v269
    %v280 = vpack.c.b16 %v272, %v271
    %289 = vmatprep.subr.bf16.mxu0 0
    %290 = vmatpush1.bf16.msra.mxu0 %v273
    %291 = vmatprep.subr.bf16.mxu0 0
    %292 = vmatpush1.bf16.msra.mxu0 %v274
    %293 = vmatprep.subr.bf16.mxu0 0
    %294 = vmatpush1.bf16.msra.mxu0 %v275
    %295 = vmatprep.subr.bf16.mxu0 0
    %296 = vmatpush1.bf16.msra.mxu0 %v276
    %297 = vmatprep.subr.bf16.mxu0 0
    %298 = vmatpush1.bf16.msra.mxu0 %v277
    %299 = vmatprep.subr.bf16.mxu0 0
    %300 = vmatpush1.bf16.msra.mxu0 %v278
    %301 = vmatprep.subr.bf16.mxu0 0
    %302 = vmatpush1.bf16.msra.mxu0 %v279
    %303 = vmatprep.subr.bf16.mxu0 0
    %304 = vmatpush1.bf16.msra.mxu0 %v280
    %305 = vmatprep.subr.bf16.mxu0 0
    %306 = vmatpush1.bf16.msra.mxu0 0
    %307 = vmatprep.subr.bf16.mxu0 0
    %308 = vmatpush1.bf16.msra.mxu0 0
    %309 = vmatprep.subr.bf16.mxu0 0
    %310 = vmatpush1.bf16.msra.mxu0 0
    %311 = vmatprep.subr.bf16.mxu0 0
    %312 = vmatpush1.bf16.msra.mxu0 0
    %313 = vmatprep.subr.bf16.mxu0 0
    %314 = vmatpush1.bf16.msra.mxu0 0
    %315 = vmatprep.subr.bf16.mxu0 0
    %316 = vmatpush1.bf16.msra.mxu0 0
    %317 = vmatprep.subr.bf16.mxu0 0
    %318 = vmatpush1.bf16.msra.mxu0 0
    %319 = vmatprep.subr.bf16.mxu0 0
    %320 = vmatpush1.bf16.msra.mxu0 0
    %321 = vmatprep.mubr.bf16.mxu0 0
    %322 = vmatmul.mubr.bf16.gmra.mrb[0].mxu0 %v229
    %v323 = vpop.f32.mrb[0].mxu0
    %v324 = vadd.f32 %v240, %v323
    %v325 = vpop.f32.mrb[0].mxu0
    %v326 = vpop.f32.mrb[0].mxu0
    %v327 = vadd.f32 %v240, %v326
    %v328 = vpop.f32.mrb[0].mxu0
    %329 = vmatprep.mubr.bf16.mxu0 0
    %330 = vmatmul.mubr.bf16.gmra.mrb[0].mxu0 %v230
    %v331 = vpop.f32.mrb[0].mxu0
    %v332 = vadd.f32 %v240, %v331
    %v333 = vpop.f32.mrb[0].mxu0
    %v334 = vpop.f32.mrb[0].mxu0
    %v335 = vadd.f32 %v240, %v334
    %v336 = vpop.f32.mrb[0].mxu0
    %337 = vmatprep.mubr.bf16.mxu0 0
    %338 = vmatmul.mubr.bf16.gmra.mrb[0].mxu0 %v231
    %v339 = vpop.f32.mrb[0].mxu0
    %v340 = vadd.f32 %v240, %v339
    %v341 = vpop.f32.mrb[0].mxu0
    %v342 = vpop.f32.mrb[0].mxu0
    %v343 = vadd.f32 %v240, %v342
    %v344 = vpop.f32.mrb[0].mxu0
    %345 = vmatprep.mubr.bf16.mxu0 0
    %346 = vmatmul.mubr.bf16.gmra.mrb[0].mxu0 %v232
    %v347 = vpop.f32.mrb[0].mxu0
    %v348 = vadd.f32 %v240, %v347
    %v349 = vpop.f32.mrb[0].mxu0
    %v350 = vpop.f32.mrb[0].mxu0
    %v351 = vadd.f32 %v240, %v350
    %v352 = vpop.f32.mrb[0].mxu0
    %353 = vmatprep.mubr.bf16.mxu0 0
    %354 = vmatmul.mubr.bf16.gmra.mrb[0].mxu0 %v233
    %v355 = vpop.f32.mrb[0].mxu0
    %v356 = vadd.f32 %v240, %v355
    %v357 = vpop.f32.mrb[0].mxu0
    %v358 = vpop.f32.mrb[0].mxu0
    %v359 = vadd.f32 %v240, %v358
    %v360 = vpop.f32.mrb[0].mxu0
    %361 = vmatprep.mubr.bf16.mxu0 0
    %362 = vmatmul.mubr.bf16.gmra.mrb[0].mxu0 %v234
    %v363 = vpop.f32.mrb[0].mxu0
    %v364 = vadd.f32 %v240, %v363
    %v365 = vpop.f32.mrb[0].mxu0
    %v366 = vpop.f32.mrb[0].mxu0
    %v367 = vadd.f32 %v240, %v366
    %v368 = vpop.f32.mrb[0].mxu0
    %369 = vmatprep.mubr.bf16.mxu0 0
    %370 = vmatmul.mubr.bf16.gmra.mrb[0].mxu0 %v235
    %v371 = vpop.f32.mrb[0].mxu0
    %v372 = vadd.f32 %v240, %v371
    %v373 = vpop.f32.mrb[0].mxu0
    %v374 = vpop.f32.mrb[0].mxu0
    %v375 = vadd.f32 %v240, %v374
    %v376 = vpop.f32.mrb[0].mxu0
    %377 = vmatprep.mubr.bf16.mxu0 0
    %378 = vmatmul.mubr.bf16.gmra.mrb[0].mxu0 %v236
    %v379 = vpop.f32.mrb[0].mxu0
    %v380 = vadd.f32 %v240, %v379
    %v381 = vpop.f32.mrb[0].mxu0
    %v382 = vpop.f32.mrb[0].mxu0
    %v383 = vadd.f32 %v240, %v382
    %v384 = vpop.f32.mrb[0].mxu0
    %385 = vdwg.mxu0
    %v386 = vld [vmem:[#allocation4] sm:$0xff]
    %v387 = vld [vmem:[#allocation4 + $0x8] sm:$0xff]
    %v388 = vld [vmem:[#allocation4 + $0x10] sm:$0xff]
    %v389 = vld [vmem:[#allocation4 + $0x18] sm:$0xff]
    %v390 = vld [vmem:[#allocation4 + $0x20] sm:$0xff]
    %v391 = vld [vmem:[#allocation4 + $0x28] sm:$0xff]
    %v392 = vld [vmem:[#allocation4 + $0x30] sm:$0xff]
    %v393 = vld [vmem:[#allocation4 + $0x38] sm:$0xff]
    %v394 = vld [vmem:[#allocation4 + $0x40] sm:$0xff]
    %v395 = vld [vmem:[#allocation4 + $0x48] sm:$0xff]
    %v396 = vld [vmem:[#allocation4 + $0x50] sm:$0xff]
    %v397 = vld [vmem:[#allocation4 + $0x58] sm:$0xff]
    %v398 = vld [vmem:[#allocation4 + $0x60] sm:$0xff]
    %v399 = vld [vmem:[#allocation4 + $0x68] sm:$0xff]
    %v400 = vld [vmem:[#allocation4 + $0x70] sm:$0xff]
    %v401 = vld [vmem:[#allocation4 + $0x78] sm:$0xff]
    %v402 = vld [vmem:[#allocation4 + $0x80] sm:$0xff]
    %v403 = vld [vmem:[#allocation4 + $0x88] sm:$0xff]
    %v404 = vld [vmem:[#allocation4 + $0x90] sm:$0xff]
    %v405 = vld [vmem:[#allocation4 + $0x98] sm:$0xff]
    %v406 = vld [vmem:[#allocation4 + $0xa0] sm:$0xff]
    %v407 = vld [vmem:[#allocation4 + $0xa8] sm:$0xff]
    %v408 = vld [vmem:[#allocation4 + $0xb0] sm:$0xff]
    %v409 = vld [vmem:[#allocation4 + $0xb8] sm:$0xff]
    %v410 = vld [vmem:[#allocation4 + $0xc0] sm:$0xff]
    %v411 = vld [vmem:[#allocation4 + $0xc8] sm:$0xff]
    %v412 = vld [vmem:[#allocation4 + $0xd0] sm:$0xff]
    %v413 = vld [vmem:[#allocation4 + $0xd8] sm:$0xff]
    %v414 = vld [vmem:[#allocation4 + $0xe0] sm:$0xff]
    %v415 = vld [vmem:[#allocation4 + $0xe8] sm:$0xff]
    %v416 = vld [vmem:[#allocation4 + $0xf0] sm:$0xff]
    %v417 = vld [vmem:[#allocation4 + $0xf8] sm:$0xff]
    %418 = vmatprep.subr.mxu0 0.0
    %419 = vmatpush1.msra.mxu0 %v324
    %420 = vmatprep.subr.mxu0 0.0
    %421 = vmatpush1.msra.mxu0 %v327
    %422 = vmatprep.subr.mxu0 0.0
    %423 = vmatpush1.msra.mxu0 %v332
    %424 = vmatprep.subr.mxu0 0.0
    %425 = vmatpush1.msra.mxu0 %v335
    %426 = vmatprep.subr.mxu0 0.0
    %427 = vmatpush1.msra.mxu0 %v340
    %428 = vmatprep.subr.mxu0 0.0
    %429 = vmatpush1.msra.mxu0 %v343
    %430 = vmatprep.subr.mxu0 0.0
    %431 = vmatpush1.msra.mxu0 %v348
    %432 = vmatprep.subr.mxu0 0.0
    %433 = vmatpush1.msra.mxu0 %v351
    %434 = vmatprep.subr.mxu0 0.0
    %435 = vmatpush1.msra.mxu0 %v356
    %436 = vmatprep.subr.mxu0 0.0
    %437 = vmatpush1.msra.mxu0 %v359
    %438 = vmatprep.subr.mxu0 0.0
    %439 = vmatpush1.msra.mxu0 %v364
    %440 = vmatprep.subr.mxu0 0.0
    %441 = vmatpush1.msra.mxu0 %v367
    %442 = vmatprep.subr.mxu0 0.0
    %443 = vmatpush1.msra.mxu0 %v372
    %444 = vmatprep.subr.mxu0 0.0
    %445 = vmatpush1.msra.mxu0 %v375
    %446 = vmatprep.subr.mxu0 0.0
    %447 = vmatpush1.msra.mxu0 %v380
    %448 = vmatprep.subr.mxu0 0.0
    %449 = vmatpush1.msra.mxu0 %v383
    %450 = vmatprep.subr.mxu0 0.0
    %451 = vmatpush1.msra.mxu0 0.0
    %452 = vmatprep.subr.mxu0 0.0
    %453 = vmatpush1.msra.mxu0 0.0
    %454 = vmatprep.subr.mxu0 0.0
    %455 = vmatpush1.msra.mxu0 0.0
    %456 = vmatprep.subr.mxu0 0.0
    %457 = vmatpush1.msra.mxu0 0.0
    %458 = vmatprep.subr.mxu0 0.0
    %459 = vmatpush1.msra.mxu0 0.0
    %460 = vmatprep.subr.mxu0 0.0
    %461 = vmatpush1.msra.mxu0 0.0
    %462 = vmatprep.subr.mxu0 0.0
    %463 = vmatpush1.msra.mxu0 0.0
    %464 = vmatprep.subr.mxu0 0.0
    %465 = vmatpush1.msra.mxu0 0.0
    %466 = vmatprep.subr.mxu0 0.0
    %467 = vmatpush1.msra.mxu0 0.0
    %468 = vmatprep.subr.mxu0 0.0
    %469 = vmatpush1.msra.mxu0 0.0
    %470 = vmatprep.subr.mxu0 0.0
    %471 = vmatpush1.msra.mxu0 0.0
    %472 = vmatprep.subr.mxu0 0.0
    %473 = vmatpush1.msra.mxu0 0.0
    %474 = vmatprep.subr.mxu0 0.0
    %475 = vmatpush1.msra.mxu0 0.0
    %476 = vmatprep.subr.mxu0 0.0
    %477 = vmatpush1.msra.mxu0 0.0
    %478 = vmatprep.subr.mxu0 0.0
    %479 = vmatpush1.msra.mxu0 0.0
    %480 = vmatprep.subr.mxu0 0.0
    %481 = vmatpush1.msra.mxu0 0.0
    %482 = vmatprep.mubr.f32.mxu0 0.0
    %483 = vmatmul.mubr.f32.gmra.mrb[0].mxu0 %v386
    %v484 = vpop.f32.mrb[0].mxu0
    %v485 = vadd.f32 0.0, %v484
    %v486 = vpop.f32.mrb[0].mxu0
    %487 = vmatprep.mubr.f32.mxu0 0.0
    %488 = vmatmul.mubr.f32.gmra.mrb[0].mxu0 %v387
    %v489 = vpop.f32.mrb[0].mxu0
    %v490 = vadd.f32 0.0, %v489
    %v491 = vpop.f32.mrb[0].mxu0
    %492 = vmatprep.mubr.f32.mxu0 0.0
    %493 = vmatmul.mubr.f32.gmra.mrb[0].mxu0 %v388
    %v494 = vpop.f32.mrb[0].mxu0
    %v495 = vadd.f32 0.0, %v494
    %v496 = vpop.f32.mrb[0].mxu0
    %497 = vmatprep.mubr.f32.mxu0 0.0
    %498 = vmatmul.mubr.f32.gmra.mrb[0].mxu0 %v389
    %v499 = vpop.f32.mrb[0].mxu0
    %v500 = vadd.f32 0.0, %v499
    %v501 = vpop.f32.mrb[0].mxu0
    %502 = vmatprep.mubr.f32.mxu0 0.0
    %503 = vmatmul.mubr.f32.gmra.mrb[0].mxu0 %v390
    %v504 = vpop.f32.mrb[0].mxu0
    %v505 = vadd.f32 0.0, %v504
    %v506 = vpop.f32.mrb[0].mxu0
    %507 = vmatprep.mubr.f32.mxu0 0.0
    %508 = vmatmul.mubr.f32.gmra.mrb[0].mxu0 %v391
    %v509 = vpop.f32.mrb[0].mxu0
    %v510 = vadd.f32 0.0, %v509
    %v511 = vpop.f32.mrb[0].mxu0
    %512 = vmatprep.mubr.f32.mxu0 0.0
    %513 = vmatmul.mubr.f32.gmra.mrb[0].mxu0 %v392
    %v514 = vpop.f32.mrb[0].mxu0
    %v515 = vadd.f32 0.0, %v514
    %v516 = vpop.f32.mrb[0].mxu0
    %517 = vmatprep.mubr.f32.mxu0 0.0
    %518 = vmatmul.mubr.f32.gmra.mrb[0].mxu0 %v393
    %v519 = vpop.f32.mrb[0].mxu0
    %v520 = vadd.f32 0.0, %v519
    %v521 = vpop.f32.mrb[0].mxu0
    %522 = vmatprep.mubr.f32.mxu0 0.0
    %523 = vmatmul.mubr.f32.gmra.mrb[0].mxu0 %v394
    %v524 = vpop.f32.mrb[0].mxu0
    %v525 = vadd.f32 0.0, %v524
    %v526 = vpop.f32.mrb[0].mxu0
    %527 = vmatprep.mubr.f32.mxu0 0.0
    %528 = vmatmul.mubr.f32.gmra.mrb[0].mxu0 %v395
    %v529 = vpop.f32.mrb[0].mxu0
    %v530 = vadd.f32 0.0, %v529
    %v531 = vpop.f32.mrb[0].mxu0
    %532 = vmatprep.mubr.f32.mxu0 0.0
    %533 = vmatmul.mubr.f32.gmra.mrb[0].mxu0 %v396
    %v534 = vpop.f32.mrb[0].mxu0
    %v535 = vadd.f32 0.0, %v534
    %v536 = vpop.f32.mrb[0].mxu0
    %537 = vmatprep.mubr.f32.mxu0 0.0
    %538 = vmatmul.mubr.f32.gmra.mrb[0].mxu0 %v397
    %v539 = vpop.f32.mrb[0].mxu0
    %v540 = vadd.f32 0.0, %v539
    %v541 = vpop.f32.mrb[0].mxu0
    %542 = vmatprep.mubr.f32.mxu0 0.0
    %543 = vmatmul.mubr.f32.gmra.mrb[0].mxu0 %v398
    %v544 = vpop.f32.mrb[0].mxu0
    %v545 = vadd.f32 0.0, %v544
    %v546 = vpop.f32.mrb[0].mxu0
    %547 = vmatprep.mubr.f32.mxu0 0.0
    %548 = vmatmul.mubr.f32.gmra.mrb[0].mxu0 %v399
    %v549 = vpop.f32.mrb[0].mxu0
    %v550 = vadd.f32 0.0, %v549
    %v551 = vpop.f32.mrb[0].mxu0
    %552 = vmatprep.mubr.f32.mxu0 0.0
    %553 = vmatmul.mubr.f32.gmra.mrb[0].mxu0 %v400
    %v554 = vpop.f32.mrb[0].mxu0
    %v555 = vadd.f32 0.0, %v554
    %v556 = vpop.f32.mrb[0].mxu0
    %557 = vmatprep.mubr.f32.mxu0 0.0
    %558 = vmatmul.mubr.f32.gmra.mrb[0].mxu0 %v401
    %v559 = vpop.f32.mrb[0].mxu0
    %v560 = vadd.f32 0.0, %v559
    %v561 = vpop.f32.mrb[0].mxu0
    %562 = vmatprep.mubr.f32.mxu0 0.0
    %563 = vmatmul.mubr.f32.gmra.mrb[0].mxu0 %v402
    %v564 = vpop.f32.mrb[0].mxu0
    %v565 = vadd.f32 0.0, %v564
    %v566 = vpop.f32.mrb[0].mxu0
    %567 = vmatprep.mubr.f32.mxu0 0.0
    %568 = vmatmul.mubr.f32.gmra.mrb[0].mxu0 %v403
    %v569 = vpop.f32.mrb[0].mxu0
    %v570 = vadd.f32 0.0, %v569
    %v571 = vpop.f32.mrb[0].mxu0
    %572 = vmatprep.mubr.f32.mxu0 0.0
    %573 = vmatmul.mubr.f32.gmra.mrb[0].mxu0 %v404
    %v574 = vpop.f32.mrb[0].mxu0
    %v575 = vadd.f32 0.0, %v574
    %v576 = vpop.f32.mrb[0].mxu0
    %577 = vmatprep.mubr.f32.mxu0 0.0
    %578 = vmatmul.mubr.f32.gmra.mrb[0].mxu0 %v405
    %v579 = vpop.f32.mrb[0].mxu0
    %v580 = vadd.f32 0.0, %v579
    %v581 = vpop.f32.mrb[0].mxu0
    %582 = vmatprep.mubr.f32.mxu0 0.0
    %583 = vmatmul.mubr.f32.gmra.mrb[0].mxu0 %v406
    %v584 = vpop.f32.mrb[0].mxu0
    %v585 = vadd.f32 0.0, %v584
    %v586 = vpop.f32.mrb[0].mxu0
    %587 = vmatprep.mubr.f32.mxu0 0.0
    %588 = vmatmul.mubr.f32.gmra.mrb[0].mxu0 %v407
    %v589 = vpop.f32.mrb[0].mxu0
    %v590 = vadd.f32 0.0, %v589
    %v591 = vpop.f32.mrb[0].mxu0
    %592 = vmatprep.mubr.f32.mxu0 0.0
    %593 = vmatmul.mubr.f32.gmra.mrb[0].mxu0 %v408
    %v594 = vpop.f32.mrb[0].mxu0
    %v595 = vadd.f32 0.0, %v594
    %v596 = vpop.f32.mrb[0].mxu0
    %597 = vmatprep.mubr.f32.mxu0 0.0
    %598 = vmatmul.mubr.f32.gmra.mrb[0].mxu0 %v409
    %v599 = vpop.f32.mrb[0].mxu0
    %v600 = vadd.f32 0.0, %v599
    %v601 = vpop.f32.mrb[0].mxu0
    %602 = vmatprep.mubr.f32.mxu0 0.0
    %603 = vmatmul.mubr.f32.gmra.mrb[0].mxu0 %v410
    %v604 = vpop.f32.mrb[0].mxu0
    %v605 = vadd.f32 0.0, %v604
    %v606 = vpop.f32.mrb[0].mxu0
    %607 = vmatprep.mubr.f32.mxu0 0.0
    %608 = vmatmul.mubr.f32.gmra.mrb[0].mxu0 %v411
    %v609 = vpop.f32.mrb[0].mxu0
    %v610 = vadd.f32 0.0, %v609
    %v611 = vpop.f32.mrb[0].mxu0
    %612 = vmatprep.mubr.f32.mxu0 0.0
    %613 = vmatmul.mubr.f32.gmra.mrb[0].mxu0 %v412
    %v614 = vpop.f32.mrb[0].mxu0
    %v615 = vadd.f32 0.0, %v614
    %v616 = vpop.f32.mrb[0].mxu0
    %617 = vmatprep.mubr.f32.mxu0 0.0
    %618 = vmatmul.mubr.f32.gmra.mrb[0].mxu0 %v413
    %v619 = vpop.f32.mrb[0].mxu0
    %v620 = vadd.f32 0.0, %v619
    %v621 = vpop.f32.mrb[0].mxu0
    %622 = vmatprep.mubr.f32.mxu0 0.0
    %623 = vmatmul.mubr.f32.gmra.mrb[0].mxu0 %v414
    %v624 = vpop.f32.mrb[0].mxu0
    %v625 = vadd.f32 0.0, %v624
    %v626 = vpop.f32.mrb[0].mxu0
    %627 = vmatprep.mubr.f32.mxu0 0.0
    %628 = vmatmul.mubr.f32.gmra.mrb[0].mxu0 %v415
    %v629 = vpop.f32.mrb[0].mxu0
    %v630 = vadd.f32 0.0, %v629
    %v631 = vpop.f32.mrb[0].mxu0
    %632 = vmatprep.mubr.f32.mxu0 0.0
    %633 = vmatmul.mubr.f32.gmra.mrb[0].mxu0 %v416
    %v634 = vpop.f32.mrb[0].mxu0
    %v635 = vadd.f32 0.0, %v634
    %v636 = vpop.f32.mrb[0].mxu0
    %637 = vmatprep.mubr.f32.mxu0 0.0
    %638 = vmatmul.mubr.f32.gmra.mrb[0].mxu0 %v417
    %v639 = vpop.f32.mrb[0].mxu0
    %v640 = vadd.f32 0.0, %v639
    %v641 = vpop.f32.mrb[0].mxu0
    %642 = vdwg.mxu0
    %v643 = vld [vmem:[%s3] sm:$0xff]
    %v644 = vld [vmem:[%s3 + $0x8] sm:$0xff]
    %v645 = vld [vmem:[#allocation7] sm:$0xff]
    %v646 = vld [vmem:[#allocation7 + $0x8] sm:$0xff]
    %v647 = vld [vmem:[#allocation7 + $0x10] sm:$0xff]
    %v648 = vld [vmem:[#allocation7 + $0x18] sm:$0xff]
    %v649 = vld [vmem:[#allocation7 + $0x20] sm:$0xff]
    %v650 = vld [vmem:[#allocation7 + $0x28] sm:$0xff]
    %v651 = vld [vmem:[#allocation7 + $0x30] sm:$0xff]
    %v652 = vld [vmem:[#allocation7 + $0x38] sm:$0xff]
    %v653 = vld [vmem:[#allocation7 + $0x40] sm:$0xff]
    %v654 = vld [vmem:[#allocation7 + $0x48] sm:$0xff]
    %v655 = vld [vmem:[#allocation7 + $0x50] sm:$0xff]
    %v656 = vld [vmem:[#allocation7 + $0x58] sm:$0xff]
    %v657 = vld [vmem:[#allocation7 + $0x60] sm:$0xff]
    %v658 = vld [vmem:[#allocation7 + $0x68] sm:$0xff]
    %v659 = vld [vmem:[#allocation7 + $0x70] sm:$0xff]
    %v660 = vld [vmem:[#allocation7 + $0x78] sm:$0xff]
    %v661 = vld [vmem:[#allocation7 + $0x80] sm:$0xff]
    %v662 = vld [vmem:[#allocation7 + $0x88] sm:$0xff]
    %v663 = vld [vmem:[#allocation7 + $0x90] sm:$0xff]
    %v664 = vld [vmem:[#allocation7 + $0x98] sm:$0xff]
    %v665 = vld [vmem:[#allocation7 + $0xa0] sm:$0xff]
    %v666 = vld [vmem:[#allocation7 + $0xa8] sm:$0xff]
    %v667 = vld [vmem:[#allocation7 + $0xb0] sm:$0xff]
    %v668 = vld [vmem:[#allocation7 + $0xb8] sm:$0xff]
    %v669 = vld [vmem:[#allocation7 + $0xc0] sm:$0xff]
    %v670 = vld [vmem:[#allocation7 + $0xc8] sm:$0xff]
    %v671 = vld [vmem:[#allocation7 + $0xd0] sm:$0xff]
    %v672 = vld [vmem:[#allocation7 + $0xd8] sm:$0xff]
    %v673 = vld [vmem:[#allocation7 + $0xe0] sm:$0xff]
    %v674 = vld [vmem:[#allocation7 + $0xe8] sm:$0xff]
    %v675 = vld [vmem:[#allocation7 + $0xf0] sm:$0xff]
    %v676 = vld [vmem:[#allocation7 + $0xf8] sm:$0xff]
    %v677 = vpack.c.bf16 %v193, %v190
    %v710 = vunpack.c.l.b16 %v645
    %v711 = vunpack.c.h.b16 %v645
    %v712 = vunpack.c.l.b16 %v646
    %v713 = vunpack.c.l.b16 %v647
    %v714 = vunpack.c.h.b16 %v647
    %v715 = vunpack.c.l.b16 %v648
    %v716 = vunpack.c.l.b16 %v649
    %v717 = vunpack.c.h.b16 %v649
    %v718 = vunpack.c.l.b16 %v650
    %v719 = vunpack.c.l.b16 %v651
    %v720 = vunpack.c.h.b16 %v651
    %v721 = vunpack.c.l.b16 %v652
    %v722 = vunpack.c.l.b16 %v653
    %v723 = vunpack.c.h.b16 %v653
    %v724 = vunpack.c.l.b16 %v654
    %v725 = vunpack.c.l.b16 %v655
    %v726 = vunpack.c.h.b16 %v655
    %v727 = vunpack.c.l.b16 %v656
    %v728 = vunpack.c.l.b16 %v657
    %v729 = vunpack.c.h.b16 %v657
    %v730 = vunpack.c.l.b16 %v658
    %v731 = vunpack.c.l.b16 %v659
    %v732 = vunpack.c.h.b16 %v659
    %v733 = vunpack.c.l.b16 %v660
    %v734 = vunpack.c.l.b16 %v661
    %v735 = vunpack.c.h.b16 %v661
    %v736 = vunpack.c.l.b16 %v662
    %v737 = vunpack.c.l.b16 %v663
    %v738 = vunpack.c.h.b16 %v663
    %v739 = vunpack.c.l.b16 %v664
    %v740 = vunpack.c.l.b16 %v665
    %v741 = vunpack.c.h.b16 %v665
    %v742 = vunpack.c.l.b16 %v666
    %v743 = vunpack.c.l.b16 %v667
    %v744 = vunpack.c.h.b16 %v667
    %v745 = vunpack.c.l.b16 %v668
    %v746 = vunpack.c.l.b16 %v669
    %v747 = vunpack.c.h.b16 %v669
    %v748 = vunpack.c.l.b16 %v670
    %v749 = vunpack.c.l.b16 %v671
    %v750 = vunpack.c.h.b16 %v671
    %v751 = vunpack.c.l.b16 %v672
    %v752 = vunpack.c.l.b16 %v673
    %v753 = vunpack.c.h.b16 %v673
    %v754 = vunpack.c.l.b16 %v674
    %v755 = vunpack.c.l.b16 %v675
    %v756 = vunpack.c.h.b16 %v675
    %v757 = vunpack.c.l.b16 %v676
    %v758 = vpack.c.b16 %v713, %v710
    %v759 = vpack.c.b16 %v714, %v711
    %v760 = vpack.c.b16 %v715, %v712
    %v761 = vpack.c.b16 %v719, %v716
    %v762 = vpack.c.b16 %v720, %v717
    %v763 = vpack.c.b16 %v721, %v718
    %v764 = vpack.c.b16 %v725, %v722
    %v765 = vpack.c.b16 %v726, %v723
    %v766 = vpack.c.b16 %v727, %v724
    %v767 = vpack.c.b16 %v731, %v728
    %v768 = vpack.c.b16 %v732, %v729
    %v769 = vpack.c.b16 %v733, %v730
    %v770 = vpack.c.b16 %v737, %v734
    %v771 = vpack.c.b16 %v738, %v735
    %v772 = vpack.c.b16 %v739, %v736
    %v773 = vpack.c.b16 %v743, %v740
    %v774 = vpack.c.b16 %v744, %v741
    %v775 = vpack.c.b16 %v745, %v742
    %v776 = vpack.c.b16 %v749, %v746
    %v777 = vpack.c.b16 %v750, %v747
    %v778 = vpack.c.b16 %v751, %v748
    %v779 = vpack.c.b16 %v755, %v752
    %v780 = vpack.c.b16 %v756, %v753
    %v781 = vpack.c.b16 %v757, %v754
    %806 = vmatprep.subr.bf16.mxu0 %v759
    %807 = vmatpush1.bf16.msra.mxu0 %v758
    %808 = vmatprep.subr.bf16.mxu0 %v762
    %809 = vmatpush1.bf16.msra.mxu0 %v761
    %810 = vmatprep.subr.bf16.mxu0 %v765
    %811 = vmatpush1.bf16.msra.mxu0 %v764
    %812 = vmatprep.subr.bf16.mxu0 %v768
    %813 = vmatpush1.bf16.msra.mxu0 %v767
    %814 = vmatprep.subr.bf16.mxu0 %v771
    %815 = vmatpush1.bf16.msra.mxu0 %v770
    %816 = vmatprep.subr.bf16.mxu0 %v774
    %817 = vmatpush1.bf16.msra.mxu0 %v773
    %818 = vmatprep.subr.bf16.mxu0 %v777
    %819 = vmatpush1.bf16.msra.mxu0 %v776
    %820 = vmatprep.subr.bf16.mxu0 %v780
    %821 = vmatpush1.bf16.msra.mxu0 %v779
    %822 = vmatprep.subr.bf16.mxu0 0
    %823 = vmatpush1.bf16.msra.mxu0 0
    %824 = vmatprep.subr.bf16.mxu0 0
    %825 = vmatpush1.bf16.msra.mxu0 0
    %826 = vmatprep.subr.bf16.mxu0 0
    %827 = vmatpush1.bf16.msra.mxu0 0
    %828 = vmatprep.subr.bf16.mxu0 0
    %829 = vmatpush1.bf16.msra.mxu0 0
    %830 = vmatprep.subr.bf16.mxu0 0
    %831 = vmatpush1.bf16.msra.mxu0 0
    %832 = vmatprep.subr.bf16.mxu0 0
    %833 = vmatpush1.bf16.msra.mxu0 0
    %834 = vmatprep.subr.bf16.mxu0 0
    %835 = vmatpush1.bf16.msra.mxu0 0
    %836 = vmatprep.subr.bf16.mxu0 0
    %837 = vmatpush1.bf16.msra.mxu0 0
    %838 = vmatprep.mubr.bf16.mxu0 0
    %839 = vmatmul.mubr.bf16.gmra.mrb[0].mxu0 %v677
    %v840 = vpop.f32.mrb[0].mxu0
    %v841 = vadd.f32 0.0, %v840
    %v842 = vpop.f32.mrb[0].mxu0
    %v843 = vadd.f32 0.0, %v842
    %v844 = vpop.f32.mrb[0].mxu0
    %v845 = vadd.f32 0.0, %v844
    %v846 = vpop.f32.mrb[0].mxu0
    %v847 = vadd.f32 0.0, %v846
    %848 = vdwg.mxu0
    %849 = vmatprep.subr.bf16.mxu0 0
    %850 = vmatpush1.bf16.msra.mxu0 %v760
    %851 = vmatprep.subr.bf16.mxu0 0
    %852 = vmatpush1.bf16.msra.mxu0 %v763
    %853 = vmatprep.subr.bf16.mxu0 0
    %854 = vmatpush1.bf16.msra.mxu0 %v766
    %855 = vmatprep.subr.bf16.mxu0 0
    %856 = vmatpush1.bf16.msra.mxu0 %v769
    %857 = vmatprep.subr.bf16.mxu0 0
    %858 = vmatpush1.bf16.msra.mxu0 %v772
    %859 = vmatprep.subr.bf16.mxu0 0
    %860 = vmatpush1.bf16.msra.mxu0 %v775
    %861 = vmatprep.subr.bf16.mxu0 0
    %862 = vmatpush1.bf16.msra.mxu0 %v778
    %863 = vmatprep.subr.bf16.mxu0 0
    %864 = vmatpush1.bf16.msra.mxu0 %v781
    %865 = vmatprep.subr.bf16.mxu0 0
    %866 = vmatpush1.bf16.msra.mxu0 0
    %867 = vmatprep.subr.bf16.mxu0 0
    %868 = vmatpush1.bf16.msra.mxu0 0
    %869 = vmatprep.subr.bf16.mxu0 0
    %870 = vmatpush1.bf16.msra.mxu0 0
    %871 = vmatprep.subr.bf16.mxu0 0
    %872 = vmatpush1.bf16.msra.mxu0 0
    %873 = vmatprep.subr.bf16.mxu0 0
    %874 = vmatpush1.bf16.msra.mxu0 0
    %875 = vmatprep.subr.bf16.mxu0 0
    %876 = vmatpush1.bf16.msra.mxu0 0
    %877 = vmatprep.subr.bf16.mxu0 0
    %878 = vmatpush1.bf16.msra.mxu0 0
    %879 = vmatprep.subr.bf16.mxu0 0
    %880 = vmatpush1.bf16.msra.mxu0 0
    %881 = vmatprep.mubr.bf16.mxu0 0
    %882 = vmatmul.mubr.bf16.gmra.mrb[0].mxu0 %v677
    %v883 = vpop.f32.mrb[0].mxu0
    %v884 = vadd.f32 0.0, %v883
    %v885 = vpop.f32.mrb[0].mxu0
    %v886 = vpop.f32.mrb[0].mxu0
    %v887 = vadd.f32 0.0, %v886
    %v888 = vpop.f32.mrb[0].mxu0
    %889 = vdwg.mxu0
    %v890 = vlaneseq
    %v891 = vshrl.u32 %v890, 7
    %v892 = vsub.s32 3, %v891
    %v893 = vrot.slane %v82, %v892
    %v894 = vadd.f32 %v841, %v893
    %v895 = vadd.f32 %v845, %v893
    %v896 = vlaneseq
    %v897 = vshrl.u32 %v896, 7
    %v898 = vsub.s32 4, %v897
    %v899 = vrot.slane %v82, %v898
    %v900 = vadd.f32 %v843, %v899
    %v901 = vadd.f32 %v847, %v899
    %v902 = vpack.c.bf16 %v490, %v485
    %v903 = vpack.c.bf16 %v500, %v495
    %v904 = vpack.c.bf16 %v510, %v505
    %v905 = vpack.c.bf16 %v520, %v515
    %v906 = vpack.c.bf16 %v530, %v525
    %v907 = vpack.c.bf16 %v540, %v535
    %v908 = vpack.c.bf16 %v550, %v545
    %v909 = vpack.c.bf16 %v560, %v555
    %v910 = vpack.c.bf16 %v570, %v565
    %v911 = vpack.c.bf16 %v580, %v575
    %v912 = vpack.c.bf16 %v590, %v585
    %v913 = vpack.c.bf16 %v600, %v595
    %v914 = vpack.c.bf16 %v610, %v605
    %v915 = vpack.c.bf16 %v620, %v615
    %v916 = vpack.c.bf16 %v630, %v625
    %v917 = vpack.c.bf16 %v640, %v635
    %v918 = vunpack.c.h.b16 %v646
    %v919 = vunpack.c.h.b16 %v648
    %v920 = vunpack.c.h.b16 %v650
    %v921 = vunpack.c.h.b16 %v652
    %v922 = vunpack.c.h.b16 %v654
    %v923 = vunpack.c.h.b16 %v656
    %v924 = vunpack.c.h.b16 %v658
    %v925 = vunpack.c.h.b16 %v660
    %v926 = vunpack.c.h.b16 %v662
    %v927 = vunpack.c.h.b16 %v664
    %v928 = vunpack.c.h.b16 %v666
    %v929 = vunpack.c.h.b16 %v668
    %v930 = vunpack.c.h.b16 %v670
    %v931 = vunpack.c.h.b16 %v672
    %v932 = vunpack.c.h.b16 %v674
    %v933 = vunpack.c.h.b16 %v676
    %v934 = vpack.c.b16 %v919, %v918
    %v935 = vpack.c.b16 %v921, %v920
    %v936 = vpack.c.b16 %v923, %v922
    %v937 = vpack.c.b16 %v925, %v924
    %v938 = vpack.c.b16 %v927, %v926
    %v939 = vpack.c.b16 %v929, %v928
    %v940 = vpack.c.b16 %v931, %v930
    %v941 = vpack.c.b16 %v933, %v932
    %950 = vmatprep.subr.bf16.mxu0 0
    %951 = vmatpush1.bf16.msra.mxu0 %v934
    %952 = vmatprep.subr.bf16.mxu0 0
    %953 = vmatpush1.bf16.msra.mxu0 %v935
    %954 = vmatprep.subr.bf16.mxu0 0
    %955 = vmatpush1.bf16.msra.mxu0 %v936
    %956 = vmatprep.subr.bf16.mxu0 0
    %957 = vmatpush1.bf16.msra.mxu0 %v937
    %958 = vmatprep.subr.bf16.mxu0 0
    %959 = vmatpush1.bf16.msra.mxu0 %v938
    %960 = vmatprep.subr.bf16.mxu0 0
    %961 = vmatpush1.bf16.msra.mxu0 %v939
    %962 = vmatprep.subr.bf16.mxu0 0
    %963 = vmatpush1.bf16.msra.mxu0 %v940
    %964 = vmatprep.subr.bf16.mxu0 0
    %965 = vmatpush1.bf16.msra.mxu0 %v941
    %966 = vmatprep.subr.bf16.mxu0 0
    %967 = vmatpush1.bf16.msra.mxu0 0
    %968 = vmatprep.subr.bf16.mxu0 0
    %969 = vmatpush1.bf16.msra.mxu0 0
    %970 = vmatprep.subr.bf16.mxu0 0
    %971 = vmatpush1.bf16.msra.mxu0 0
    %972 = vmatprep.subr.bf16.mxu0 0
    %973 = vmatpush1.bf16.msra.mxu0 0
    %974 = vmatprep.subr.bf16.mxu0 0
    %975 = vmatpush1.bf16.msra.mxu0 0
    %976 = vmatprep.subr.bf16.mxu0 0
    %977 = vmatpush1.bf16.msra.mxu0 0
    %978 = vmatprep.subr.bf16.mxu0 0
    %979 = vmatpush1.bf16.msra.mxu0 0
    %980 = vmatprep.subr.bf16.mxu0 0
    %981 = vmatpush1.bf16.msra.mxu0 0
    %982 = vmatprep.mubr.bf16.mxu0 0
    %983 = vmatmul.mubr.bf16.gmra.mrb[0].mxu0 %v902
    %v984 = vpop.f32.mrb[0].mxu0
    %v985 = vadd.f32 0.0, %v984
    %v986 = vpop.f32.mrb[0].mxu0
    %v987 = vpop.f32.mrb[0].mxu0
    %v988 = vadd.f32 0.0, %v987
    %v989 = vpop.f32.mrb[0].mxu0
    %990 = vmatprep.mubr.bf16.mxu0 0
    %991 = vmatmul.mubr.bf16.gmra.mrb[0].mxu0 %v903
    %v992 = vpop.f32.mrb[0].mxu0
    %v993 = vadd.f32 0.0, %v992
    %v994 = vpop.f32.mrb[0].mxu0
    %v995 = vpop.f32.mrb[0].mxu0
    %v996 = vadd.f32 0.0, %v995
    %v997 = vpop.f32.mrb[0].mxu0
    %998 = vmatprep.mubr.bf16.mxu0 0
    %999 = vmatmul.mubr.bf16.gmra.mrb[0].mxu0 %v904
    %v1000 = vpop.f32.mrb[0].mxu0
    %v1001 = vadd.f32 0.0, %v1000
    %v1002 = vpop.f32.mrb[0].mxu0
    %v1003 = vpop.f32.mrb[0].mxu0
    %v1004 = vadd.f32 0.0, %v1003
    %v1005 = vpop.f32.mrb[0].mxu0
    %1006 = vmatprep.mubr.bf16.mxu0 0
    %1007 = vmatmul.mubr.bf16.gmra.mrb[0].mxu0 %v905
    %v1008 = vpop.f32.mrb[0].mxu0
    %v1009 = vadd.f32 0.0, %v1008
    %v1010 = vpop.f32.mrb[0].mxu0
    %v1011 = vpop.f32.mrb[0].mxu0
    %v1012 = vadd.f32 0.0, %v1011
    %v1013 = vpop.f32.mrb[0].mxu0
    %1014 = vmatprep.mubr.bf16.mxu0 0
    %1015 = vmatmul.mubr.bf16.gmra.mrb[0].mxu0 %v906
    %v1016 = vpop.f32.mrb[0].mxu0
    %v1017 = vadd.f32 0.0, %v1016
    %v1018 = vpop.f32.mrb[0].mxu0
    %v1019 = vpop.f32.mrb[0].mxu0
    %v1020 = vadd.f32 0.0, %v1019
    %v1021 = vpop.f32.mrb[0].mxu0
    %1022 = vmatprep.mubr.bf16.mxu0 0
    %1023 = vmatmul.mubr.bf16.gmra.mrb[0].mxu0 %v907
    %v1024 = vpop.f32.mrb[0].mxu0
    %v1025 = vadd.f32 0.0, %v1024
    %v1026 = vpop.f32.mrb[0].mxu0
    %v1027 = vpop.f32.mrb[0].mxu0
    %v1028 = vadd.f32 0.0, %v1027
    %v1029 = vpop.f32.mrb[0].mxu0
    %1030 = vmatprep.mubr.bf16.mxu0 0
    %1031 = vmatmul.mubr.bf16.gmra.mrb[0].mxu0 %v908
    %v1032 = vpop.f32.mrb[0].mxu0
    %v1033 = vadd.f32 0.0, %v1032
    %v1034 = vpop.f32.mrb[0].mxu0
    %v1035 = vpop.f32.mrb[0].mxu0
    %v1036 = vadd.f32 0.0, %v1035
    %v1037 = vpop.f32.mrb[0].mxu0
    %1038 = vmatprep.mubr.bf16.mxu0 0
    %1039 = vmatmul.mubr.bf16.gmra.mrb[0].mxu0 %v909
    %v1040 = vpop.f32.mrb[0].mxu0
    %v1041 = vadd.f32 0.0, %v1040
    %v1042 = vpop.f32.mrb[0].mxu0
    %v1043 = vpop.f32.mrb[0].mxu0
    %v1044 = vadd.f32 0.0, %v1043
    %v1045 = vpop.f32.mrb[0].mxu0
    %1046 = vmatprep.mubr.bf16.mxu0 0
    %1047 = vmatmul.mubr.bf16.gmra.mrb[0].mxu0 %v910
    %v1048 = vpop.f32.mrb[0].mxu0
    %v1049 = vadd.f32 0.0, %v1048
    %v1050 = vpop.f32.mrb[0].mxu0
    %v1051 = vpop.f32.mrb[0].mxu0
    %v1052 = vadd.f32 0.0, %v1051
    %v1053 = vpop.f32.mrb[0].mxu0
    %1054 = vmatprep.mubr.bf16.mxu0 0
    %1055 = vmatmul.mubr.bf16.gmra.mrb[0].mxu0 %v911
    %v1056 = vpop.f32.mrb[0].mxu0
    %v1057 = vadd.f32 0.0, %v1056
    %v1058 = vpop.f32.mrb[0].mxu0
    %v1059 = vpop.f32.mrb[0].mxu0
    %v1060 = vadd.f32 0.0, %v1059
    %v1061 = vpop.f32.mrb[0].mxu0
    %1062 = vmatprep.mubr.bf16.mxu0 0
    %1063 = vmatmul.mubr.bf16.gmra.mrb[0].mxu0 %v912
    %v1064 = vpop.f32.mrb[0].mxu0
    %v1065 = vadd.f32 0.0, %v1064
    %v1066 = vpop.f32.mrb[0].mxu0
    %v1067 = vpop.f32.mrb[0].mxu0
    %v1068 = vadd.f32 0.0, %v1067
    %v1069 = vpop.f32.mrb[0].mxu0
    %1070 = vmatprep.mubr.bf16.mxu0 0
    %1071 = vmatmul.mubr.bf16.gmra.mrb[0].mxu0 %v913
    %v1072 = vpop.f32.mrb[0].mxu0
    %v1073 = vadd.f32 0.0, %v1072
    %v1074 = vpop.f32.mrb[0].mxu0
    %v1075 = vpop.f32.mrb[0].mxu0
    %v1076 = vadd.f32 0.0, %v1075
    %v1077 = vpop.f32.mrb[0].mxu0
    %1078 = vmatprep.mubr.bf16.mxu0 0
    %1079 = vmatmul.mubr.bf16.gmra.mrb[0].mxu0 %v914
    %v1080 = vpop.f32.mrb[0].mxu0
    %v1081 = vadd.f32 0.0, %v1080
    %v1082 = vpop.f32.mrb[0].mxu0
    %v1083 = vpop.f32.mrb[0].mxu0
    %v1084 = vadd.f32 0.0, %v1083
    %v1085 = vpop.f32.mrb[0].mxu0
    %1086 = vmatprep.mubr.bf16.mxu0 0
    %1087 = vmatmul.mubr.bf16.gmra.mrb[0].mxu0 %v915
    %v1088 = vpop.f32.mrb[0].mxu0
    %v1089 = vadd.f32 0.0, %v1088
    %v1090 = vpop.f32.mrb[0].mxu0
    %v1091 = vpop.f32.mrb[0].mxu0
    %v1092 = vadd.f32 0.0, %v1091
    %v1093 = vpop.f32.mrb[0].mxu0
    %1094 = vmatprep.mubr.bf16.mxu0 0
    %1095 = vmatmul.mubr.bf16.gmra.mrb[0].mxu0 %v916
    %v1096 = vpop.f32.mrb[0].mxu0
    %v1097 = vadd.f32 0.0, %v1096
    %v1098 = vpop.f32.mrb[0].mxu0
    %v1099 = vpop.f32.mrb[0].mxu0
    %v1100 = vadd.f32 0.0, %v1099
    %v1101 = vpop.f32.mrb[0].mxu0
    %1102 = vmatprep.mubr.bf16.mxu0 0
    %1103 = vmatmul.mubr.bf16.gmra.mrb[0].mxu0 %v917
    %v1104 = vpop.f32.mrb[0].mxu0
    %v1105 = vadd.f32 0.0, %v1104
    %v1106 = vpop.f32.mrb[0].mxu0
    %v1107 = vpop.f32.mrb[0].mxu0
    %v1108 = vadd.f32 0.0, %v1107
    %v1109 = vpop.f32.mrb[0].mxu0
    %1110 = vdwg.mxu0
    %v1113 = vcombine.high %v900, %v900
    %v1115 = vunpack.c.l.s4 1966171168
    %v1116 = vunpack.c.0.s8 %v1115
    %v1117 = vlaneseq
    %v1118 = vshrl.u32 %v1117, 7
    %v1119 = vsub.s32 %v1116, %v1118
    %v1120 = vrot.slane %v900, %v1119
    %v1122 = vunpack.c.l.s4 1966171168
    %v1123 = vunpack.c.0.s8 %v1122
    %v1124 = vlaneseq
    %v1125 = vshrl.u32 %v1124, 7
    %v1126 = vsub.s32 %v1123, %v1125
    %v1127 = vrot.slane %v1113, %v1126
    %v1128 = vcombine.high %v1120, %v1120
    %v1129 = vcombine.high %v1127, %v1127
    %v1131 = vunpack.c.l.s4 1966171168
    %v1132 = vunpack.c.0.s8 %v1131
    %v1133 = vlaneseq
    %v1134 = vshrl.u32 %v1133, 7
    %v1135 = vsub.s32 %v1132, %v1134
    %v1136 = vrot.slane %v1120, %v1135
    %v1138 = vunpack.c.l.s4 1966171168
    %v1139 = vunpack.c.0.s8 %v1138
    %v1140 = vlaneseq
    %v1141 = vshrl.u32 %v1140, 7
    %v1142 = vsub.s32 %v1139, %v1141
    %v1143 = vrot.slane %v1127, %v1142
    %v1145 = vunpack.c.l.s4 1966171168
    %v1146 = vunpack.c.0.s8 %v1145
    %v1147 = vlaneseq
    %v1148 = vshrl.u32 %v1147, 7
    %v1149 = vsub.s32 %v1146, %v1148
    %v1150 = vrot.slane %v1128, %v1149
    %v1152 = vunpack.c.l.s4 1966171168
    %v1153 = vunpack.c.0.s8 %v1152
    %v1154 = vlaneseq
    %v1155 = vshrl.u32 %v1154, 7
    %v1156 = vsub.s32 %v1153, %v1155
    %v1157 = vrot.slane %v1129, %v1156
    %v1158 = vcombine.high %v1136, %v1136
    %v1159 = vcombine.high %v1143, %v1143
    %v1160 = vcombine.high %v1150, %v1150
    %v1161 = vcombine.high %v1157, %v1157
    %v1162 = vcombine.high %v901, %v901
    %v1164 = vunpack.c.l.s4 1966171168
    %v1165 = vunpack.c.0.s8 %v1164
    %v1166 = vlaneseq
    %v1167 = vshrl.u32 %v1166, 7
    %v1168 = vsub.s32 %v1165, %v1167
    %v1169 = vrot.slane %v901, %v1168
    %v1171 = vunpack.c.l.s4 1966171168
    %v1172 = vunpack.c.0.s8 %v1171
    %v1173 = vlaneseq
    %v1174 = vshrl.u32 %v1173, 7
    %v1175 = vsub.s32 %v1172, %v1174
    %v1176 = vrot.slane %v1162, %v1175
    %v1177 = vcombine.high %v1169, %v1169
    %v1178 = vcombine.high %v1176, %v1176
    %v1180 = vunpack.c.l.s4 1966171168
    %v1181 = vunpack.c.0.s8 %v1180
    %v1182 = vlaneseq
    %v1183 = vshrl.u32 %v1182, 7
    %v1184 = vsub.s32 %v1181, %v1183
    %v1185 = vrot.slane %v1169, %v1184
    %v1187 = vunpack.c.l.s4 1966171168
    %v1188 = vunpack.c.0.s8 %v1187
    %v1189 = vlaneseq
    %v1190 = vshrl.u32 %v1189, 7
    %v1191 = vsub.s32 %v1188, %v1190
    %v1192 = vrot.slane %v1176, %v1191
    %v1194 = vunpack.c.l.s4 1966171168
    %v1195 = vunpack.c.0.s8 %v1194
    %v1196 = vlaneseq
    %v1197 = vshrl.u32 %v1196, 7
    %v1198 = vsub.s32 %v1195, %v1197
    %v1199 = vrot.slane %v1177, %v1198
    %v1201 = vunpack.c.l.s4 1966171168
    %v1202 = vunpack.c.0.s8 %v1201
    %v1203 = vlaneseq
    %v1204 = vshrl.u32 %v1203, 7
    %v1205 = vsub.s32 %v1202, %v1204
    %v1206 = vrot.slane %v1178, %v1205
    %v1207 = vcombine.high %v1185, %v1185
    %v1208 = vcombine.high %v1192, %v1192
    %v1209 = vcombine.high %v1199, %v1199
    %v1210 = vcombine.high %v1206, %v1206
    %v1211 = vlaneseq
    %v1212 = vshrl.u32 %v1211, 7
    %v1213 = vsub.s32 0, %v1212
    %v1214 = vrot.slane %v1136, %v1213
    %v1215 = vlaneseq
    %v1216 = vshrl.u32 %v1215, 7
    %v1217 = vsub.s32 0, %v1216
    %v1218 = vrot.slane %v1150, %v1217
    %v1219 = vlaneseq
    %v1220 = vshrl.u32 %v1219, 7
    %v1221 = vsub.s32 0, %v1220
    %v1222 = vrot.slane %v1158, %v1221
    %v1223 = vlaneseq
    %v1224 = vshrl.u32 %v1223, 7
    %v1225 = vsub.s32 0, %v1224
    %v1226 = vrot.slane %v1160, %v1225
    %v1227 = vlaneseq
    %v1228 = vshrl.u32 %v1227, 7
    %v1229 = vsub.s32 0, %v1228
    %v1230 = vrot.slane %v1143, %v1229
    %v1231 = vlaneseq
    %v1232 = vshrl.u32 %v1231, 7
    %v1233 = vsub.s32 0, %v1232
    %v1234 = vrot.slane %v1157, %v1233
    %v1235 = vlaneseq
    %v1236 = vshrl.u32 %v1235, 7
    %v1237 = vsub.s32 0, %v1236
    %v1238 = vrot.slane %v1159, %v1237
    %v1239 = vlaneseq
    %v1240 = vshrl.u32 %v1239, 7
    %v1241 = vsub.s32 0, %v1240
    %v1242 = vrot.slane %v1161, %v1241
    %v1243 = vlaneseq
    %v1244 = vshrl.u32 %v1243, 7
    %v1245 = vsub.s32 0, %v1244
    %v1246 = vrot.slane %v1185, %v1245
    %v1247 = vlaneseq
    %v1248 = vshrl.u32 %v1247, 7
    %v1249 = vsub.s32 0, %v1248
    %v1250 = vrot.slane %v1199, %v1249
    %v1251 = vlaneseq
    %v1252 = vshrl.u32 %v1251, 7
    %v1253 = vsub.s32 0, %v1252
    %v1254 = vrot.slane %v1207, %v1253
    %v1255 = vlaneseq
    %v1256 = vshrl.u32 %v1255, 7
    %v1257 = vsub.s32 0, %v1256
    %v1258 = vrot.slane %v1209, %v1257
    %v1259 = vlaneseq
    %v1260 = vshrl.u32 %v1259, 7
    %v1261 = vsub.s32 0, %v1260
    %v1262 = vrot.slane %v1192, %v1261
    %v1263 = vlaneseq
    %v1264 = vshrl.u32 %v1263, 7
    %v1265 = vsub.s32 0, %v1264
    %v1266 = vrot.slane %v1206, %v1265
    %v1267 = vlaneseq
    %v1268 = vshrl.u32 %v1267, 7
    %v1269 = vsub.s32 0, %v1268
    %v1270 = vrot.slane %v1208, %v1269
    %v1271 = vlaneseq
    %v1272 = vshrl.u32 %v1271, 7
    %v1273 = vsub.s32 0, %v1272
    %v1274 = vrot.slane %v1210, %v1273
    %v1291 = vadd.f32 %v894, %v1214
    %v1292 = vadd.f32 %v895, %v1214
    %v1293 = vadd.f32 %v894, %v1218
    %v1294 = vadd.f32 %v895, %v1218
    %v1295 = vadd.f32 %v894, %v1222
    %v1296 = vadd.f32 %v895, %v1222
    %v1297 = vadd.f32 %v894, %v1226
    %v1298 = vadd.f32 %v895, %v1226
    %v1299 = vadd.f32 %v894, %v1230
    %v1300 = vadd.f32 %v895, %v1230
    %v1301 = vadd.f32 %v894, %v1234
    %v1302 = vadd.f32 %v895, %v1234
    %v1303 = vadd.f32 %v894, %v1238
    %v1304 = vadd.f32 %v895, %v1238
    %v1305 = vadd.f32 %v894, %v1242
    %v1306 = vadd.f32 %v895, %v1242
    %v1307 = vadd.f32 %v894, %v1246
    %v1308 = vadd.f32 %v895, %v1246
    %v1309 = vadd.f32 %v894, %v1250
    %v1310 = vadd.f32 %v895, %v1250
    %v1311 = vadd.f32 %v894, %v1254
    %v1312 = vadd.f32 %v895, %v1254
    %v1313 = vadd.f32 %v894, %v1258
    %v1314 = vadd.f32 %v895, %v1258
    %v1315 = vadd.f32 %v894, %v1262
    %v1316 = vadd.f32 %v895, %v1262
    %v1317 = vadd.f32 %v894, %v1266
    %v1318 = vadd.f32 %v895, %v1266
    %v1319 = vadd.f32 %v894, %v1270
    %v1320 = vadd.f32 %v895, %v1270
    %v1321 = vadd.f32 %v894, %v1274
    %v1322 = vadd.f32 %v895, %v1274
    %v1323 = vadd.f32 %v1291, %v985
    %v1324 = vadd.f32 %v1292, %v988
    %v1325 = vadd.f32 %v1293, %v993
    %v1326 = vadd.f32 %v1294, %v996
    %v1327 = vadd.f32 %v1295, %v1001
    %v1328 = vadd.f32 %v1296, %v1004
    %v1329 = vadd.f32 %v1297, %v1009
    %v1330 = vadd.f32 %v1298, %v1012
    %v1331 = vadd.f32 %v1299, %v1017
    %v1332 = vadd.f32 %v1300, %v1020
    %v1333 = vadd.f32 %v1301, %v1025
    %v1334 = vadd.f32 %v1302, %v1028
    %v1335 = vadd.f32 %v1303, %v1033
    %v1336 = vadd.f32 %v1304, %v1036
    %v1337 = vadd.f32 %v1305, %v1041
    %v1338 = vadd.f32 %v1306, %v1044
    %v1339 = vadd.f32 %v1307, %v1049
    %v1340 = vadd.f32 %v1308, %v1052
    %v1341 = vadd.f32 %v1309, %v1057
    %v1342 = vadd.f32 %v1310, %v1060
    %v1343 = vadd.f32 %v1311, %v1065
    %v1344 = vadd.f32 %v1312, %v1068
    %v1345 = vadd.f32 %v1313, %v1073
    %v1346 = vadd.f32 %v1314, %v1076
    %v1347 = vadd.f32 %v1315, %v1081
    %v1348 = vadd.f32 %v1316, %v1084
    %v1349 = vadd.f32 %v1317, %v1089
    %v1350 = vadd.f32 %v1318, %v1092
    %v1351 = vadd.f32 %v1319, %v1097
    %v1352 = vadd.f32 %v1320, %v1100
    %v1353 = vadd.f32 %v1321, %v1105
    %v1354 = vadd.f32 %v1322, %v1108
    %vm1355 = vcmp.gt.f32.partialorder %v1323, 0.0
    %vm1356 = vcmp.gt.f32.partialorder %v1324, 0.0
    %vm1357 = vcmp.gt.f32.partialorder %v1325, 0.0
    %vm1358 = vcmp.gt.f32.partialorder %v1326, 0.0
    %vm1359 = vcmp.gt.f32.partialorder %v1327, 0.0
    %vm1360 = vcmp.gt.f32.partialorder %v1328, 0.0
    %vm1361 = vcmp.gt.f32.partialorder %v1329, 0.0
    %vm1362 = vcmp.gt.f32.partialorder %v1330, 0.0
    %vm1363 = vcmp.gt.f32.partialorder %v1331, 0.0
    %vm1364 = vcmp.gt.f32.partialorder %v1332, 0.0
    %vm1365 = vcmp.gt.f32.partialorder %v1333, 0.0
    %vm1366 = vcmp.gt.f32.partialorder %v1334, 0.0
    %vm1367 = vcmp.gt.f32.partialorder %v1335, 0.0
    %vm1368 = vcmp.gt.f32.partialorder %v1336, 0.0
    %vm1369 = vcmp.gt.f32.partialorder %v1337, 0.0
    %vm1370 = vcmp.gt.f32.partialorder %v1338, 0.0
    %vm1371 = vcmp.gt.f32.partialorder %v1339, 0.0
    %vm1372 = vcmp.gt.f32.partialorder %v1340, 0.0
    %vm1373 = vcmp.gt.f32.partialorder %v1341, 0.0
    %vm1374 = vcmp.gt.f32.partialorder %v1342, 0.0
    %vm1375 = vcmp.gt.f32.partialorder %v1343, 0.0
    %vm1376 = vcmp.gt.f32.partialorder %v1344, 0.0
    %vm1377 = vcmp.gt.f32.partialorder %v1345, 0.0
    %vm1378 = vcmp.gt.f32.partialorder %v1346, 0.0
    %vm1379 = vcmp.gt.f32.partialorder %v1347, 0.0
    %vm1380 = vcmp.gt.f32.partialorder %v1348, 0.0
    %vm1381 = vcmp.gt.f32.partialorder %v1349, 0.0
    %vm1382 = vcmp.gt.f32.partialorder %v1350, 0.0
    %vm1383 = vcmp.gt.f32.partialorder %v1351, 0.0
    %vm1384 = vcmp.gt.f32.partialorder %v1352, 0.0
    %vm1385 = vcmp.gt.f32.partialorder %v1353, 0.0
    %vm1386 = vcmp.gt.f32.partialorder %v1354, 0.0
    %v1387 = vmul.f32 %v1323, 0.2
    %v1388 = vmul.f32 %v1324, 0.2
    %v1389 = vmul.f32 %v1325, 0.2
    %v1390 = vmul.f32 %v1326, 0.2
    %v1391 = vmul.f32 %v1327, 0.2
    %v1392 = vmul.f32 %v1328, 0.2
    %v1393 = vmul.f32 %v1329, 0.2
    %v1394 = vmul.f32 %v1330, 0.2
    %v1395 = vmul.f32 %v1331, 0.2
    %v1396 = vmul.f32 %v1332, 0.2
    %v1397 = vmul.f32 %v1333, 0.2
    %v1398 = vmul.f32 %v1334, 0.2
    %v1399 = vmul.f32 %v1335, 0.2
    %v1400 = vmul.f32 %v1336, 0.2
    %v1401 = vmul.f32 %v1337, 0.2
    %v1402 = vmul.f32 %v1338, 0.2
    %v1403 = vmul.f32 %v1339, 0.2
    %v1404 = vmul.f32 %v1340, 0.2
    %v1405 = vmul.f32 %v1341, 0.2
    %v1406 = vmul.f32 %v1342, 0.2
    %v1407 = vmul.f32 %v1343, 0.2
    %v1408 = vmul.f32 %v1344, 0.2
    %v1409 = vmul.f32 %v1345, 0.2
    %v1410 = vmul.f32 %v1346, 0.2
    %v1411 = vmul.f32 %v1347, 0.2
    %v1412 = vmul.f32 %v1348, 0.2
    %v1413 = vmul.f32 %v1349, 0.2
    %v1414 = vmul.f32 %v1350, 0.2
    %v1415 = vmul.f32 %v1351, 0.2
    %v1416 = vmul.f32 %v1352, 0.2
    %v1417 = vmul.f32 %v1353, 0.2
    %v1418 = vmul.f32 %v1354, 0.2
    %v1419 = vsel %vm1355, %v1323, %v1387
    %v1420 = vsel %vm1356, %v1324, %v1388
    %v1421 = vsel %vm1357, %v1325, %v1389
    %v1422 = vsel %vm1358, %v1326, %v1390
    %v1423 = vsel %vm1359, %v1327, %v1391
    %v1424 = vsel %vm1360, %v1328, %v1392
    %v1425 = vsel %vm1361, %v1329, %v1393
    %v1426 = vsel %vm1362, %v1330, %v1394
    %v1427 = vsel %vm1363, %v1331, %v1395
    %v1428 = vsel %vm1364, %v1332, %v1396
    %v1429 = vsel %vm1365, %v1333, %v1397
    %v1430 = vsel %vm1366, %v1334, %v1398
    %v1431 = vsel %vm1367, %v1335, %v1399
    %v1432 = vsel %vm1368, %v1336, %v1400
    %v1433 = vsel %vm1369, %v1337, %v1401
    %v1434 = vsel %vm1370, %v1338, %v1402
    %v1435 = vsel %vm1371, %v1339, %v1403
    %v1436 = vsel %vm1372, %v1340, %v1404
    %v1437 = vsel %vm1373, %v1341, %v1405
    %v1438 = vsel %vm1374, %v1342, %v1406
    %v1439 = vsel %vm1375, %v1343, %v1407
    %v1440 = vsel %vm1376, %v1344, %v1408
    %v1441 = vsel %vm1377, %v1345, %v1409
    %v1442 = vsel %vm1378, %v1346, %v1410
    %v1443 = vsel %vm1379, %v1347, %v1411
    %v1444 = vsel %vm1380, %v1348, %v1412
    %v1445 = vsel %vm1381, %v1349, %v1413
    %v1446 = vsel %vm1382, %v1350, %v1414
    %v1447 = vsel %vm1383, %v1351, %v1415
    %v1448 = vsel %vm1384, %v1352, %v1416
    %v1449 = vsel %vm1385, %v1353, %v1417
    %v1450 = vsel %vm1386, %v1354, %v1418
    %v1451 = vlaneseq
    %v1452 = vshrl.u32 %v1451, 7
    %v1453 = vsub.s32 6, %v1452
    %v1454 = vrot.slane %v82, %v1453
    %v1455 = vmul.f32 %v1419, %v1454
    %v1456 = vmul.f32 %v1420, %v1454
    %v1457 = vmul.f32 %v1421, %v1454
    %v1458 = vmul.f32 %v1422, %v1454
    %v1459 = vmul.f32 %v1423, %v1454
    %v1460 = vmul.f32 %v1424, %v1454
    %v1461 = vmul.f32 %v1425, %v1454
    %v1462 = vmul.f32 %v1426, %v1454
    %v1463 = vmul.f32 %v1427, %v1454
    %v1464 = vmul.f32 %v1428, %v1454
    %v1465 = vmul.f32 %v1429, %v1454
    %v1466 = vmul.f32 %v1430, %v1454
    %v1467 = vmul.f32 %v1431, %v1454
    %v1468 = vmul.f32 %v1432, %v1454
    %v1469 = vmul.f32 %v1433, %v1454
    %v1470 = vmul.f32 %v1434, %v1454
    %v1471 = vmul.f32 %v1435, %v1454
    %v1472 = vmul.f32 %v1436, %v1454
    %v1473 = vmul.f32 %v1437, %v1454
    %v1474 = vmul.f32 %v1438, %v1454
    %v1475 = vmul.f32 %v1439, %v1454
    %v1476 = vmul.f32 %v1440, %v1454
    %v1477 = vmul.f32 %v1441, %v1454
    %v1478 = vmul.f32 %v1442, %v1454
    %v1479 = vmul.f32 %v1443, %v1454
    %v1480 = vmul.f32 %v1444, %v1454
    %v1481 = vmul.f32 %v1445, %v1454
    %v1482 = vmul.f32 %v1446, %v1454
    %v1483 = vmul.f32 %v1447, %v1454
    %v1484 = vmul.f32 %v1448, %v1454
    %v1485 = vmul.f32 %v1449, %v1454
    %v1486 = vmul.f32 %v1450, %v1454
    %1487 = vadd.xlane.f32.xlu0 %v1455
    %v1488 = vpop.xlane.xlu0 %1487
    %1489 = vadd.xlane.f32.xlu0 %v1456
    %v1490 = vpop.xlane.xlu0 %1489
    %1491 = vadd.xlane.f32.xlu0 %v1457
    %v1492 = vpop.xlane.xlu0 %1491
    %1493 = vadd.xlane.f32.xlu0 %v1458
    %v1494 = vpop.xlane.xlu0 %1493
    %1495 = vadd.xlane.f32.xlu0 %v1459
    %v1496 = vpop.xlane.xlu0 %1495
    %1497 = vadd.xlane.f32.xlu0 %v1460
    %v1498 = vpop.xlane.xlu0 %1497
    %1499 = vadd.xlane.f32.xlu0 %v1461
    %v1500 = vpop.xlane.xlu0 %1499
    %1501 = vadd.xlane.f32.xlu0 %v1462
    %v1502 = vpop.xlane.xlu0 %1501
    %1503 = vadd.xlane.f32.xlu0 %v1463
    %v1504 = vpop.xlane.xlu0 %1503
    %1505 = vadd.xlane.f32.xlu0 %v1464
    %v1506 = vpop.xlane.xlu0 %1505
    %1507 = vadd.xlane.f32.xlu0 %v1465
    %v1508 = vpop.xlane.xlu0 %1507
    %1509 = vadd.xlane.f32.xlu0 %v1466
    %v1510 = vpop.xlane.xlu0 %1509
    %1511 = vadd.xlane.f32.xlu0 %v1467
    %v1512 = vpop.xlane.xlu0 %1511
    %1513 = vadd.xlane.f32.xlu0 %v1468
    %v1514 = vpop.xlane.xlu0 %1513
    %1515 = vadd.xlane.f32.xlu0 %v1469
    %v1516 = vpop.xlane.xlu0 %1515
    %1517 = vadd.xlane.f32.xlu0 %v1470
    %v1518 = vpop.xlane.xlu0 %1517
    %1519 = vadd.xlane.f32.xlu0 %v1471
    %v1520 = vpop.xlane.xlu0 %1519
    %1521 = vadd.xlane.f32.xlu0 %v1472
    %v1522 = vpop.xlane.xlu0 %1521
    %1523 = vadd.xlane.f32.xlu0 %v1473
    %v1524 = vpop.xlane.xlu0 %1523
    %1525 = vadd.xlane.f32.xlu0 %v1474
    %v1526 = vpop.xlane.xlu0 %1525
    %1527 = vadd.xlane.f32.xlu0 %v1475
    %v1528 = vpop.xlane.xlu0 %1527
    %1529 = vadd.xlane.f32.xlu0 %v1476
    %v1530 = vpop.xlane.xlu0 %1529
    %1531 = vadd.xlane.f32.xlu0 %v1477
    %v1532 = vpop.xlane.xlu0 %1531
    %1533 = vadd.xlane.f32.xlu0 %v1478
    %v1534 = vpop.xlane.xlu0 %1533
    %1535 = vadd.xlane.f32.xlu0 %v1479
    %v1536 = vpop.xlane.xlu0 %1535
    %1537 = vadd.xlane.f32.xlu0 %v1480
    %v1538 = vpop.xlane.xlu0 %1537
    %1539 = vadd.xlane.f32.xlu0 %v1481
    %v1540 = vpop.xlane.xlu0 %1539
    %1541 = vadd.xlane.f32.xlu0 %v1482
    %v1542 = vpop.xlane.xlu0 %1541
    %1543 = vadd.xlane.f32.xlu0 %v1483
    %v1544 = vpop.xlane.xlu0 %1543
    %1545 = vadd.xlane.f32.xlu0 %v1484
    %v1546 = vpop.xlane.xlu0 %1545
    %1547 = vadd.xlane.f32.xlu0 %v1485
    %v1548 = vpop.xlane.xlu0 %1547
    %1549 = vadd.xlane.f32.xlu0 %v1486
    %v1550 = vpop.xlane.xlu0 %1549
    %v1553 = vlaneseq
    %v1554 = vshrl.u32 %v1553, 7
    %v1555 = vsub.s32 0, %v1554
    %v1556 = vrot.slane %v643, %v1555
    %1558 = vbcast.lane.b32.xlu0 %v1556, 256
    %v1559 = vpop.permute.xlu0 %1558
    %s1561 = sor.u32 256, 8
    %1562 = vbcast.lane.b32.xlu0 %v1556, %s1561
    %v1563 = vpop.permute.xlu0 %1562
    %v1564 = vlaneseq
    %v1565 = vshrl.u32 %v1564, 7
    %v1566 = vsub.s32 1, %v1565
    %v1567 = vrot.slane %v643, %v1566
    %1569 = vbcast.lane.b32.xlu0 %v1567, 256
    %v1570 = vpop.permute.xlu0 %1569
    %s1572 = sor.u32 256, 8
    %1573 = vbcast.lane.b32.xlu0 %v1567, %s1572
    %v1574 = vpop.permute.xlu0 %1573
    %v1575 = vlaneseq
    %v1576 = vshrl.u32 %v1575, 7
    %v1577 = vsub.s32 2, %v1576
    %v1578 = vrot.slane %v643, %v1577
    %1580 = vbcast.lane.b32.xlu0 %v1578, 256
    %v1581 = vpop.permute.xlu0 %1580
    %s1583 = sor.u32 256, 8
    %1584 = vbcast.lane.b32.xlu0 %v1578, %s1583
    %v1585 = vpop.permute.xlu0 %1584
    %v1586 = vlaneseq
    %v1587 = vshrl.u32 %v1586, 7
    %v1588 = vsub.s32 3, %v1587
    %v1589 = vrot.slane %v643, %v1588
    %1591 = vbcast.lane.b32.xlu0 %v1589, 256
    %v1592 = vpop.permute.xlu0 %1591
    %s1594 = sor.u32 256, 8
    %1595 = vbcast.lane.b32.xlu0 %v1589, %s1594
    %v1596 = vpop.permute.xlu0 %1595
    %v1597 = vlaneseq
    %v1598 = vshrl.u32 %v1597, 7
    %v1599 = vsub.s32 4, %v1598
    %v1600 = vrot.slane %v643, %v1599
    %1602 = vbcast.lane.b32.xlu0 %v1600, 256
    %v1603 = vpop.permute.xlu0 %1602
    %s1605 = sor.u32 256, 8
    %1606 = vbcast.lane.b32.xlu0 %v1600, %s1605
    %v1607 = vpop.permute.xlu0 %1606
    %v1608 = vlaneseq
    %v1609 = vshrl.u32 %v1608, 7
    %v1610 = vsub.s32 5, %v1609
    %v1611 = vrot.slane %v643, %v1610
    %1613 = vbcast.lane.b32.xlu0 %v1611, 256
    %v1614 = vpop.permute.xlu0 %1613
    %s1616 = sor.u32 256, 8
    %1617 = vbcast.lane.b32.xlu0 %v1611, %s1616
    %v1618 = vpop.permute.xlu0 %1617
    %v1619 = vlaneseq
    %v1620 = vshrl.u32 %v1619, 7
    %v1621 = vsub.s32 6, %v1620
    %v1622 = vrot.slane %v643, %v1621
    %1624 = vbcast.lane.b32.xlu0 %v1622, 256
    %v1625 = vpop.permute.xlu0 %1624
    %s1627 = sor.u32 256, 8
    %1628 = vbcast.lane.b32.xlu0 %v1622, %s1627
    %v1629 = vpop.permute.xlu0 %1628
    %v1630 = vlaneseq
    %v1631 = vshrl.u32 %v1630, 7
    %v1632 = vsub.s32 7, %v1631
    %v1633 = vrot.slane %v643, %v1632
    %1635 = vbcast.lane.b32.xlu0 %v1633, 256
    %v1636 = vpop.permute.xlu0 %1635
    %s1638 = sor.u32 256, 8
    %1639 = vbcast.lane.b32.xlu0 %v1633, %s1638
    %v1640 = vpop.permute.xlu0 %1639
    %v1641 = vlaneseq
    %v1642 = vshrl.u32 %v1641, 7
    %v1643 = vsub.s32 0, %v1642
    %v1644 = vrot.slane %v644, %v1643
    %1646 = vbcast.lane.b32.xlu0 %v1644, 256
    %v1647 = vpop.permute.xlu0 %1646
    %s1649 = sor.u32 256, 8
    %1650 = vbcast.lane.b32.xlu0 %v1644, %s1649
    %v1651 = vpop.permute.xlu0 %1650
    %v1652 = vlaneseq
    %v1653 = vshrl.u32 %v1652, 7
    %v1654 = vsub.s32 1, %v1653
    %v1655 = vrot.slane %v644, %v1654
    %1657 = vbcast.lane.b32.xlu0 %v1655, 256
    %v1658 = vpop.permute.xlu0 %1657
    %s1660 = sor.u32 256, 8
    %1661 = vbcast.lane.b32.xlu0 %v1655, %s1660
    %v1662 = vpop.permute.xlu0 %1661
    %v1663 = vlaneseq
    %v1664 = vshrl.u32 %v1663, 7
    %v1665 = vsub.s32 2, %v1664
    %v1666 = vrot.slane %v644, %v1665
    %1668 = vbcast.lane.b32.xlu0 %v1666, 256
    %v1669 = vpop.permute.xlu0 %1668
    %s1671 = sor.u32 256, 8
    %1672 = vbcast.lane.b32.xlu0 %v1666, %s1671
    %v1673 = vpop.permute.xlu0 %1672
    %v1674 = vlaneseq
    %v1675 = vshrl.u32 %v1674, 7
    %v1676 = vsub.s32 3, %v1675
    %v1677 = vrot.slane %v644, %v1676
    %1679 = vbcast.lane.b32.xlu0 %v1677, 256
    %v1680 = vpop.permute.xlu0 %1679
    %s1682 = sor.u32 256, 8
    %1683 = vbcast.lane.b32.xlu0 %v1677, %s1682
    %v1684 = vpop.permute.xlu0 %1683
    %v1685 = vlaneseq
    %v1686 = vshrl.u32 %v1685, 7
    %v1687 = vsub.s32 4, %v1686
    %v1688 = vrot.slane %v644, %v1687
    %1690 = vbcast.lane.b32.xlu0 %v1688, 256
    %v1691 = vpop.permute.xlu0 %1690
    %s1693 = sor.u32 256, 8
    %1694 = vbcast.lane.b32.xlu0 %v1688, %s1693
    %v1695 = vpop.permute.xlu0 %1694
    %v1696 = vlaneseq
    %v1697 = vshrl.u32 %v1696, 7
    %v1698 = vsub.s32 5, %v1697
    %v1699 = vrot.slane %v644, %v1698
    %1701 = vbcast.lane.b32.xlu0 %v1699, 256
    %v1702 = vpop.permute.xlu0 %1701
    %s1704 = sor.u32 256, 8
    %1705 = vbcast.lane.b32.xlu0 %v1699, %s1704
    %v1706 = vpop.permute.xlu0 %1705
    %v1707 = vlaneseq
    %v1708 = vshrl.u32 %v1707, 7
    %v1709 = vsub.s32 6, %v1708
    %v1710 = vrot.slane %v644, %v1709
    %1712 = vbcast.lane.b32.xlu0 %v1710, 256
    %v1713 = vpop.permute.xlu0 %1712
    %s1715 = sor.u32 256, 8
    %1716 = vbcast.lane.b32.xlu0 %v1710, %s1715
    %v1717 = vpop.permute.xlu0 %1716
    %v1718 = vlaneseq
    %v1719 = vshrl.u32 %v1718, 7
    %v1720 = vsub.s32 7, %v1719
    %v1721 = vrot.slane %v644, %v1720
    %1723 = vbcast.lane.b32.xlu0 %v1721, 256
    %v1724 = vpop.permute.xlu0 %1723
    %s1726 = sor.u32 256, 8
    %1727 = vbcast.lane.b32.xlu0 %v1721, %s1726
    %v1728 = vpop.permute.xlu0 %1727
    %v1761 = vadd.f32 %v1488, %v1559
    %v1762 = vadd.f32 %v1490, %v1563
    %v1763 = vadd.f32 %v1492, %v1570
    %v1764 = vadd.f32 %v1494, %v1574
    %v1765 = vadd.f32 %v1496, %v1581
    %v1766 = vadd.f32 %v1498, %v1585
    %v1767 = vadd.f32 %v1500, %v1592
    %v1768 = vadd.f32 %v1502, %v1596
    %v1769 = vadd.f32 %v1504, %v1603
    %v1770 = vadd.f32 %v1506, %v1607
    %v1771 = vadd.f32 %v1508, %v1614
    %v1772 = vadd.f32 %v1510, %v1618
    %v1773 = vadd.f32 %v1512, %v1625
    %v1774 = vadd.f32 %v1514, %v1629
    %v1775 = vadd.f32 %v1516, %v1636
    %v1776 = vadd.f32 %v1518, %v1640
    %v1777 = vadd.f32 %v1520, %v1647
    %v1778 = vadd.f32 %v1522, %v1651
    %v1779 = vadd.f32 %v1524, %v1658
    %v1780 = vadd.f32 %v1526, %v1662
    %v1781 = vadd.f32 %v1528, %v1669
    %v1782 = vadd.f32 %v1530, %v1673
    %v1783 = vadd.f32 %v1532, %v1680
    %v1784 = vadd.f32 %v1534, %v1684
    %v1785 = vadd.f32 %v1536, %v1691
    %v1786 = vadd.f32 %v1538, %v1695
    %v1787 = vadd.f32 %v1540, %v1702
    %v1788 = vadd.f32 %v1542, %v1706
    %v1789 = vadd.f32 %v1544, %v1713
    %v1790 = vadd.f32 %v1546, %v1717
    %v1791 = vadd.f32 %v1548, %v1724
    %v1792 = vadd.f32 %v1550, %v1728
    %1825 = vset.pattern.permute.xlu0 0
    %1826 = vperm.xlu0 %1825, %v1761
    %v1827 = vpop.permute.xlu0 %1826
    %1828 = vset.pattern.permute.xlu0 0
    %1829 = vperm.xlu0 %1828, %v1762
    %v1830 = vpop.permute.xlu0 %1829
    %1831 = vset.pattern.permute.xlu0 0
    %1832 = vperm.xlu0 %1831, %v1763
    %v1833 = vpop.permute.xlu0 %1832
    %1834 = vset.pattern.permute.xlu0 0
    %1835 = vperm.xlu0 %1834, %v1764
    %v1836 = vpop.permute.xlu0 %1835
    %1837 = vset.pattern.permute.xlu0 0
    %1838 = vperm.xlu0 %1837, %v1765
    %v1839 = vpop.permute.xlu0 %1838
    %1840 = vset.pattern.permute.xlu0 0
    %1841 = vperm.xlu0 %1840, %v1766
    %v1842 = vpop.permute.xlu0 %1841
    %1843 = vset.pattern.permute.xlu0 0
    %1844 = vperm.xlu0 %1843, %v1767
    %v1845 = vpop.permute.xlu0 %1844
    %1846 = vset.pattern.permute.xlu0 0
    %1847 = vperm.xlu0 %1846, %v1768
    %v1848 = vpop.permute.xlu0 %1847
    %1849 = vset.pattern.permute.xlu0 0
    %1850 = vperm.xlu0 %1849, %v1769
    %v1851 = vpop.permute.xlu0 %1850
    %1852 = vset.pattern.permute.xlu0 0
    %1853 = vperm.xlu0 %1852, %v1770
    %v1854 = vpop.permute.xlu0 %1853
    %1855 = vset.pattern.permute.xlu0 0
    %1856 = vperm.xlu0 %1855, %v1771
    %v1857 = vpop.permute.xlu0 %1856
    %1858 = vset.pattern.permute.xlu0 0
    %1859 = vperm.xlu0 %1858, %v1772
    %v1860 = vpop.permute.xlu0 %1859
    %1861 = vset.pattern.permute.xlu0 0
    %1862 = vperm.xlu0 %1861, %v1773
    %v1863 = vpop.permute.xlu0 %1862
    %1864 = vset.pattern.permute.xlu0 0
    %1865 = vperm.xlu0 %1864, %v1774
    %v1866 = vpop.permute.xlu0 %1865
    %1867 = vset.pattern.permute.xlu0 0
    %1868 = vperm.xlu0 %1867, %v1775
    %v1869 = vpop.permute.xlu0 %1868
    %1870 = vset.pattern.permute.xlu0 0
    %1871 = vperm.xlu0 %1870, %v1776
    %v1872 = vpop.permute.xlu0 %1871
    %1873 = vset.pattern.permute.xlu0 0
    %1874 = vperm.xlu0 %1873, %v1777
    %v1875 = vpop.permute.xlu0 %1874
    %1876 = vset.pattern.permute.xlu0 0
    %1877 = vperm.xlu0 %1876, %v1778
    %v1878 = vpop.permute.xlu0 %1877
    %1879 = vset.pattern.permute.xlu0 0
    %1880 = vperm.xlu0 %1879, %v1779
    %v1881 = vpop.permute.xlu0 %1880
    %1882 = vset.pattern.permute.xlu0 0
    %1883 = vperm.xlu0 %1882, %v1780
    %v1884 = vpop.permute.xlu0 %1883
    %1885 = vset.pattern.permute.xlu0 0
    %1886 = vperm.xlu0 %1885, %v1781
    %v1887 = vpop.permute.xlu0 %1886
    %1888 = vset.pattern.permute.xlu0 0
    %1889 = vperm.xlu0 %1888, %v1782
    %v1890 = vpop.permute.xlu0 %1889
    %1891 = vset.pattern.permute.xlu0 0
    %1892 = vperm.xlu0 %1891, %v1783
    %v1893 = vpop.permute.xlu0 %1892
    %1894 = vset.pattern.permute.xlu0 0
    %1895 = vperm.xlu0 %1894, %v1784
    %v1896 = vpop.permute.xlu0 %1895
    %1897 = vset.pattern.permute.xlu0 0
    %1898 = vperm.xlu0 %1897, %v1785
    %v1899 = vpop.permute.xlu0 %1898
    %1900 = vset.pattern.permute.xlu0 0
    %1901 = vperm.xlu0 %1900, %v1786
    %v1902 = vpop.permute.xlu0 %1901
    %1903 = vset.pattern.permute.xlu0 0
    %1904 = vperm.xlu0 %1903, %v1787
    %v1905 = vpop.permute.xlu0 %1904
    %1906 = vset.pattern.permute.xlu0 0
    %1907 = vperm.xlu0 %1906, %v1788
    %v1908 = vpop.permute.xlu0 %1907
    %1909 = vset.pattern.permute.xlu0 0
    %1910 = vperm.xlu0 %1909, %v1789
    %v1911 = vpop.permute.xlu0 %1910
    %1912 = vset.pattern.permute.xlu0 0
    %1913 = vperm.xlu0 %1912, %v1790
    %v1914 = vpop.permute.xlu0 %1913
    %1915 = vset.pattern.permute.xlu0 0
    %1916 = vperm.xlu0 %1915, %v1791
    %v1917 = vpop.permute.xlu0 %1916
    %1918 = vset.pattern.permute.xlu0 0
    %1919 = vperm.xlu0 %1918, %v1792
    %v1920 = vpop.permute.xlu0 %1919
    %v1921 = vlaneseq
    %v1922 = vand.u32 %v1921, 127
    %v1923 = vlaneseq
    %v1924 = vshrl.u32 %v1923, 7
    %v1925 = vsub.s32 %v1922, %v1924
    %v1926 = vrot.slane %v1827, %v1925
    %v1927 = vadd.s32 %v1922, 4294967288
    %v1928 = vlaneseq
    %v1929 = vshrl.u32 %v1928, 7
    %v1930 = vsub.s32 %v1927, %v1929
    %v1931 = vrot.slane %v1830, %v1930
    %vm1932 = vcmask 130112
    %v1933 = vsel %vm1932, %v1931, %v1926
    %v1934 = vlaneseq
    %v1935 = vshrl.u32 %v1934, 7
    %v1936 = vsub.s32 %v1922, %v1935
    %v1937 = vrot.slane %v1833, %v1936
    %v1938 = vlaneseq
    %v1939 = vshrl.u32 %v1938, 7
    %v1940 = vsub.s32 %v1927, %v1939
    %v1941 = vrot.slane %v1836, %v1940
    %v1942 = vsel %vm1932, %v1941, %v1937
    %v1943 = vlaneseq
    %v1944 = vshrl.u32 %v1943, 7
    %v1945 = vsub.s32 %v1922, %v1944
    %v1946 = vrot.slane %v1839, %v1945
    %v1947 = vlaneseq
    %v1948 = vshrl.u32 %v1947, 7
    %v1949 = vsub.s32 %v1927, %v1948
    %v1950 = vrot.slane %v1842, %v1949
    %v1951 = vsel %vm1932, %v1950, %v1946
    %v1952 = vlaneseq
    %v1953 = vshrl.u32 %v1952, 7
    %v1954 = vsub.s32 %v1922, %v1953
    %v1955 = vrot.slane %v1845, %v1954
    %v1956 = vlaneseq
    %v1957 = vshrl.u32 %v1956, 7
    %v1958 = vsub.s32 %v1927, %v1957
    %v1959 = vrot.slane %v1848, %v1958
    %v1960 = vsel %vm1932, %v1959, %v1955
    %v1961 = vlaneseq
    %v1962 = vshrl.u32 %v1961, 7
    %v1963 = vsub.s32 %v1922, %v1962
    %v1964 = vrot.slane %v1851, %v1963
    %v1965 = vlaneseq
    %v1966 = vshrl.u32 %v1965, 7
    %v1967 = vsub.s32 %v1927, %v1966
    %v1968 = vrot.slane %v1854, %v1967
    %v1969 = vsel %vm1932, %v1968, %v1964
    %v1970 = vlaneseq
    %v1971 = vshrl.u32 %v1970, 7
    %v1972 = vsub.s32 %v1922, %v1971
    %v1973 = vrot.slane %v1857, %v1972
    %v1974 = vlaneseq
    %v1975 = vshrl.u32 %v1974, 7
    %v1976 = vsub.s32 %v1927, %v1975
    %v1977 = vrot.slane %v1860, %v1976
    %v1978 = vsel %vm1932, %v1977, %v1973
    %v1979 = vlaneseq
    %v1980 = vshrl.u32 %v1979, 7
    %v1981 = vsub.s32 %v1922, %v1980
    %v1982 = vrot.slane %v1863, %v1981
    %v1983 = vlaneseq
    %v1984 = vshrl.u32 %v1983, 7
    %v1985 = vsub.s32 %v1927, %v1984
    %v1986 = vrot.slane %v1866, %v1985
    %v1987 = vsel %vm1932, %v1986, %v1982
    %v1988 = vlaneseq
    %v1989 = vshrl.u32 %v1988, 7
    %v1990 = vsub.s32 %v1922, %v1989
    %v1991 = vrot.slane %v1869, %v1990
    %v1992 = vlaneseq
    %v1993 = vshrl.u32 %v1992, 7
    %v1994 = vsub.s32 %v1927, %v1993
    %v1995 = vrot.slane %v1872, %v1994
    %v1996 = vsel %vm1932, %v1995, %v1991
    %v1997 = vlaneseq
    %v1998 = vshrl.u32 %v1997, 7
    %v1999 = vsub.s32 %v1922, %v1998
    %v2000 = vrot.slane %v1875, %v1999
    %v2001 = vlaneseq
    %v2002 = vshrl.u32 %v2001, 7
    %v2003 = vsub.s32 %v1927, %v2002
    %v2004 = vrot.slane %v1878, %v2003
    %v2005 = vsel %vm1932, %v2004, %v2000
    %v2006 = vlaneseq
    %v2007 = vshrl.u32 %v2006, 7
    %v2008 = vsub.s32 %v1922, %v2007
    %v2009 = vrot.slane %v1881, %v2008
    %v2010 = vlaneseq
    %v2011 = vshrl.u32 %v2010, 7
    %v2012 = vsub.s32 %v1927, %v2011
    %v2013 = vrot.slane %v1884, %v2012
    %v2014 = vsel %vm1932, %v2013, %v2009
    %v2015 = vlaneseq
    %v2016 = vshrl.u32 %v2015, 7
    %v2017 = vsub.s32 %v1922, %v2016
    %v2018 = vrot.slane %v1887, %v2017
    %v2019 = vlaneseq
    %v2020 = vshrl.u32 %v2019, 7
    %v2021 = vsub.s32 %v1927, %v2020
    %v2022 = vrot.slane %v1890, %v2021
    %v2023 = vsel %vm1932, %v2022, %v2018
    %v2024 = vlaneseq
    %v2025 = vshrl.u32 %v2024, 7
    %v2026 = vsub.s32 %v1922, %v2025
    %v2027 = vrot.slane %v1893, %v2026
    %v2028 = vlaneseq
    %v2029 = vshrl.u32 %v2028, 7
    %v2030 = vsub.s32 %v1927, %v2029
    %v2031 = vrot.slane %v1896, %v2030
    %v2032 = vsel %vm1932, %v2031, %v2027
    %v2033 = vlaneseq
    %v2034 = vshrl.u32 %v2033, 7
    %v2035 = vsub.s32 %v1922, %v2034
    %v2036 = vrot.slane %v1899, %v2035
    %v2037 = vlaneseq
    %v2038 = vshrl.u32 %v2037, 7
    %v2039 = vsub.s32 %v1927, %v2038
    %v2040 = vrot.slane %v1902, %v2039
    %v2041 = vsel %vm1932, %v2040, %v2036
    %v2042 = vlaneseq
    %v2043 = vshrl.u32 %v2042, 7
    %v2044 = vsub.s32 %v1922, %v2043
    %v2045 = vrot.slane %v1905, %v2044
    %v2046 = vlaneseq
    %v2047 = vshrl.u32 %v2046, 7
    %v2048 = vsub.s32 %v1927, %v2047
    %v2049 = vrot.slane %v1908, %v2048
    %v2050 = vsel %vm1932, %v2049, %v2045
    %v2051 = vlaneseq
    %v2052 = vshrl.u32 %v2051, 7
    %v2053 = vsub.s32 %v1922, %v2052
    %v2054 = vrot.slane %v1911, %v2053
    %v2055 = vlaneseq
    %v2056 = vshrl.u32 %v2055, 7
    %v2057 = vsub.s32 %v1927, %v2056
    %v2058 = vrot.slane %v1914, %v2057
    %v2059 = vsel %vm1932, %v2058, %v2054
    %v2060 = vlaneseq
    %v2061 = vshrl.u32 %v2060, 7
    %v2062 = vsub.s32 %v1922, %v2061
    %v2063 = vrot.slane %v1917, %v2062
    %v2064 = vlaneseq
    %v2065 = vshrl.u32 %v2064, 7
    %v2066 = vsub.s32 %v1927, %v2065
    %v2067 = vrot.slane %v1920, %v2066
    %v2068 = vsel %vm1932, %v2067, %v2063
    %vm2069 = vcmask 1041409
    %v2070 = vsel %vm2069, %v1942, %v1933
    %vm2071 = vcmask 1042434
    %v2072 = vsel %vm2071, %v1951, %v2070
    %vm2073 = vcmask 1043459
    %v2074 = vsel %vm2073, %v1960, %v2072
    %vm2075 = vcmask 1044484
    %v2076 = vsel %vm2075, %v1969, %v2074
    %vm2077 = vcmask 1045509
    %v2078 = vsel %vm2077, %v1978, %v2076
    %vm2079 = vcmask 1046534
    %v2080 = vsel %vm2079, %v1987, %v2078
    %vm2081 = vcmask 1047559
    %v2082 = vsel %vm2081, %v1996, %v2080
    %v2083 = vsel %vm2069, %v2014, %v2005
    %v2084 = vsel %vm2071, %v2023, %v2083
    %v2085 = vsel %vm2073, %v2032, %v2084
    %v2086 = vsel %vm2075, %v2041, %v2085
    %v2087 = vsel %vm2077, %v2050, %v2086
    %v2088 = vsel %vm2079, %v2059, %v2087
    %v2089 = vsel %vm2081, %v2068, %v2088
    %vm2092 = vcmask 130048
    %v2093 = vsel %vm2092, %v2082, -inf
    %2094 = vmax.xlane.f32.xlu0 %v2093
    %v2095 = vpop.xlane.xlu0 %2094
    %v2096 = vsel %vm2092, %v2089, -inf
    %2097 = vmax.xlane.f32.xlu0 %v2096
    %v2098 = vpop.xlane.xlu0 %2097
    %v2101 = vlaneseq
    %v2102 = vshrl.u32 %v2101, 7
    %v2103 = vsub.s32 0, %v2102
    %v2104 = vrot.slane %v2095, %v2103
    %v2105 = vlaneseq
    %v2106 = vshrl.u32 %v2105, 7
    %v2107 = vsub.s32 1, %v2106
    %v2108 = vrot.slane %v2095, %v2107
    %v2109 = vlaneseq
    %v2110 = vshrl.u32 %v2109, 7
    %v2111 = vsub.s32 2, %v2110
    %v2112 = vrot.slane %v2095, %v2111
    %v2113 = vlaneseq
    %v2114 = vshrl.u32 %v2113, 7
    %v2115 = vsub.s32 3, %v2114
    %v2116 = vrot.slane %v2095, %v2115
    %v2117 = vlaneseq
    %v2118 = vshrl.u32 %v2117, 7
    %v2119 = vsub.s32 4, %v2118
    %v2120 = vrot.slane %v2095, %v2119
    %v2121 = vlaneseq
    %v2122 = vshrl.u32 %v2121, 7
    %v2123 = vsub.s32 5, %v2122
    %v2124 = vrot.slane %v2095, %v2123
    %v2125 = vlaneseq
    %v2126 = vshrl.u32 %v2125, 7
    %v2127 = vsub.s32 6, %v2126
    %v2128 = vrot.slane %v2095, %v2127
    %v2129 = vlaneseq
    %v2130 = vshrl.u32 %v2129, 7
    %v2131 = vsub.s32 7, %v2130
    %v2132 = vrot.slane %v2095, %v2131
    %v2133 = vlaneseq
    %v2134 = vshrl.u32 %v2133, 7
    %v2135 = vsub.s32 0, %v2134
    %v2136 = vrot.slane %v2098, %v2135
    %v2137 = vlaneseq
    %v2138 = vshrl.u32 %v2137, 7
    %v2139 = vsub.s32 1, %v2138
    %v2140 = vrot.slane %v2098, %v2139
    %v2141 = vlaneseq
    %v2142 = vshrl.u32 %v2141, 7
    %v2143 = vsub.s32 2, %v2142
    %v2144 = vrot.slane %v2098, %v2143
    %v2145 = vlaneseq
    %v2146 = vshrl.u32 %v2145, 7
    %v2147 = vsub.s32 3, %v2146
    %v2148 = vrot.slane %v2098, %v2147
    %v2149 = vlaneseq
    %v2150 = vshrl.u32 %v2149, 7
    %v2151 = vsub.s32 4, %v2150
    %v2152 = vrot.slane %v2098, %v2151
    %v2153 = vlaneseq
    %v2154 = vshrl.u32 %v2153, 7
    %v2155 = vsub.s32 5, %v2154
    %v2156 = vrot.slane %v2098, %v2155
    %v2157 = vlaneseq
    %v2158 = vshrl.u32 %v2157, 7
    %v2159 = vsub.s32 6, %v2158
    %v2160 = vrot.slane %v2098, %v2159
    %v2161 = vlaneseq
    %v2162 = vshrl.u32 %v2161, 7
    %v2163 = vsub.s32 7, %v2162
    %v2164 = vrot.slane %v2098, %v2163
    %v2181 = vsub.f32 %v1761, %v2104
    %v2182 = vsub.f32 %v1762, %v2104
    %v2183 = vsub.f32 %v1763, %v2108
    %v2184 = vsub.f32 %v1764, %v2108
    %v2185 = vsub.f32 %v1765, %v2112
    %v2186 = vsub.f32 %v1766, %v2112
    %v2187 = vsub.f32 %v1767, %v2116
    %v2188 = vsub.f32 %v1768, %v2116
    %v2189 = vsub.f32 %v1769, %v2120
    %v2190 = vsub.f32 %v1770, %v2120
    %v2191 = vsub.f32 %v1771, %v2124
    %v2192 = vsub.f32 %v1772, %v2124
    %v2193 = vsub.f32 %v1773, %v2128
    %v2194 = vsub.f32 %v1774, %v2128
    %v2195 = vsub.f32 %v1775, %v2132
    %v2196 = vsub.f32 %v1776, %v2132
    %v2197 = vsub.f32 %v1777, %v2136
    %v2198 = vsub.f32 %v1778, %v2136
    %v2199 = vsub.f32 %v1779, %v2140
    %v2200 = vsub.f32 %v1780, %v2140
    %v2201 = vsub.f32 %v1781, %v2144
    %v2202 = vsub.f32 %v1782, %v2144
    %v2203 = vsub.f32 %v1783, %v2148
    %v2204 = vsub.f32 %v1784, %v2148
    %v2205 = vsub.f32 %v1785, %v2152
    %v2206 = vsub.f32 %v1786, %v2152
    %v2207 = vsub.f32 %v1787, %v2156
    %v2208 = vsub.f32 %v1788, %v2156
    %v2209 = vsub.f32 %v1789, %v2160
    %v2210 = vsub.f32 %v1790, %v2160
    %v2211 = vsub.f32 %v1791, %v2164
    %v2212 = vsub.f32 %v1792, %v2164
    %v2213 = vmul.f32 %v2181, 1.442695
    %v2214 = vpow.pop %v2213
    %v2215 = vmul.f32 %v2182, 1.442695
    %v2216 = vpow.pop %v2215
    %v2217 = vmul.f32 %v2183, 1.442695
    %v2218 = vpow.pop %v2217
    %v2219 = vmul.f32 %v2184, 1.442695
    %v2220 = vpow.pop %v2219
    %v2221 = vmul.f32 %v2185, 1.442695
    %v2222 = vpow.pop %v2221
    %v2223 = vmul.f32 %v2186, 1.442695
    %v2224 = vpow.pop %v2223
    %v2225 = vmul.f32 %v2187, 1.442695
    %v2226 = vpow.pop %v2225
    %v2227 = vmul.f32 %v2188, 1.442695
    %v2228 = vpow.pop %v2227
    %v2229 = vmul.f32 %v2189, 1.442695
    %v2230 = vpow.pop %v2229
    %v2231 = vmul.f32 %v2190, 1.442695
    %v2232 = vpow.pop %v2231
    %v2233 = vmul.f32 %v2191, 1.442695
    %v2234 = vpow.pop %v2233
    %v2235 = vmul.f32 %v2192, 1.442695
    %v2236 = vpow.pop %v2235
    %v2237 = vmul.f32 %v2193, 1.442695
    %v2238 = vpow.pop %v2237
    %v2239 = vmul.f32 %v2194, 1.442695
    %v2240 = vpow.pop %v2239
    %v2241 = vmul.f32 %v2195, 1.442695
    %v2242 = vpow.pop %v2241
    %v2243 = vmul.f32 %v2196, 1.442695
    %v2244 = vpow.pop %v2243
    %v2245 = vmul.f32 %v2197, 1.442695
    %v2246 = vpow.pop %v2245
    %v2247 = vmul.f32 %v2198, 1.442695
    %v2248 = vpow.pop %v2247
    %v2249 = vmul.f32 %v2199, 1.442695
    %v2250 = vpow.pop %v2249
    %v2251 = vmul.f32 %v2200, 1.442695
    %v2252 = vpow.pop %v2251
    %v2253 = vmul.f32 %v2201, 1.442695
    %v2254 = vpow.pop %v2253
    %v2255 = vmul.f32 %v2202, 1.442695
    %v2256 = vpow.pop %v2255
    %v2257 = vmul.f32 %v2203, 1.442695
    %v2258 = vpow.pop %v2257
    %v2259 = vmul.f32 %v2204, 1.442695
    %v2260 = vpow.pop %v2259
    %v2261 = vmul.f32 %v2205, 1.442695
    %v2262 = vpow.pop %v2261
    %v2263 = vmul.f32 %v2206, 1.442695
    %v2264 = vpow.pop %v2263
    %v2265 = vmul.f32 %v2207, 1.442695
    %v2266 = vpow.pop %v2265
    %v2267 = vmul.f32 %v2208, 1.442695
    %v2268 = vpow.pop %v2267
    %v2269 = vmul.f32 %v2209, 1.442695
    %v2270 = vpow.pop %v2269
    %v2271 = vmul.f32 %v2210, 1.442695
    %v2272 = vpow.pop %v2271
    %v2273 = vmul.f32 %v2211, 1.442695
    %v2274 = vpow.pop %v2273
    %v2275 = vmul.f32 %v2212, 1.442695
    %v2276 = vpow.pop %v2275
    %2309 = vset.pattern.permute.xlu0 0
    %2310 = vperm.xlu0 %2309, %v2214
    %v2311 = vpop.permute.xlu0 %2310
    %2312 = vset.pattern.permute.xlu0 0
    %2313 = vperm.xlu0 %2312, %v2216
    %v2314 = vpop.permute.xlu0 %2313
    %2315 = vset.pattern.permute.xlu0 0
    %2316 = vperm.xlu0 %2315, %v2218
    %v2317 = vpop.permute.xlu0 %2316
    %2318 = vset.pattern.permute.xlu0 0
    %2319 = vperm.xlu0 %2318, %v2220
    %v2320 = vpop.permute.xlu0 %2319
    %2321 = vset.pattern.permute.xlu0 0
    %2322 = vperm.xlu0 %2321, %v2222
    %v2323 = vpop.permute.xlu0 %2322
    %2324 = vset.pattern.permute.xlu0 0
    %2325 = vperm.xlu0 %2324, %v2224
    %v2326 = vpop.permute.xlu0 %2325
    %2327 = vset.pattern.permute.xlu0 0
    %2328 = vperm.xlu0 %2327, %v2226
    %v2329 = vpop.permute.xlu0 %2328
    %2330 = vset.pattern.permute.xlu0 0
    %2331 = vperm.xlu0 %2330, %v2228
    %v2332 = vpop.permute.xlu0 %2331
    %2333 = vset.pattern.permute.xlu0 0
    %2334 = vperm.xlu0 %2333, %v2230
    %v2335 = vpop.permute.xlu0 %2334
    %2336 = vset.pattern.permute.xlu0 0
    %2337 = vperm.xlu0 %2336, %v2232
    %v2338 = vpop.permute.xlu0 %2337
    %2339 = vset.pattern.permute.xlu0 0
    %2340 = vperm.xlu0 %2339, %v2234
    %v2341 = vpop.permute.xlu0 %2340
    %2342 = vset.pattern.permute.xlu0 0
    %2343 = vperm.xlu0 %2342, %v2236
    %v2344 = vpop.permute.xlu0 %2343
    %2345 = vset.pattern.permute.xlu0 0
    %2346 = vperm.xlu0 %2345, %v2238
    %v2347 = vpop.permute.xlu0 %2346
    %2348 = vset.pattern.permute.xlu0 0
    %2349 = vperm.xlu0 %2348, %v2240
    %v2350 = vpop.permute.xlu0 %2349
    %2351 = vset.pattern.permute.xlu0 0
    %2352 = vperm.xlu0 %2351, %v2242
    %v2353 = vpop.permute.xlu0 %2352
    %2354 = vset.pattern.permute.xlu0 0
    %2355 = vperm.xlu0 %2354, %v2244
    %v2356 = vpop.permute.xlu0 %2355
    %2357 = vset.pattern.permute.xlu0 0
    %2358 = vperm.xlu0 %2357, %v2246
    %v2359 = vpop.permute.xlu0 %2358
    %2360 = vset.pattern.permute.xlu0 0
    %2361 = vperm.xlu0 %2360, %v2248
    %v2362 = vpop.permute.xlu0 %2361
    %2363 = vset.pattern.permute.xlu0 0
    %2364 = vperm.xlu0 %2363, %v2250
    %v2365 = vpop.permute.xlu0 %2364
    %2366 = vset.pattern.permute.xlu0 0
    %2367 = vperm.xlu0 %2366, %v2252
    %v2368 = vpop.permute.xlu0 %2367
    %2369 = vset.pattern.permute.xlu0 0
    %2370 = vperm.xlu0 %2369, %v2254
    %v2371 = vpop.permute.xlu0 %2370
    %2372 = vset.pattern.permute.xlu0 0
    %2373 = vperm.xlu0 %2372, %v2256
    %v2374 = vpop.permute.xlu0 %2373
    %2375 = vset.pattern.permute.xlu0 0
    %2376 = vperm.xlu0 %2375, %v2258
    %v2377 = vpop.permute.xlu0 %2376
    %2378 = vset.pattern.permute.xlu0 0
    %2379 = vperm.xlu0 %2378, %v2260
    %v2380 = vpop.permute.xlu0 %2379
    %2381 = vset.pattern.permute.xlu0 0
    %2382 = vperm.xlu0 %2381, %v2262
    %v2383 = vpop.permute.xlu0 %2382
    %2384 = vset.pattern.permute.xlu0 0
    %2385 = vperm.xlu0 %2384, %v2264
    %v2386 = vpop.permute.xlu0 %2385
    %2387 = vset.pattern.permute.xlu0 0
    %2388 = vperm.xlu0 %2387, %v2266
    %v2389 = vpop.permute.xlu0 %2388
    %2390 = vset.pattern.permute.xlu0 0
    %2391 = vperm.xlu0 %2390, %v2268
    %v2392 = vpop.permute.xlu0 %2391
    %2393 = vset.pattern.permute.xlu0 0
    %2394 = vperm.xlu0 %2393, %v2270
    %v2395 = vpop.permute.xlu0 %2394
    %2396 = vset.pattern.permute.xlu0 0
    %2397 = vperm.xlu0 %2396, %v2272
    %v2398 = vpop.permute.xlu0 %2397
    %2399 = vset.pattern.permute.xlu0 0
    %2400 = vperm.xlu0 %2399, %v2274
    %v2401 = vpop.permute.xlu0 %2400
    %2402 = vset.pattern.permute.xlu0 0
    %2403 = vperm.xlu0 %2402, %v2276
    %v2404 = vpop.permute.xlu0 %2403
    %v2405 = vlaneseq
    %v2406 = vshrl.u32 %v2405, 7
    %v2407 = vsub.s32 %v1922, %v2406
    %v2408 = vrot.slane %v2311, %v2407
    %v2409 = vlaneseq
    %v2410 = vshrl.u32 %v2409, 7
    %v2411 = vsub.s32 %v1927, %v2410
    %v2412 = vrot.slane %v2314, %v2411
    %v2413 = vsel %vm1932, %v2412, %v2408
    %v2414 = vlaneseq
    %v2415 = vshrl.u32 %v2414, 7
    %v2416 = vsub.s32 %v1922, %v2415
    %v2417 = vrot.slane %v2317, %v2416
    %v2418 = vlaneseq
    %v2419 = vshrl.u32 %v2418, 7
    %v2420 = vsub.s32 %v1927, %v2419
    %v2421 = vrot.slane %v2320, %v2420
    %v2422 = vsel %vm1932, %v2421, %v2417
    %v2423 = vlaneseq
    %v2424 = vshrl.u32 %v2423, 7
    %v2425 = vsub.s32 %v1922, %v2424
    %v2426 = vrot.slane %v2323, %v2425
    %v2427 = vlaneseq
    %v2428 = vshrl.u32 %v2427, 7
    %v2429 = vsub.s32 %v1927, %v2428
    %v2430 = vrot.slane %v2326, %v2429
    %v2431 = vsel %vm1932, %v2430, %v2426
    %v2432 = vlaneseq
    %v2433 = vshrl.u32 %v2432, 7
    %v2434 = vsub.s32 %v1922, %v2433
    %v2435 = vrot.slane %v2329, %v2434
    %v2436 = vlaneseq
    %v2437 = vshrl.u32 %v2436, 7
    %v2438 = vsub.s32 %v1927, %v2437
    %v2439 = vrot.slane %v2332, %v2438
    %v2440 = vsel %vm1932, %v2439, %v2435
    %v2441 = vlaneseq
    %v2442 = vshrl.u32 %v2441, 7
    %v2443 = vsub.s32 %v1922, %v2442
    %v2444 = vrot.slane %v2335, %v2443
    %v2445 = vlaneseq
    %v2446 = vshrl.u32 %v2445, 7
    %v2447 = vsub.s32 %v1927, %v2446
    %v2448 = vrot.slane %v2338, %v2447
    %v2449 = vsel %vm1932, %v2448, %v2444
    %v2450 = vlaneseq
    %v2451 = vshrl.u32 %v2450, 7
    %v2452 = vsub.s32 %v1922, %v2451
    %v2453 = vrot.slane %v2341, %v2452
    %v2454 = vlaneseq
    %v2455 = vshrl.u32 %v2454, 7
    %v2456 = vsub.s32 %v1927, %v2455
    %v2457 = vrot.slane %v2344, %v2456
    %v2458 = vsel %vm1932, %v2457, %v2453
    %v2459 = vlaneseq
    %v2460 = vshrl.u32 %v2459, 7
    %v2461 = vsub.s32 %v1922, %v2460
    %v2462 = vrot.slane %v2347, %v2461
    %v2463 = vlaneseq
    %v2464 = vshrl.u32 %v2463, 7
    %v2465 = vsub.s32 %v1927, %v2464
    %v2466 = vrot.slane %v2350, %v2465
    %v2467 = vsel %vm1932, %v2466, %v2462
    %v2468 = vlaneseq
    %v2469 = vshrl.u32 %v2468, 7
    %v2470 = vsub.s32 %v1922, %v2469
    %v2471 = vrot.slane %v2353, %v2470
    %v2472 = vlaneseq
    %v2473 = vshrl.u32 %v2472, 7
    %v2474 = vsub.s32 %v1927, %v2473
    %v2475 = vrot.slane %v2356, %v2474
    %v2476 = vsel %vm1932, %v2475, %v2471
    %v2477 = vlaneseq
    %v2478 = vshrl.u32 %v2477, 7
    %v2479 = vsub.s32 %v1922, %v2478
    %v2480 = vrot.slane %v2359, %v2479
    %v2481 = vlaneseq
    %v2482 = vshrl.u32 %v2481, 7
    %v2483 = vsub.s32 %v1927, %v2482
    %v2484 = vrot.slane %v2362, %v2483
    %v2485 = vsel %vm1932, %v2484, %v2480
    %v2486 = vlaneseq
    %v2487 = vshrl.u32 %v2486, 7
    %v2488 = vsub.s32 %v1922, %v2487
    %v2489 = vrot.slane %v2365, %v2488
    %v2490 = vlaneseq
    %v2491 = vshrl.u32 %v2490, 7
    %v2492 = vsub.s32 %v1927, %v2491
    %v2493 = vrot.slane %v2368, %v2492
    %v2494 = vsel %vm1932, %v2493, %v2489
    %v2495 = vlaneseq
    %v2496 = vshrl.u32 %v2495, 7
    %v2497 = vsub.s32 %v1922, %v2496
    %v2498 = vrot.slane %v2371, %v2497
    %v2499 = vlaneseq
    %v2500 = vshrl.u32 %v2499, 7
    %v2501 = vsub.s32 %v1927, %v2500
    %v2502 = vrot.slane %v2374, %v2501
    %v2503 = vsel %vm1932, %v2502, %v2498
    %v2504 = vlaneseq
    %v2505 = vshrl.u32 %v2504, 7
    %v2506 = vsub.s32 %v1922, %v2505
    %v2507 = vrot.slane %v2377, %v2506
    %v2508 = vlaneseq
    %v2509 = vshrl.u32 %v2508, 7
    %v2510 = vsub.s32 %v1927, %v2509
    %v2511 = vrot.slane %v2380, %v2510
    %v2512 = vsel %vm1932, %v2511, %v2507
    %v2513 = vlaneseq
    %v2514 = vshrl.u32 %v2513, 7
    %v2515 = vsub.s32 %v1922, %v2514
    %v2516 = vrot.slane %v2383, %v2515
    %v2517 = vlaneseq
    %v2518 = vshrl.u32 %v2517, 7
    %v2519 = vsub.s32 %v1927, %v2518
    %v2520 = vrot.slane %v2386, %v2519
    %v2521 = vsel %vm1932, %v2520, %v2516
    %v2522 = vlaneseq
    %v2523 = vshrl.u32 %v2522, 7
    %v2524 = vsub.s32 %v1922, %v2523
    %v2525 = vrot.slane %v2389, %v2524
    %v2526 = vlaneseq
    %v2527 = vshrl.u32 %v2526, 7
    %v2528 = vsub.s32 %v1927, %v2527
    %v2529 = vrot.slane %v2392, %v2528
    %v2530 = vsel %vm1932, %v2529, %v2525
    %v2531 = vlaneseq
    %v2532 = vshrl.u32 %v2531, 7
    %v2533 = vsub.s32 %v1922, %v2532
    %v2534 = vrot.slane %v2395, %v2533
    %v2535 = vlaneseq
    %v2536 = vshrl.u32 %v2535, 7
    %v2537 = vsub.s32 %v1927, %v2536
    %v2538 = vrot.slane %v2398, %v2537
    %v2539 = vsel %vm1932, %v2538, %v2534
    %v2540 = vlaneseq
    %v2541 = vshrl.u32 %v2540, 7
    %v2542 = vsub.s32 %v1922, %v2541
    %v2543 = vrot.slane %v2401, %v2542
    %v2544 = vlaneseq
    %v2545 = vshrl.u32 %v2544, 7
    %v2546 = vsub.s32 %v1927, %v2545
    %v2547 = vrot.slane %v2404, %v2546
    %v2548 = vsel %vm1932, %v2547, %v2543
    %v2549 = vsel %vm2069, %v2422, %v2413
    %v2550 = vsel %vm2071, %v2431, %v2549
    %v2551 = vsel %vm2073, %v2440, %v2550
    %v2552 = vsel %vm2075, %v2449, %v2551
    %v2553 = vsel %vm2077, %v2458, %v2552
    %v2554 = vsel %vm2079, %v2467, %v2553
    %v2555 = vsel %vm2081, %v2476, %v2554
    %v2556 = vsel %vm2069, %v2494, %v2485
    %v2557 = vsel %vm2071, %v2503, %v2556
    %v2558 = vsel %vm2073, %v2512, %v2557
    %v2559 = vsel %vm2075, %v2521, %v2558
    %v2560 = vsel %vm2077, %v2530, %v2559
    %v2561 = vsel %vm2079, %v2539, %v2560
    %v2562 = vsel %vm2081, %v2548, %v2561
    %v2565 = vsel %vm2092, %v2555, 0.0
    %2566 = vadd.xlane.f32.xlu0 %v2565
    %v2567 = vpop.xlane.xlu0 %2566
    %v2568 = vsel %vm2092, %v2562, 0.0
    %2569 = vadd.xlane.f32.xlu0 %v2568
    %v2570 = vpop.xlane.xlu0 %2569
    %v2571 = vrcp.pop %v2567
    %v2572 = vrcp.pop %v2570
    %v2575 = vlaneseq
    %v2576 = vshrl.u32 %v2575, 7
    %v2577 = vsub.s32 0, %v2576
    %v2578 = vrot.slane %v2571, %v2577
    %v2579 = vlaneseq
    %v2580 = vshrl.u32 %v2579, 7
    %v2581 = vsub.s32 1, %v2580
    %v2582 = vrot.slane %v2571, %v2581
    %v2583 = vlaneseq
    %v2584 = vshrl.u32 %v2583, 7
    %v2585 = vsub.s32 2, %v2584
    %v2586 = vrot.slane %v2571, %v2585
    %v2587 = vlaneseq
    %v2588 = vshrl.u32 %v2587, 7
    %v2589 = vsub.s32 3, %v2588
    %v2590 = vrot.slane %v2571, %v2589
    %v2591 = vlaneseq
    %v2592 = vshrl.u32 %v2591, 7
    %v2593 = vsub.s32 4, %v2592
    %v2594 = vrot.slane %v2571, %v2593
    %v2595 = vlaneseq
    %v2596 = vshrl.u32 %v2595, 7
    %v2597 = vsub.s32 5, %v2596
    %v2598 = vrot.slane %v2571, %v2597
    %v2599 = vlaneseq
    %v2600 = vshrl.u32 %v2599, 7
    %v2601 = vsub.s32 6, %v2600
    %v2602 = vrot.slane %v2571, %v2601
    %v2603 = vlaneseq
    %v2604 = vshrl.u32 %v2603, 7
    %v2605 = vsub.s32 7, %v2604
    %v2606 = vrot.slane %v2571, %v2605
    %v2607 = vlaneseq
    %v2608 = vshrl.u32 %v2607, 7
    %v2609 = vsub.s32 0, %v2608
    %v2610 = vrot.slane %v2572, %v2609
    %v2611 = vlaneseq
    %v2612 = vshrl.u32 %v2611, 7
    %v2613 = vsub.s32 1, %v2612
    %v2614 = vrot.slane %v2572, %v2613
    %v2615 = vlaneseq
    %v2616 = vshrl.u32 %v2615, 7
    %v2617 = vsub.s32 2, %v2616
    %v2618 = vrot.slane %v2572, %v2617
    %v2619 = vlaneseq
    %v2620 = vshrl.u32 %v2619, 7
    %v2621 = vsub.s32 3, %v2620
    %v2622 = vrot.slane %v2572, %v2621
    %v2623 = vlaneseq
    %v2624 = vshrl.u32 %v2623, 7
    %v2625 = vsub.s32 4, %v2624
    %v2626 = vrot.slane %v2572, %v2625
    %v2627 = vlaneseq
    %v2628 = vshrl.u32 %v2627, 7
    %v2629 = vsub.s32 5, %v2628
    %v2630 = vrot.slane %v2572, %v2629
    %v2631 = vlaneseq
    %v2632 = vshrl.u32 %v2631, 7
    %v2633 = vsub.s32 6, %v2632
    %v2634 = vrot.slane %v2572, %v2633
    %v2635 = vlaneseq
    %v2636 = vshrl.u32 %v2635, 7
    %v2637 = vsub.s32 7, %v2636
    %v2638 = vrot.slane %v2572, %v2637
    %v2655 = vmul.f32 %v2214, %v2578
    %v2656 = vmul.f32 %v2216, %v2578
    %v2657 = vmul.f32 %v2218, %v2582
    %v2658 = vmul.f32 %v2220, %v2582
    %v2659 = vmul.f32 %v2222, %v2586
    %v2660 = vmul.f32 %v2224, %v2586
    %v2661 = vmul.f32 %v2226, %v2590
    %v2662 = vmul.f32 %v2228, %v2590
    %v2663 = vmul.f32 %v2230, %v2594
    %v2664 = vmul.f32 %v2232, %v2594
    %v2665 = vmul.f32 %v2234, %v2598
    %v2666 = vmul.f32 %v2236, %v2598
    %v2667 = vmul.f32 %v2238, %v2602
    %v2668 = vmul.f32 %v2240, %v2602
    %v2669 = vmul.f32 %v2242, %v2606
    %v2670 = vmul.f32 %v2244, %v2606
    %v2671 = vmul.f32 %v2246, %v2610
    %v2672 = vmul.f32 %v2248, %v2610
    %v2673 = vmul.f32 %v2250, %v2614
    %v2674 = vmul.f32 %v2252, %v2614
    %v2675 = vmul.f32 %v2254, %v2618
    %v2676 = vmul.f32 %v2256, %v2618
    %v2677 = vmul.f32 %v2258, %v2622
    %v2678 = vmul.f32 %v2260, %v2622
    %v2679 = vmul.f32 %v2262, %v2626
    %v2680 = vmul.f32 %v2264, %v2626
    %v2681 = vmul.f32 %v2266, %v2630
    %v2682 = vmul.f32 %v2268, %v2630
    %v2683 = vmul.f32 %v2270, %v2634
    %v2684 = vmul.f32 %v2272, %v2634
    %v2685 = vmul.f32 %v2274, %v2638
    %v2686 = vmul.f32 %v2276, %v2638
    %2719 = vset.pattern.permute.xlu0 0
    %2720 = vperm.xlu0 %2719, %v2655
    %v2721 = vpop.permute.xlu0 %2720
    %2722 = vset.pattern.permute.xlu0 0
    %2723 = vperm.xlu0 %2722, %v2656
    %v2724 = vpop.permute.xlu0 %2723
    %2725 = vset.pattern.permute.xlu0 0
    %2726 = vperm.xlu0 %2725, %v2657
    %v2727 = vpop.permute.xlu0 %2726
    %2728 = vset.pattern.permute.xlu0 0
    %2729 = vperm.xlu0 %2728, %v2658
    %v2730 = vpop.permute.xlu0 %2729
    %2731 = vset.pattern.permute.xlu0 0
    %2732 = vperm.xlu0 %2731, %v2659
    %v2733 = vpop.permute.xlu0 %2732
    %2734 = vset.pattern.permute.xlu0 0
    %2735 = vperm.xlu0 %2734, %v2660
    %v2736 = vpop.permute.xlu0 %2735
    %2737 = vset.pattern.permute.xlu0 0
    %2738 = vperm.xlu0 %2737, %v2661
    %v2739 = vpop.permute.xlu0 %2738
    %2740 = vset.pattern.permute.xlu0 0
    %2741 = vperm.xlu0 %2740, %v2662
    %v2742 = vpop.permute.xlu0 %2741
    %2743 = vset.pattern.permute.xlu0 0
    %2744 = vperm.xlu0 %2743, %v2663
    %v2745 = vpop.permute.xlu0 %2744
    %2746 = vset.pattern.permute.xlu0 0
    %2747 = vperm.xlu0 %2746, %v2664
    %v2748 = vpop.permute.xlu0 %2747
    %2749 = vset.pattern.permute.xlu0 0
    %2750 = vperm.xlu0 %2749, %v2665
    %v2751 = vpop.permute.xlu0 %2750
    %2752 = vset.pattern.permute.xlu0 0
    %2753 = vperm.xlu0 %2752, %v2666
    %v2754 = vpop.permute.xlu0 %2753
    %2755 = vset.pattern.permute.xlu0 0
    %2756 = vperm.xlu0 %2755, %v2667
    %v2757 = vpop.permute.xlu0 %2756
    %2758 = vset.pattern.permute.xlu0 0
    %2759 = vperm.xlu0 %2758, %v2668
    %v2760 = vpop.permute.xlu0 %2759
    %2761 = vset.pattern.permute.xlu0 0
    %2762 = vperm.xlu0 %2761, %v2669
    %v2763 = vpop.permute.xlu0 %2762
    %2764 = vset.pattern.permute.xlu0 0
    %2765 = vperm.xlu0 %2764, %v2670
    %v2766 = vpop.permute.xlu0 %2765
    %2767 = vset.pattern.permute.xlu0 0
    %2768 = vperm.xlu0 %2767, %v2671
    %v2769 = vpop.permute.xlu0 %2768
    %2770 = vset.pattern.permute.xlu0 0
    %2771 = vperm.xlu0 %2770, %v2672
    %v2772 = vpop.permute.xlu0 %2771
    %2773 = vset.pattern.permute.xlu0 0
    %2774 = vperm.xlu0 %2773, %v2673
    %v2775 = vpop.permute.xlu0 %2774
    %2776 = vset.pattern.permute.xlu0 0
    %2777 = vperm.xlu0 %2776, %v2674
    %v2778 = vpop.permute.xlu0 %2777
    %2779 = vset.pattern.permute.xlu0 0
    %2780 = vperm.xlu0 %2779, %v2675
    %v2781 = vpop.permute.xlu0 %2780
    %2782 = vset.pattern.permute.xlu0 0
    %2783 = vperm.xlu0 %2782, %v2676
    %v2784 = vpop.permute.xlu0 %2783
    %2785 = vset.pattern.permute.xlu0 0
    %2786 = vperm.xlu0 %2785, %v2677
    %v2787 = vpop.permute.xlu0 %2786
    %2788 = vset.pattern.permute.xlu0 0
    %2789 = vperm.xlu0 %2788, %v2678
    %v2790 = vpop.permute.xlu0 %2789
    %2791 = vset.pattern.permute.xlu0 0
    %2792 = vperm.xlu0 %2791, %v2679
    %v2793 = vpop.permute.xlu0 %2792
    %2794 = vset.pattern.permute.xlu0 0
    %2795 = vperm.xlu0 %2794, %v2680
    %v2796 = vpop.permute.xlu0 %2795
    %2797 = vset.pattern.permute.xlu0 0
    %2798 = vperm.xlu0 %2797, %v2681
    %v2799 = vpop.permute.xlu0 %2798
    %2800 = vset.pattern.permute.xlu0 0
    %2801 = vperm.xlu0 %2800, %v2682
    %v2802 = vpop.permute.xlu0 %2801
    %2803 = vset.pattern.permute.xlu0 0
    %2804 = vperm.xlu0 %2803, %v2683
    %v2805 = vpop.permute.xlu0 %2804
    %2806 = vset.pattern.permute.xlu0 0
    %2807 = vperm.xlu0 %2806, %v2684
    %v2808 = vpop.permute.xlu0 %2807
    %2809 = vset.pattern.permute.xlu0 0
    %2810 = vperm.xlu0 %2809, %v2685
    %v2811 = vpop.permute.xlu0 %2810
    %2812 = vset.pattern.permute.xlu0 0
    %2813 = vperm.xlu0 %2812, %v2686
    %v2814 = vpop.permute.xlu0 %2813
    %v2815 = vlaneseq
    %v2816 = vshrl.u32 %v2815, 7
    %v2817 = vsub.s32 %v1922, %v2816
    %v2818 = vrot.slane %v2721, %v2817
    %v2819 = vlaneseq
    %v2820 = vshrl.u32 %v2819, 7
    %v2821 = vsub.s32 %v1927, %v2820
    %v2822 = vrot.slane %v2724, %v2821
    %v2823 = vsel %vm1932, %v2822, %v2818
    %v2824 = vlaneseq
    %v2825 = vshrl.u32 %v2824, 7
    %v2826 = vsub.s32 %v1922, %v2825
    %v2827 = vrot.slane %v2727, %v2826
    %v2828 = vlaneseq
    %v2829 = vshrl.u32 %v2828, 7
    %v2830 = vsub.s32 %v1927, %v2829
    %v2831 = vrot.slane %v2730, %v2830
    %v2832 = vsel %vm1932, %v2831, %v2827
    %v2833 = vlaneseq
    %v2834 = vshrl.u32 %v2833, 7
    %v2835 = vsub.s32 %v1922, %v2834
    %v2836 = vrot.slane %v2733, %v2835
    %v2837 = vlaneseq
    %v2838 = vshrl.u32 %v2837, 7
    %v2839 = vsub.s32 %v1927, %v2838
    %v2840 = vrot.slane %v2736, %v2839
    %v2841 = vsel %vm1932, %v2840, %v2836
    %v2842 = vlaneseq
    %v2843 = vshrl.u32 %v2842, 7
    %v2844 = vsub.s32 %v1922, %v2843
    %v2845 = vrot.slane %v2739, %v2844
    %v2846 = vlaneseq
    %v2847 = vshrl.u32 %v2846, 7
    %v2848 = vsub.s32 %v1927, %v2847
    %v2849 = vrot.slane %v2742, %v2848
    %v2850 = vsel %vm1932, %v2849, %v2845
    %v2851 = vlaneseq
    %v2852 = vshrl.u32 %v2851, 7
    %v2853 = vsub.s32 %v1922, %v2852
    %v2854 = vrot.slane %v2745, %v2853
    %v2855 = vlaneseq
    %v2856 = vshrl.u32 %v2855, 7
    %v2857 = vsub.s32 %v1927, %v2856
    %v2858 = vrot.slane %v2748, %v2857
    %v2859 = vsel %vm1932, %v2858, %v2854
    %v2860 = vlaneseq
    %v2861 = vshrl.u32 %v2860, 7
    %v2862 = vsub.s32 %v1922, %v2861
    %v2863 = vrot.slane %v2751, %v2862
    %v2864 = vlaneseq
    %v2865 = vshrl.u32 %v2864, 7
    %v2866 = vsub.s32 %v1927, %v2865
    %v2867 = vrot.slane %v2754, %v2866
    %v2868 = vsel %vm1932, %v2867, %v2863
    %v2869 = vlaneseq
    %v2870 = vshrl.u32 %v2869, 7
    %v2871 = vsub.s32 %v1922, %v2870
    %v2872 = vrot.slane %v2757, %v2871
    %v2873 = vlaneseq
    %v2874 = vshrl.u32 %v2873, 7
    %v2875 = vsub.s32 %v1927, %v2874
    %v2876 = vrot.slane %v2760, %v2875
    %v2877 = vsel %vm1932, %v2876, %v2872
    %v2878 = vlaneseq
    %v2879 = vshrl.u32 %v2878, 7
    %v2880 = vsub.s32 %v1922, %v2879
    %v2881 = vrot.slane %v2763, %v2880
    %v2882 = vlaneseq
    %v2883 = vshrl.u32 %v2882, 7
    %v2884 = vsub.s32 %v1927, %v2883
    %v2885 = vrot.slane %v2766, %v2884
    %v2886 = vsel %vm1932, %v2885, %v2881
    %v2887 = vlaneseq
    %v2888 = vshrl.u32 %v2887, 7
    %v2889 = vsub.s32 %v1922, %v2888
    %v2890 = vrot.slane %v2769, %v2889
    %v2891 = vlaneseq
    %v2892 = vshrl.u32 %v2891, 7
    %v2893 = vsub.s32 %v1927, %v2892
    %v2894 = vrot.slane %v2772, %v2893
    %v2895 = vsel %vm1932, %v2894, %v2890
    %v2896 = vlaneseq
    %v2897 = vshrl.u32 %v2896, 7
    %v2898 = vsub.s32 %v1922, %v2897
    %v2899 = vrot.slane %v2775, %v2898
    %v2900 = vlaneseq
    %v2901 = vshrl.u32 %v2900, 7
    %v2902 = vsub.s32 %v1927, %v2901
    %v2903 = vrot.slane %v2778, %v2902
    %v2904 = vsel %vm1932, %v2903, %v2899
    %v2905 = vlaneseq
    %v2906 = vshrl.u32 %v2905, 7
    %v2907 = vsub.s32 %v1922, %v2906
    %v2908 = vrot.slane %v2781, %v2907
    %v2909 = vlaneseq
    %v2910 = vshrl.u32 %v2909, 7
    %v2911 = vsub.s32 %v1927, %v2910
    %v2912 = vrot.slane %v2784, %v2911
    %v2913 = vsel %vm1932, %v2912, %v2908
    %v2914 = vlaneseq
    %v2915 = vshrl.u32 %v2914, 7
    %v2916 = vsub.s32 %v1922, %v2915
    %v2917 = vrot.slane %v2787, %v2916
    %v2918 = vlaneseq
    %v2919 = vshrl.u32 %v2918, 7
    %v2920 = vsub.s32 %v1927, %v2919
    %v2921 = vrot.slane %v2790, %v2920
    %v2922 = vsel %vm1932, %v2921, %v2917
    %v2923 = vlaneseq
    %v2924 = vshrl.u32 %v2923, 7
    %v2925 = vsub.s32 %v1922, %v2924
    %v2926 = vrot.slane %v2793, %v2925
    %v2927 = vlaneseq
    %v2928 = vshrl.u32 %v2927, 7
    %v2929 = vsub.s32 %v1927, %v2928
    %v2930 = vrot.slane %v2796, %v2929
    %v2931 = vsel %vm1932, %v2930, %v2926
    %v2932 = vlaneseq
    %v2933 = vshrl.u32 %v2932, 7
    %v2934 = vsub.s32 %v1922, %v2933
    %v2935 = vrot.slane %v2799, %v2934
    %v2936 = vlaneseq
    %v2937 = vshrl.u32 %v2936, 7
    %v2938 = vsub.s32 %v1927, %v2937
    %v2939 = vrot.slane %v2802, %v2938
    %v2940 = vsel %vm1932, %v2939, %v2935
    %v2941 = vlaneseq
    %v2942 = vshrl.u32 %v2941, 7
    %v2943 = vsub.s32 %v1922, %v2942
    %v2944 = vrot.slane %v2805, %v2943
    %v2945 = vlaneseq
    %v2946 = vshrl.u32 %v2945, 7
    %v2947 = vsub.s32 %v1927, %v2946
    %v2948 = vrot.slane %v2808, %v2947
    %v2949 = vsel %vm1932, %v2948, %v2944
    %v2950 = vlaneseq
    %v2951 = vshrl.u32 %v2950, 7
    %v2952 = vsub.s32 %v1922, %v2951
    %v2953 = vrot.slane %v2811, %v2952
    %v2954 = vlaneseq
    %v2955 = vshrl.u32 %v2954, 7
    %v2956 = vsub.s32 %v1927, %v2955
    %v2957 = vrot.slane %v2814, %v2956
    %v2958 = vsel %vm1932, %v2957, %v2953
    %v2959 = vsel %vm2069, %v2832, %v2823
    %v2960 = vsel %vm2071, %v2841, %v2959
    %v2961 = vsel %vm2073, %v2850, %v2960
    %v2962 = vsel %vm2075, %v2859, %v2961
    %v2963 = vsel %vm2077, %v2868, %v2962
    %v2964 = vsel %vm2079, %v2877, %v2963
    %v2965 = vsel %vm2081, %v2886, %v2964
    %v2966 = vsel %vm2069, %v2904, %v2895
    %v2967 = vsel %vm2071, %v2913, %v2966
    %v2968 = vsel %vm2073, %v2922, %v2967
    %v2969 = vsel %vm2075, %v2931, %v2968
    %v2970 = vsel %vm2077, %v2940, %v2969
    %v2971 = vsel %vm2079, %v2949, %v2970
    %v2972 = vsel %vm2081, %v2958, %v2971
    %v2973 = vsel %vm2092, %v2965, 0
    %v2975 = vsel %vm2092, %v2972, 0
    %2977 = vmatprep.subr.mxu0 0.0
    %2978 = vmatpush1.msra.mxu0 %v894
    %2979 = vmatprep.subr.mxu0 0.0
    %2980 = vmatpush1.msra.mxu0 %v895
    %2981 = vmatprep.subr.mxu0 0.0
    %2982 = vmatpush1.msra.mxu0 0.0
    %2983 = vmatprep.subr.mxu0 0.0
    %2984 = vmatpush1.msra.mxu0 0.0
    %2985 = vmatprep.subr.mxu0 0.0
    %2986 = vmatpush1.msra.mxu0 0.0
    %2987 = vmatprep.subr.mxu0 0.0
    %2988 = vmatpush1.msra.mxu0 0.0
    %2989 = vmatprep.subr.mxu0 0.0
    %2990 = vmatpush1.msra.mxu0 0.0
    %2991 = vmatprep.subr.mxu0 0.0
    %2992 = vmatpush1.msra.mxu0 0.0
    %2993 = vmatprep.subr.mxu0 0.0
    %2994 = vmatpush1.msra.mxu0 0.0
    %2995 = vmatprep.subr.mxu0 0.0
    %2996 = vmatpush1.msra.mxu0 0.0
    %2997 = vmatprep.subr.mxu0 0.0
    %2998 = vmatpush1.msra.mxu0 0.0
    %2999 = vmatprep.subr.mxu0 0.0
    %3000 = vmatpush1.msra.mxu0 0.0
    %3001 = vmatprep.subr.mxu0 0.0
    %3002 = vmatpush1.msra.mxu0 0.0
    %3003 = vmatprep.subr.mxu0 0.0
    %3004 = vmatpush1.msra.mxu0 0.0
    %3005 = vmatprep.subr.mxu0 0.0
    %3006 = vmatpush1.msra.mxu0 0.0
    %3007 = vmatprep.subr.mxu0 0.0
    %3008 = vmatpush1.msra.mxu0 0.0
    %3009 = vmatprep.subr.mxu0 0.0
    %3010 = vmatpush1.msra.mxu0 0.0
    %3011 = vmatprep.subr.mxu0 0.0
    %3012 = vmatpush1.msra.mxu0 0.0
    %3013 = vmatprep.subr.mxu0 0.0
    %3014 = vmatpush1.msra.mxu0 0.0
    %3015 = vmatprep.subr.mxu0 0.0
    %3016 = vmatpush1.msra.mxu0 0.0
    %3017 = vmatprep.subr.mxu0 0.0
    %3018 = vmatpush1.msra.mxu0 0.0
    %3019 = vmatprep.subr.mxu0 0.0
    %3020 = vmatpush1.msra.mxu0 0.0
    %3021 = vmatprep.subr.mxu0 0.0
    %3022 = vmatpush1.msra.mxu0 0.0
    %3023 = vmatprep.subr.mxu0 0.0
    %3024 = vmatpush1.msra.mxu0 0.0
    %3025 = vmatprep.subr.mxu0 0.0
    %3026 = vmatpush1.msra.mxu0 0.0
    %3027 = vmatprep.subr.mxu0 0.0
    %3028 = vmatpush1.msra.mxu0 0.0
    %3029 = vmatprep.subr.mxu0 0.0
    %3030 = vmatpush1.msra.mxu0 0.0
    %3031 = vmatprep.subr.mxu0 0.0
    %3032 = vmatpush1.msra.mxu0 0.0
    %3033 = vmatprep.subr.mxu0 0.0
    %3034 = vmatpush1.msra.mxu0 0.0
    %3035 = vmatprep.subr.mxu0 0.0
    %3036 = vmatpush1.msra.mxu0 0.0
    %3037 = vmatprep.subr.mxu0 0.0
    %3038 = vmatpush1.msra.mxu0 0.0
    %3039 = vmatprep.subr.mxu0 0.0
    %3040 = vmatpush1.msra.mxu0 0.0
    %3041 = vmatprep.mubr.f32.mxu0 0.0
    %3042 = vmatmul.mubr.f32.gmra.mrb[0].mxu0 %v2973
    %v3043 = vpop.f32.mrb[0].mxu0
    %v3044 = vadd.f32 %v884, %v3043
    %v3045 = vpop.f32.mrb[0].mxu0
    %3046 = vmatprep.mubr.f32.mxu0 0.0
    %3047 = vmatmul.mubr.f32.gmra.mrb[0].mxu0 %v2975
    %v3048 = vpop.f32.mrb[0].mxu0
    %v3049 = vadd.f32 %v887, %v3048
    %v3050 = vpop.f32.mrb[0].mxu0
    %3051 = vdwg.mxu0
    %v3052 = vlaneseq
    %v3053 = vshrl.u32 %v3052, 7
    %v3054 = vsub.s32 5, %v3053
    %v3055 = vrot.slane %v82, %v3054
    %v3056 = vadd.f32 %v3044, %v3055
    %v3057 = vadd.f32 %v3049, %v3055
    %vm3058 = vcmp.gt.f32.partialorder %v3056, 0.0
    %vm3059 = vcmp.gt.f32.partialorder %v3057, 0.0
    %v3060 = vmul.f32 %v3056, 0.01
    %v3061 = vmul.f32 %v3057, 0.01
    %v3062 = vsel %vm3058, %v3056, %v3060
    %v3063 = vsel %vm3059, %v3057, %v3061
    %s3064 = scalar_lea.vmem [#allocation7], 256
    %v3065 = vld [vmem:[%s3064] sm:$0xff]
    %v3066 = vld [vmem:[%s3064 + $0x8] sm:$0xff]
    %v3067 = vld [vmem:[%s3064 + $0x10] sm:$0xff]
    %v3068 = vld [vmem:[%s3064 + $0x18] sm:$0xff]
    %v3069 = vld [vmem:[%s3064 + $0x20] sm:$0xff]
    %v3070 = vld [vmem:[%s3064 + $0x28] sm:$0xff]
    %v3071 = vld [vmem:[%s3064 + $0x30] sm:$0xff]
    %v3072 = vld [vmem:[%s3064 + $0x38] sm:$0xff]
    %v3073 = vld [vmem:[%s3064 + $0x40] sm:$0xff]
    %v3074 = vld [vmem:[%s3064 + $0x48] sm:$0xff]
    %v3075 = vld [vmem:[%s3064 + $0x50] sm:$0xff]
    %v3076 = vld [vmem:[%s3064 + $0x58] sm:$0xff]
    %v3077 = vld [vmem:[%s3064 + $0x60] sm:$0xff]
    %v3078 = vld [vmem:[%s3064 + $0x68] sm:$0xff]
    %v3079 = vld [vmem:[%s3064 + $0x70] sm:$0xff]
    %v3080 = vld [vmem:[%s3064 + $0x78] sm:$0xff]
    %v3081 = vld [vmem:[%s3064 + $0x80] sm:$0xff]
    %v3082 = vld [vmem:[%s3064 + $0x88] sm:$0xff]
    %v3083 = vld [vmem:[%s3064 + $0x90] sm:$0xff]
    %v3084 = vld [vmem:[%s3064 + $0x98] sm:$0xff]
    %v3085 = vld [vmem:[%s3064 + $0xa0] sm:$0xff]
    %v3086 = vld [vmem:[%s3064 + $0xa8] sm:$0xff]
    %v3087 = vld [vmem:[%s3064 + $0xb0] sm:$0xff]
    %v3088 = vld [vmem:[%s3064 + $0xb8] sm:$0xff]
    %v3089 = vld [vmem:[%s3064 + $0xc0] sm:$0xff]
    %v3090 = vld [vmem:[%s3064 + $0xc8] sm:$0xff]
    %v3091 = vld [vmem:[%s3064 + $0xd0] sm:$0xff]
    %v3092 = vld [vmem:[%s3064 + $0xd8] sm:$0xff]
    %v3093 = vld [vmem:[%s3064 + $0xe0] sm:$0xff]
    %v3094 = vld [vmem:[%s3064 + $0xe8] sm:$0xff]
    %v3095 = vld [vmem:[%s3064 + $0xf0] sm:$0xff]
    %v3096 = vld [vmem:[%s3064 + $0xf8] sm:$0xff]
    %v3097 = vpack.c.bf16 %v3063, %v3062
    %v3130 = vunpack.c.l.b16 %v3065
    %v3131 = vunpack.c.h.b16 %v3065
    %v3132 = vunpack.c.l.b16 %v3066
    %v3133 = vunpack.c.l.b16 %v3067
    %v3134 = vunpack.c.h.b16 %v3067
    %v3135 = vunpack.c.l.b16 %v3068
    %v3136 = vunpack.c.l.b16 %v3069
    %v3137 = vunpack.c.h.b16 %v3069
    %v3138 = vunpack.c.l.b16 %v3070
    %v3139 = vunpack.c.l.b16 %v3071
    %v3140 = vunpack.c.h.b16 %v3071
    %v3141 = vunpack.c.l.b16 %v3072
    %v3142 = vunpack.c.l.b16 %v3073
    %v3143 = vunpack.c.h.b16 %v3073
    %v3144 = vunpack.c.l.b16 %v3074
    %v3145 = vunpack.c.l.b16 %v3075
    %v3146 = vunpack.c.h.b16 %v3075
    %v3147 = vunpack.c.l.b16 %v3076
    %v3148 = vunpack.c.l.b16 %v3077
    %v3149 = vunpack.c.h.b16 %v3077
    %v3150 = vunpack.c.l.b16 %v3078
    %v3151 = vunpack.c.l.b16 %v3079
    %v3152 = vunpack.c.h.b16 %v3079
    %v3153 = vunpack.c.l.b16 %v3080
    %v3154 = vunpack.c.l.b16 %v3081
    %v3155 = vunpack.c.h.b16 %v3081
    %v3156 = vunpack.c.l.b16 %v3082
    %v3157 = vunpack.c.l.b16 %v3083
    %v3158 = vunpack.c.h.b16 %v3083
    %v3159 = vunpack.c.l.b16 %v3084
    %v3160 = vunpack.c.l.b16 %v3085
    %v3161 = vunpack.c.h.b16 %v3085
    %v3162 = vunpack.c.l.b16 %v3086
    %v3163 = vunpack.c.l.b16 %v3087
    %v3164 = vunpack.c.h.b16 %v3087
    %v3165 = vunpack.c.l.b16 %v3088
    %v3166 = vunpack.c.l.b16 %v3089
    %v3167 = vunpack.c.h.b16 %v3089
    %v3168 = vunpack.c.l.b16 %v3090
    %v3169 = vunpack.c.l.b16 %v3091
    %v3170 = vunpack.c.h.b16 %v3091
    %v3171 = vunpack.c.l.b16 %v3092
    %v3172 = vunpack.c.l.b16 %v3093
    %v3173 = vunpack.c.h.b16 %v3093
    %v3174 = vunpack.c.l.b16 %v3094
    %v3175 = vunpack.c.l.b16 %v3095
    %v3176 = vunpack.c.h.b16 %v3095
    %v3177 = vunpack.c.l.b16 %v3096
    %v3178 = vpack.c.b16 %v3133, %v3130
    %v3179 = vpack.c.b16 %v3134, %v3131
    %v3180 = vpack.c.b16 %v3135, %v3132
    %v3181 = vpack.c.b16 %v3139, %v3136
    %v3182 = vpack.c.b16 %v3140, %v3137
    %v3183 = vpack.c.b16 %v3141, %v3138
    %v3184 = vpack.c.b16 %v3145, %v3142
    %v3185 = vpack.c.b16 %v3146, %v3143
    %v3186 = vpack.c.b16 %v3147, %v3144
    %v3187 = vpack.c.b16 %v3151, %v3148
    %v3188 = vpack.c.b16 %v3152, %v3149
    %v3189 = vpack.c.b16 %v3153, %v3150
    %v3190 = vpack.c.b16 %v3157, %v3154
    %v3191 = vpack.c.b16 %v3158, %v3155
    %v3192 = vpack.c.b16 %v3159, %v3156
    %v3193 = vpack.c.b16 %v3163, %v3160
    %v3194 = vpack.c.b16 %v3164, %v3161
    %v3195 = vpack.c.b16 %v3165, %v3162
    %v3196 = vpack.c.b16 %v3169, %v3166
    %v3197 = vpack.c.b16 %v3170, %v3167
    %v3198 = vpack.c.b16 %v3171, %v3168
    %v3199 = vpack.c.b16 %v3175, %v3172
    %v3200 = vpack.c.b16 %v3176, %v3173
    %v3201 = vpack.c.b16 %v3177, %v3174
    %3226 = vmatprep.subr.bf16.mxu0 %v3179
    %3227 = vmatpush1.bf16.msra.mxu0 %v3178
    %3228 = vmatprep.subr.bf16.mxu0 %v3182
    %3229 = vmatpush1.bf16.msra.mxu0 %v3181
    %3230 = vmatprep.subr.bf16.mxu0 %v3185
    %3231 = vmatpush1.bf16.msra.mxu0 %v3184
    %3232 = vmatprep.subr.bf16.mxu0 %v3188
    %3233 = vmatpush1.bf16.msra.mxu0 %v3187
    %3234 = vmatprep.subr.bf16.mxu0 %v3191
    %3235 = vmatpush1.bf16.msra.mxu0 %v3190
    %3236 = vmatprep.subr.bf16.mxu0 %v3194
    %3237 = vmatpush1.bf16.msra.mxu0 %v3193
    %3238 = vmatprep.subr.bf16.mxu0 %v3197
    %3239 = vmatpush1.bf16.msra.mxu0 %v3196
    %3240 = vmatprep.subr.bf16.mxu0 %v3200
    %3241 = vmatpush1.bf16.msra.mxu0 %v3199
    %3242 = vmatprep.subr.bf16.mxu0 0
    %3243 = vmatpush1.bf16.msra.mxu0 0
    %3244 = vmatprep.subr.bf16.mxu0 0
    %3245 = vmatpush1.bf16.msra.mxu0 0
    %3246 = vmatprep.subr.bf16.mxu0 0
    %3247 = vmatpush1.bf16.msra.mxu0 0
    %3248 = vmatprep.subr.bf16.mxu0 0
    %3249 = vmatpush1.bf16.msra.mxu0 0
    %3250 = vmatprep.subr.bf16.mxu0 0
    %3251 = vmatpush1.bf16.msra.mxu0 0
    %3252 = vmatprep.subr.bf16.mxu0 0
    %3253 = vmatpush1.bf16.msra.mxu0 0
    %3254 = vmatprep.subr.bf16.mxu0 0
    %3255 = vmatpush1.bf16.msra.mxu0 0
    %3256 = vmatprep.subr.bf16.mxu0 0
    %3257 = vmatpush1.bf16.msra.mxu0 0
    %3258 = vmatprep.mubr.bf16.mxu0 0
    %3259 = vmatmul.mubr.bf16.gmra.mrb[0].mxu0 %v3097
    %v3260 = vpop.f32.mrb[0].mxu0
    %v3261 = vadd.f32 0.0, %v3260
    %v3262 = vpop.f32.mrb[0].mxu0
    %v3263 = vadd.f32 0.0, %v3262
    %v3264 = vpop.f32.mrb[0].mxu0
    %v3265 = vadd.f32 0.0, %v3264
    %v3266 = vpop.f32.mrb[0].mxu0
    %v3267 = vadd.f32 0.0, %v3266
    %3268 = vdwg.mxu0
    %3269 = vmatprep.subr.bf16.mxu0 0
    %3270 = vmatpush1.bf16.msra.mxu0 %v3180
    %3271 = vmatprep.subr.bf16.mxu0 0
    %3272 = vmatpush1.bf16.msra.mxu0 %v3183
    %3273 = vmatprep.subr.bf16.mxu0 0
    %3274 = vmatpush1.bf16.msra.mxu0 %v3186
    %3275 = vmatprep.subr.bf16.mxu0 0
    %3276 = vmatpush1.bf16.msra.mxu0 %v3189
    %3277 = vmatprep.subr.bf16.mxu0 0
    %3278 = vmatpush1.bf16.msra.mxu0 %v3192
    %3279 = vmatprep.subr.bf16.mxu0 0
    %3280 = vmatpush1.bf16.msra.mxu0 %v3195
    %3281 = vmatprep.subr.bf16.mxu0 0
    %3282 = vmatpush1.bf16.msra.mxu0 %v3198
    %3283 = vmatprep.subr.bf16.mxu0 0
    %3284 = vmatpush1.bf16.msra.mxu0 %v3201
    %3285 = vmatprep.subr.bf16.mxu0 0
    %3286 = vmatpush1.bf16.msra.mxu0 0
    %3287 = vmatprep.subr.bf16.mxu0 0
    %3288 = vmatpush1.bf16.msra.mxu0 0
    %3289 = vmatprep.subr.bf16.mxu0 0
    %3290 = vmatpush1.bf16.msra.mxu0 0
    %3291 = vmatprep.subr.bf16.mxu0 0
    %3292 = vmatpush1.bf16.msra.mxu0 0
    %3293 = vmatprep.subr.bf16.mxu0 0
    %3294 = vmatpush1.bf16.msra.mxu0 0
    %3295 = vmatprep.subr.bf16.mxu0 0
    %3296 = vmatpush1.bf16.msra.mxu0 0
    %3297 = vmatprep.subr.bf16.mxu0 0
    %3298 = vmatpush1.bf16.msra.mxu0 0
    %3299 = vmatprep.subr.bf16.mxu0 0
    %3300 = vmatpush1.bf16.msra.mxu0 0
    %3301 = vmatprep.mubr.bf16.mxu0 0
    %3302 = vmatmul.mubr.bf16.gmra.mrb[0].mxu0 %v3097
    %v3303 = vpop.f32.mrb[0].mxu0
    %v3304 = vadd.f32 0.0, %v3303
    %v3305 = vpop.f32.mrb[0].mxu0
    %v3306 = vpop.f32.mrb[0].mxu0
    %v3307 = vadd.f32 0.0, %v3306
    %v3308 = vpop.f32.mrb[0].mxu0
    %3309 = vdwg.mxu0
    %v3310 = vlaneseq
    %v3311 = vshrl.u32 %v3310, 7
    %v3312 = vsub.s32 7, %v3311
    %v3313 = vrot.slane %v82, %v3312
    %v3314 = vadd.f32 %v3261, %v3313
    %v3315 = vadd.f32 %v3265, %v3313
    %v3316 = vlaneseq
    %v3317 = vshrl.u32 %v3316, 7
    %v3318 = vsub.s32 0, %v3317
    %v3319 = vrot.slane %v83, %v3318
    %v3320 = vadd.f32 %v3263, %v3319
    %v3321 = vadd.f32 %v3267, %v3319
    %v3322 = vunpack.c.h.b16 %v3066
    %v3323 = vunpack.c.h.b16 %v3068
    %v3324 = vunpack.c.h.b16 %v3070
    %v3325 = vunpack.c.h.b16 %v3072
    %v3326 = vunpack.c.h.b16 %v3074
    %v3327 = vunpack.c.h.b16 %v3076
    %v3328 = vunpack.c.h.b16 %v3078
    %v3329 = vunpack.c.h.b16 %v3080
    %v3330 = vunpack.c.h.b16 %v3082
    %v3331 = vunpack.c.h.b16 %v3084
    %v3332 = vunpack.c.h.b16 %v3086
    %v3333 = vunpack.c.h.b16 %v3088
    %v3334 = vunpack.c.h.b16 %v3090
    %v3335 = vunpack.c.h.b16 %v3092
    %v3336 = vunpack.c.h.b16 %v3094
    %v3337 = vunpack.c.h.b16 %v3096
    %v3338 = vpack.c.b16 %v3323, %v3322
    %v3339 = vpack.c.b16 %v3325, %v3324
    %v3340 = vpack.c.b16 %v3327, %v3326
    %v3341 = vpack.c.b16 %v3329, %v3328
    %v3342 = vpack.c.b16 %v3331, %v3330
    %v3343 = vpack.c.b16 %v3333, %v3332
    %v3344 = vpack.c.b16 %v3335, %v3334
    %v3345 = vpack.c.b16 %v3337, %v3336
    %3354 = vmatprep.subr.bf16.mxu0 0
    %3355 = vmatpush1.bf16.msra.mxu0 %v3338
    %3356 = vmatprep.subr.bf16.mxu0 0
    %3357 = vmatpush1.bf16.msra.mxu0 %v3339
    %3358 = vmatprep.subr.bf16.mxu0 0
    %3359 = vmatpush1.bf16.msra.mxu0 %v3340
    %3360 = vmatprep.subr.bf16.mxu0 0
    %3361 = vmatpush1.bf16.msra.mxu0 %v3341
    %3362 = vmatprep.subr.bf16.mxu0 0
    %3363 = vmatpush1.bf16.msra.mxu0 %v3342
    %3364 = vmatprep.subr.bf16.mxu0 0
    %3365 = vmatpush1.bf16.msra.mxu0 %v3343
    %3366 = vmatprep.subr.bf16.mxu0 0
    %3367 = vmatpush1.bf16.msra.mxu0 %v3344
    %3368 = vmatprep.subr.bf16.mxu0 0
    %3369 = vmatpush1.bf16.msra.mxu0 %v3345
    %3370 = vmatprep.subr.bf16.mxu0 0
    %3371 = vmatpush1.bf16.msra.mxu0 0
    %3372 = vmatprep.subr.bf16.mxu0 0
    %3373 = vmatpush1.bf16.msra.mxu0 0
    %3374 = vmatprep.subr.bf16.mxu0 0
    %3375 = vmatpush1.bf16.msra.mxu0 0
    %3376 = vmatprep.subr.bf16.mxu0 0
    %3377 = vmatpush1.bf16.msra.mxu0 0
    %3378 = vmatprep.subr.bf16.mxu0 0
    %3379 = vmatpush1.bf16.msra.mxu0 0
    %3380 = vmatprep.subr.bf16.mxu0 0
    %3381 = vmatpush1.bf16.msra.mxu0 0
    %3382 = vmatprep.subr.bf16.mxu0 0
    %3383 = vmatpush1.bf16.msra.mxu0 0
    %3384 = vmatprep.subr.bf16.mxu0 0
    %3385 = vmatpush1.bf16.msra.mxu0 0
    %3386 = vmatprep.mubr.bf16.mxu0 0
    %3387 = vmatmul.mubr.bf16.gmra.mrb[0].mxu0 %v902
    %v3388 = vpop.f32.mrb[0].mxu0
    %v3389 = vadd.f32 0.0, %v3388
    %v3390 = vpop.f32.mrb[0].mxu0
    %v3391 = vpop.f32.mrb[0].mxu0
    %v3392 = vadd.f32 0.0, %v3391
    %v3393 = vpop.f32.mrb[0].mxu0
    %3394 = vmatprep.mubr.bf16.mxu0 0
    %3395 = vmatmul.mubr.bf16.gmra.mrb[0].mxu0 %v903
    %v3396 = vpop.f32.mrb[0].mxu0
    %v3397 = vadd.f32 0.0, %v3396
    %v3398 = vpop.f32.mrb[0].mxu0
    %v3399 = vpop.f32.mrb[0].mxu0
    %v3400 = vadd.f32 0.0, %v3399
    %v3401 = vpop.f32.mrb[0].mxu0
    %3402 = vmatprep.mubr.bf16.mxu0 0
    %3403 = vmatmul.mubr.bf16.gmra.mrb[0].mxu0 %v904
    %v3404 = vpop.f32.mrb[0].mxu0
    %v3405 = vadd.f32 0.0, %v3404
    %v3406 = vpop.f32.mrb[0].mxu0
    %v3407 = vpop.f32.mrb[0].mxu0
    %v3408 = vadd.f32 0.0, %v3407
    %v3409 = vpop.f32.mrb[0].mxu0
    %3410 = vmatprep.mubr.bf16.mxu0 0
    %3411 = vmatmul.mubr.bf16.gmra.mrb[0].mxu0 %v905
    %v3412 = vpop.f32.mrb[0].mxu0
    %v3413 = vadd.f32 0.0, %v3412
    %v3414 = vpop.f32.mrb[0].mxu0
    %v3415 = vpop.f32.mrb[0].mxu0
    %v3416 = vadd.f32 0.0, %v3415
    %v3417 = vpop.f32.mrb[0].mxu0
    %3418 = vmatprep.mubr.bf16.mxu0 0
    %3419 = vmatmul.mubr.bf16.gmra.mrb[0].mxu0 %v906
    %v3420 = vpop.f32.mrb[0].mxu0
    %v3421 = vadd.f32 0.0, %v3420
    %v3422 = vpop.f32.mrb[0].mxu0
    %v3423 = vpop.f32.mrb[0].mxu0
    %v3424 = vadd.f32 0.0, %v3423
    %v3425 = vpop.f32.mrb[0].mxu0
    %3426 = vmatprep.mubr.bf16.mxu0 0
    %3427 = vmatmul.mubr.bf16.gmra.mrb[0].mxu0 %v907
    %v3428 = vpop.f32.mrb[0].mxu0
    %v3429 = vadd.f32 0.0, %v3428
    %v3430 = vpop.f32.mrb[0].mxu0
    %v3431 = vpop.f32.mrb[0].mxu0
    %v3432 = vadd.f32 0.0, %v3431
    %v3433 = vpop.f32.mrb[0].mxu0
    %3434 = vmatprep.mubr.bf16.mxu0 0
    %3435 = vmatmul.mubr.bf16.gmra.mrb[0].mxu0 %v908
    %v3436 = vpop.f32.mrb[0].mxu0
    %v3437 = vadd.f32 0.0, %v3436
    %v3438 = vpop.f32.mrb[0].mxu0
    %v3439 = vpop.f32.mrb[0].mxu0
    %v3440 = vadd.f32 0.0, %v3439
    %v3441 = vpop.f32.mrb[0].mxu0
    %3442 = vmatprep.mubr.bf16.mxu0 0
    %3443 = vmatmul.mubr.bf16.gmra.mrb[0].mxu0 %v909
    %v3444 = vpop.f32.mrb[0].mxu0
    %v3445 = vadd.f32 0.0, %v3444
    %v3446 = vpop.f32.mrb[0].mxu0
    %v3447 = vpop.f32.mrb[0].mxu0
    %v3448 = vadd.f32 0.0, %v3447
    %v3449 = vpop.f32.mrb[0].mxu0
    %3450 = vmatprep.mubr.bf16.mxu0 0
    %3451 = vmatmul.mubr.bf16.gmra.mrb[0].mxu0 %v910
    %v3452 = vpop.f32.mrb[0].mxu0
    %v3453 = vadd.f32 0.0, %v3452
    %v3454 = vpop.f32.mrb[0].mxu0
    %v3455 = vpop.f32.mrb[0].mxu0
    %v3456 = vadd.f32 0.0, %v3455
    %v3457 = vpop.f32.mrb[0].mxu0
    %3458 = vmatprep.mubr.bf16.mxu0 0
    %3459 = vmatmul.mubr.bf16.gmra.mrb[0].mxu0 %v911
    %v3460 = vpop.f32.mrb[0].mxu0
    %v3461 = vadd.f32 0.0, %v3460
    %v3462 = vpop.f32.mrb[0].mxu0
    %v3463 = vpop.f32.mrb[0].mxu0
    %v3464 = vadd.f32 0.0, %v3463
    %v3465 = vpop.f32.mrb[0].mxu0
    %3466 = vmatprep.mubr.bf16.mxu0 0
    %3467 = vmatmul.mubr.bf16.gmra.mrb[0].mxu0 %v912
    %v3468 = vpop.f32.mrb[0].mxu0
    %v3469 = vadd.f32 0.0, %v3468
    %v3470 = vpop.f32.mrb[0].mxu0
    %v3471 = vpop.f32.mrb[0].mxu0
    %v3472 = vadd.f32 0.0, %v3471
    %v3473 = vpop.f32.mrb[0].mxu0
    %3474 = vmatprep.mubr.bf16.mxu0 0
    %3475 = vmatmul.mubr.bf16.gmra.mrb[0].mxu0 %v913
    %v3476 = vpop.f32.mrb[0].mxu0
    %v3477 = vadd.f32 0.0, %v3476
    %v3478 = vpop.f32.mrb[0].mxu0
    %v3479 = vpop.f32.mrb[0].mxu0
    %v3480 = vadd.f32 0.0, %v3479
    %v3481 = vpop.f32.mrb[0].mxu0
    %3482 = vmatprep.mubr.bf16.mxu0 0
    %3483 = vmatmul.mubr.bf16.gmra.mrb[0].mxu0 %v914
    %v3484 = vpop.f32.mrb[0].mxu0
    %v3485 = vadd.f32 0.0, %v3484
    %v3486 = vpop.f32.mrb[0].mxu0
    %v3487 = vpop.f32.mrb[0].mxu0
    %v3488 = vadd.f32 0.0, %v3487
    %v3489 = vpop.f32.mrb[0].mxu0
    %3490 = vmatprep.mubr.bf16.mxu0 0
    %3491 = vmatmul.mubr.bf16.gmra.mrb[0].mxu0 %v915
    %v3492 = vpop.f32.mrb[0].mxu0
    %v3493 = vadd.f32 0.0, %v3492
    %v3494 = vpop.f32.mrb[0].mxu0
    %v3495 = vpop.f32.mrb[0].mxu0
    %v3496 = vadd.f32 0.0, %v3495
    %v3497 = vpop.f32.mrb[0].mxu0
    %3498 = vmatprep.mubr.bf16.mxu0 0
    %3499 = vmatmul.mubr.bf16.gmra.mrb[0].mxu0 %v916
    %v3500 = vpop.f32.mrb[0].mxu0
    %v3501 = vadd.f32 0.0, %v3500
    %v3502 = vpop.f32.mrb[0].mxu0
    %v3503 = vpop.f32.mrb[0].mxu0
    %v3504 = vadd.f32 0.0, %v3503
    %v3505 = vpop.f32.mrb[0].mxu0
    %3506 = vmatprep.mubr.bf16.mxu0 0
    %3507 = vmatmul.mubr.bf16.gmra.mrb[0].mxu0 %v917
    %v3508 = vpop.f32.mrb[0].mxu0
    %v3509 = vadd.f32 0.0, %v3508
    %v3510 = vpop.f32.mrb[0].mxu0
    %v3511 = vpop.f32.mrb[0].mxu0
    %v3512 = vadd.f32 0.0, %v3511
    %v3513 = vpop.f32.mrb[0].mxu0
    %3514 = vdwg.mxu0
    %v3517 = vcombine.high %v3320, %v3320
    %v3519 = vunpack.c.l.s4 1966171168
    %v3520 = vunpack.c.0.s8 %v3519
    %v3521 = vlaneseq
    %v3522 = vshrl.u32 %v3521, 7
    %v3523 = vsub.s32 %v3520, %v3522
    %v3524 = vrot.slane %v3320, %v3523
    %v3526 = vunpack.c.l.s4 1966171168
    %v3527 = vunpack.c.0.s8 %v3526
    %v3528 = vlaneseq
    %v3529 = vshrl.u32 %v3528, 7
    %v3530 = vsub.s32 %v3527, %v3529
    %v3531 = vrot.slane %v3517, %v3530
    %v3532 = vcombine.high %v3524, %v3524
    %v3533 = vcombine.high %v3531, %v3531
    %v3535 = vunpack.c.l.s4 1966171168
    %v3536 = vunpack.c.0.s8 %v3535
    %v3537 = vlaneseq
    %v3538 = vshrl.u32 %v3537, 7
    %v3539 = vsub.s32 %v3536, %v3538
    %v3540 = vrot.slane %v3524, %v3539
    %v3542 = vunpack.c.l.s4 1966171168
    %v3543 = vunpack.c.0.s8 %v3542
    %v3544 = vlaneseq
    %v3545 = vshrl.u32 %v3544, 7
    %v3546 = vsub.s32 %v3543, %v3545
    %v3547 = vrot.slane %v3531, %v3546
    %v3549 = vunpack.c.l.s4 1966171168
    %v3550 = vunpack.c.0.s8 %v3549
    %v3551 = vlaneseq
    %v3552 = vshrl.u32 %v3551, 7
    %v3553 = vsub.s32 %v3550, %v3552
    %v3554 = vrot.slane %v3532, %v3553
    %v3556 = vunpack.c.l.s4 1966171168
    %v3557 = vunpack.c.0.s8 %v3556
    %v3558 = vlaneseq
    %v3559 = vshrl.u32 %v3558, 7
    %v3560 = vsub.s32 %v3557, %v3559
    %v3561 = vrot.slane %v3533, %v3560
    %v3562 = vcombine.high %v3540, %v3540
    %v3563 = vcombine.high %v3547, %v3547
    %v3564 = vcombine.high %v3554, %v3554
    %v3565 = vcombine.high %v3561, %v3561
    %v3566 = vcombine.high %v3321, %v3321
    %v3568 = vunpack.c.l.s4 1966171168
    %v3569 = vunpack.c.0.s8 %v3568
    %v3570 = vlaneseq
    %v3571 = vshrl.u32 %v3570, 7
    %v3572 = vsub.s32 %v3569, %v3571
    %v3573 = vrot.slane %v3321, %v3572
    %v3575 = vunpack.c.l.s4 1966171168
    %v3576 = vunpack.c.0.s8 %v3575
    %v3577 = vlaneseq
    %v3578 = vshrl.u32 %v3577, 7
    %v3579 = vsub.s32 %v3576, %v3578
    %v3580 = vrot.slane %v3566, %v3579
    %v3581 = vcombine.high %v3573, %v3573
    %v3582 = vcombine.high %v3580, %v3580
    %v3584 = vunpack.c.l.s4 1966171168
    %v3585 = vunpack.c.0.s8 %v3584
    %v3586 = vlaneseq
    %v3587 = vshrl.u32 %v3586, 7
    %v3588 = vsub.s32 %v3585, %v3587
    %v3589 = vrot.slane %v3573, %v3588
    %v3591 = vunpack.c.l.s4 1966171168
    %v3592 = vunpack.c.0.s8 %v3591
    %v3593 = vlaneseq
    %v3594 = vshrl.u32 %v3593, 7
    %v3595 = vsub.s32 %v3592, %v3594
    %v3596 = vrot.slane %v3580, %v3595
    %v3598 = vunpack.c.l.s4 1966171168
    %v3599 = vunpack.c.0.s8 %v3598
    %v3600 = vlaneseq
    %v3601 = vshrl.u32 %v3600, 7
    %v3602 = vsub.s32 %v3599, %v3601
    %v3603 = vrot.slane %v3581, %v3602
    %v3605 = vunpack.c.l.s4 1966171168
    %v3606 = vunpack.c.0.s8 %v3605
    %v3607 = vlaneseq
    %v3608 = vshrl.u32 %v3607, 7
    %v3609 = vsub.s32 %v3606, %v3608
    %v3610 = vrot.slane %v3582, %v3609
    %v3611 = vcombine.high %v3589, %v3589
    %v3612 = vcombine.high %v3596, %v3596
    %v3613 = vcombine.high %v3603, %v3603
    %v3614 = vcombine.high %v3610, %v3610
    %v3615 = vlaneseq
    %v3616 = vshrl.u32 %v3615, 7
    %v3617 = vsub.s32 0, %v3616
    %v3618 = vrot.slane %v3540, %v3617
    %v3619 = vlaneseq
    %v3620 = vshrl.u32 %v3619, 7
    %v3621 = vsub.s32 0, %v3620
    %v3622 = vrot.slane %v3554, %v3621
    %v3623 = vlaneseq
    %v3624 = vshrl.u32 %v3623, 7
    %v3625 = vsub.s32 0, %v3624
    %v3626 = vrot.slane %v3562, %v3625
    %v3627 = vlaneseq
    %v3628 = vshrl.u32 %v3627, 7
    %v3629 = vsub.s32 0, %v3628
    %v3630 = vrot.slane %v3564, %v3629
    %v3631 = vlaneseq
    %v3632 = vshrl.u32 %v3631, 7
    %v3633 = vsub.s32 0, %v3632
    %v3634 = vrot.slane %v3547, %v3633
    %v3635 = vlaneseq
    %v3636 = vshrl.u32 %v3635, 7
    %v3637 = vsub.s32 0, %v3636
    %v3638 = vrot.slane %v3561, %v3637
    %v3639 = vlaneseq
    %v3640 = vshrl.u32 %v3639, 7
    %v3641 = vsub.s32 0, %v3640
    %v3642 = vrot.slane %v3563, %v3641
    %v3643 = vlaneseq
    %v3644 = vshrl.u32 %v3643, 7
    %v3645 = vsub.s32 0, %v3644
    %v3646 = vrot.slane %v3565, %v3645
    %v3647 = vlaneseq
    %v3648 = vshrl.u32 %v3647, 7
    %v3649 = vsub.s32 0, %v3648
    %v3650 = vrot.slane %v3589, %v3649
    %v3651 = vlaneseq
    %v3652 = vshrl.u32 %v3651, 7
    %v3653 = vsub.s32 0, %v3652
    %v3654 = vrot.slane %v3603, %v3653
    %v3655 = vlaneseq
    %v3656 = vshrl.u32 %v3655, 7
    %v3657 = vsub.s32 0, %v3656
    %v3658 = vrot.slane %v3611, %v3657
    %v3659 = vlaneseq
    %v3660 = vshrl.u32 %v3659, 7
    %v3661 = vsub.s32 0, %v3660
    %v3662 = vrot.slane %v3613, %v3661
    %v3663 = vlaneseq
    %v3664 = vshrl.u32 %v3663, 7
    %v3665 = vsub.s32 0, %v3664
    %v3666 = vrot.slane %v3596, %v3665
    %v3667 = vlaneseq
    %v3668 = vshrl.u32 %v3667, 7
    %v3669 = vsub.s32 0, %v3668
    %v3670 = vrot.slane %v3610, %v3669
    %v3671 = vlaneseq
    %v3672 = vshrl.u32 %v3671, 7
    %v3673 = vsub.s32 0, %v3672
    %v3674 = vrot.slane %v3612, %v3673
    %v3675 = vlaneseq
    %v3676 = vshrl.u32 %v3675, 7
    %v3677 = vsub.s32 0, %v3676
    %v3678 = vrot.slane %v3614, %v3677
    %v3695 = vadd.f32 %v3314, %v3618
    %v3696 = vadd.f32 %v3315, %v3618
    %v3697 = vadd.f32 %v3314, %v3622
    %v3698 = vadd.f32 %v3315, %v3622
    %v3699 = vadd.f32 %v3314, %v3626
    %v3700 = vadd.f32 %v3315, %v3626
    %v3701 = vadd.f32 %v3314, %v3630
    %v3702 = vadd.f32 %v3315, %v3630
    %v3703 = vadd.f32 %v3314, %v3634
    %v3704 = vadd.f32 %v3315, %v3634
    %v3705 = vadd.f32 %v3314, %v3638
    %v3706 = vadd.f32 %v3315, %v3638
    %v3707 = vadd.f32 %v3314, %v3642
    %v3708 = vadd.f32 %v3315, %v3642
    %v3709 = vadd.f32 %v3314, %v3646
    %v3710 = vadd.f32 %v3315, %v3646
    %v3711 = vadd.f32 %v3314, %v3650
    %v3712 = vadd.f32 %v3315, %v3650
    %v3713 = vadd.f32 %v3314, %v3654
    %v3714 = vadd.f32 %v3315, %v3654
    %v3715 = vadd.f32 %v3314, %v3658
    %v3716 = vadd.f32 %v3315, %v3658
    %v3717 = vadd.f32 %v3314, %v3662
    %v3718 = vadd.f32 %v3315, %v3662
    %v3719 = vadd.f32 %v3314, %v3666
    %v3720 = vadd.f32 %v3315, %v3666
    %v3721 = vadd.f32 %v3314, %v3670
    %v3722 = vadd.f32 %v3315, %v3670
    %v3723 = vadd.f32 %v3314, %v3674
    %v3724 = vadd.f32 %v3315, %v3674
    %v3725 = vadd.f32 %v3314, %v3678
    %v3726 = vadd.f32 %v3315, %v3678
    %v3727 = vadd.f32 %v3695, %v3389
    %v3728 = vadd.f32 %v3696, %v3392
    %v3729 = vadd.f32 %v3697, %v3397
    %v3730 = vadd.f32 %v3698, %v3400
    %v3731 = vadd.f32 %v3699, %v3405
    %v3732 = vadd.f32 %v3700, %v3408
    %v3733 = vadd.f32 %v3701, %v3413
    %v3734 = vadd.f32 %v3702, %v3416
    %v3735 = vadd.f32 %v3703, %v3421
    %v3736 = vadd.f32 %v3704, %v3424
    %v3737 = vadd.f32 %v3705, %v3429
    %v3738 = vadd.f32 %v3706, %v3432
    %v3739 = vadd.f32 %v3707, %v3437
    %v3740 = vadd.f32 %v3708, %v3440
    %v3741 = vadd.f32 %v3709, %v3445
    %v3742 = vadd.f32 %v3710, %v3448
    %v3743 = vadd.f32 %v3711, %v3453
    %v3744 = vadd.f32 %v3712, %v3456
    %v3745 = vadd.f32 %v3713, %v3461
    %v3746 = vadd.f32 %v3714, %v3464
    %v3747 = vadd.f32 %v3715, %v3469
    %v3748 = vadd.f32 %v3716, %v3472
    %v3749 = vadd.f32 %v3717, %v3477
    %v3750 = vadd.f32 %v3718, %v3480
    %v3751 = vadd.f32 %v3719, %v3485
    %v3752 = vadd.f32 %v3720, %v3488
    %v3753 = vadd.f32 %v3721, %v3493
    %v3754 = vadd.f32 %v3722, %v3496
    %v3755 = vadd.f32 %v3723, %v3501
    %v3756 = vadd.f32 %v3724, %v3504
    %v3757 = vadd.f32 %v3725, %v3509
    %v3758 = vadd.f32 %v3726, %v3512
    %vm3759 = vcmp.gt.f32.partialorder %v3727, 0.0
    %vm3760 = vcmp.gt.f32.partialorder %v3728, 0.0
    %vm3761 = vcmp.gt.f32.partialorder %v3729, 0.0
    %vm3762 = vcmp.gt.f32.partialorder %v3730, 0.0
    %vm3763 = vcmp.gt.f32.partialorder %v3731, 0.0
    %vm3764 = vcmp.gt.f32.partialorder %v3732, 0.0
    %vm3765 = vcmp.gt.f32.partialorder %v3733, 0.0
    %vm3766 = vcmp.gt.f32.partialorder %v3734, 0.0
    %vm3767 = vcmp.gt.f32.partialorder %v3735, 0.0
    %vm3768 = vcmp.gt.f32.partialorder %v3736, 0.0
    %vm3769 = vcmp.gt.f32.partialorder %v3737, 0.0
    %vm3770 = vcmp.gt.f32.partialorder %v3738, 0.0
    %vm3771 = vcmp.gt.f32.partialorder %v3739, 0.0
    %vm3772 = vcmp.gt.f32.partialorder %v3740, 0.0
    %vm3773 = vcmp.gt.f32.partialorder %v3741, 0.0
    %vm3774 = vcmp.gt.f32.partialorder %v3742, 0.0
    %vm3775 = vcmp.gt.f32.partialorder %v3743, 0.0
    %vm3776 = vcmp.gt.f32.partialorder %v3744, 0.0
    %vm3777 = vcmp.gt.f32.partialorder %v3745, 0.0
    %vm3778 = vcmp.gt.f32.partialorder %v3746, 0.0
    %vm3779 = vcmp.gt.f32.partialorder %v3747, 0.0
    %vm3780 = vcmp.gt.f32.partialorder %v3748, 0.0
    %vm3781 = vcmp.gt.f32.partialorder %v3749, 0.0
    %vm3782 = vcmp.gt.f32.partialorder %v3750, 0.0
    %vm3783 = vcmp.gt.f32.partialorder %v3751, 0.0
    %vm3784 = vcmp.gt.f32.partialorder %v3752, 0.0
    %vm3785 = vcmp.gt.f32.partialorder %v3753, 0.0
    %vm3786 = vcmp.gt.f32.partialorder %v3754, 0.0
    %vm3787 = vcmp.gt.f32.partialorder %v3755, 0.0
    %vm3788 = vcmp.gt.f32.partialorder %v3756, 0.0
    %vm3789 = vcmp.gt.f32.partialorder %v3757, 0.0
    %vm3790 = vcmp.gt.f32.partialorder %v3758, 0.0
    %v3791 = vmul.f32 %v3727, 0.2
    %v3792 = vmul.f32 %v3728, 0.2
    %v3793 = vmul.f32 %v3729, 0.2
    %v3794 = vmul.f32 %v3730, 0.2
    %v3795 = vmul.f32 %v3731, 0.2
    %v3796 = vmul.f32 %v3732, 0.2
    %v3797 = vmul.f32 %v3733, 0.2
    %v3798 = vmul.f32 %v3734, 0.2
    %v3799 = vmul.f32 %v3735, 0.2
    %v3800 = vmul.f32 %v3736, 0.2
    %v3801 = vmul.f32 %v3737, 0.2
    %v3802 = vmul.f32 %v3738, 0.2
    %v3803 = vmul.f32 %v3739, 0.2
    %v3804 = vmul.f32 %v3740, 0.2
    %v3805 = vmul.f32 %v3741, 0.2
    %v3806 = vmul.f32 %v3742, 0.2
    %v3807 = vmul.f32 %v3743, 0.2
    %v3808 = vmul.f32 %v3744, 0.2
    %v3809 = vmul.f32 %v3745, 0.2
    %v3810 = vmul.f32 %v3746, 0.2
    %v3811 = vmul.f32 %v3747, 0.2
    %v3812 = vmul.f32 %v3748, 0.2
    %v3813 = vmul.f32 %v3749, 0.2
    %v3814 = vmul.f32 %v3750, 0.2
    %v3815 = vmul.f32 %v3751, 0.2
    %v3816 = vmul.f32 %v3752, 0.2
    %v3817 = vmul.f32 %v3753, 0.2
    %v3818 = vmul.f32 %v3754, 0.2
    %v3819 = vmul.f32 %v3755, 0.2
    %v3820 = vmul.f32 %v3756, 0.2
    %v3821 = vmul.f32 %v3757, 0.2
    %v3822 = vmul.f32 %v3758, 0.2
    %v3823 = vsel %vm3759, %v3727, %v3791
    %v3824 = vsel %vm3760, %v3728, %v3792
    %v3825 = vsel %vm3761, %v3729, %v3793
    %v3826 = vsel %vm3762, %v3730, %v3794
    %v3827 = vsel %vm3763, %v3731, %v3795
    %v3828 = vsel %vm3764, %v3732, %v3796
    %v3829 = vsel %vm3765, %v3733, %v3797
    %v3830 = vsel %vm3766, %v3734, %v3798
    %v3831 = vsel %vm3767, %v3735, %v3799
    %v3832 = vsel %vm3768, %v3736, %v3800
    %v3833 = vsel %vm3769, %v3737, %v3801
    %v3834 = vsel %vm3770, %v3738, %v3802
    %v3835 = vsel %vm3771, %v3739, %v3803
    %v3836 = vsel %vm3772, %v3740, %v3804
    %v3837 = vsel %vm3773, %v3741, %v3805
    %v3838 = vsel %vm3774, %v3742, %v3806
    %v3839 = vsel %vm3775, %v3743, %v3807
    %v3840 = vsel %vm3776, %v3744, %v3808
    %v3841 = vsel %vm3777, %v3745, %v3809
    %v3842 = vsel %vm3778, %v3746, %v3810
    %v3843 = vsel %vm3779, %v3747, %v3811
    %v3844 = vsel %vm3780, %v3748, %v3812
    %v3845 = vsel %vm3781, %v3749, %v3813
    %v3846 = vsel %vm3782, %v3750, %v3814
    %v3847 = vsel %vm3783, %v3751, %v3815
    %v3848 = vsel %vm3784, %v3752, %v3816
    %v3849 = vsel %vm3785, %v3753, %v3817
    %v3850 = vsel %vm3786, %v3754, %v3818
    %v3851 = vsel %vm3787, %v3755, %v3819
    %v3852 = vsel %vm3788, %v3756, %v3820
    %v3853 = vsel %vm3789, %v3757, %v3821
    %v3854 = vsel %vm3790, %v3758, %v3822
    %v3855 = vlaneseq
    %v3856 = vshrl.u32 %v3855, 7
    %v3857 = vsub.s32 2, %v3856
    %v3858 = vrot.slane %v83, %v3857
    %v3859 = vmul.f32 %v3823, %v3858
    %v3860 = vmul.f32 %v3824, %v3858
    %v3861 = vmul.f32 %v3825, %v3858
    %v3862 = vmul.f32 %v3826, %v3858
    %v3863 = vmul.f32 %v3827, %v3858
    %v3864 = vmul.f32 %v3828, %v3858
    %v3865 = vmul.f32 %v3829, %v3858
    %v3866 = vmul.f32 %v3830, %v3858
    %v3867 = vmul.f32 %v3831, %v3858
    %v3868 = vmul.f32 %v3832, %v3858
    %v3869 = vmul.f32 %v3833, %v3858
    %v3870 = vmul.f32 %v3834, %v3858
    %v3871 = vmul.f32 %v3835, %v3858
    %v3872 = vmul.f32 %v3836, %v3858
    %v3873 = vmul.f32 %v3837, %v3858
    %v3874 = vmul.f32 %v3838, %v3858
    %v3875 = vmul.f32 %v3839, %v3858
    %v3876 = vmul.f32 %v3840, %v3858
    %v3877 = vmul.f32 %v3841, %v3858
    %v3878 = vmul.f32 %v3842, %v3858
    %v3879 = vmul.f32 %v3843, %v3858
    %v3880 = vmul.f32 %v3844, %v3858
    %v3881 = vmul.f32 %v3845, %v3858
    %v3882 = vmul.f32 %v3846, %v3858
    %v3883 = vmul.f32 %v3847, %v3858
    %v3884 = vmul.f32 %v3848, %v3858
    %v3885 = vmul.f32 %v3849, %v3858
    %v3886 = vmul.f32 %v3850, %v3858
    %v3887 = vmul.f32 %v3851, %v3858
    %v3888 = vmul.f32 %v3852, %v3858
    %v3889 = vmul.f32 %v3853, %v3858
    %v3890 = vmul.f32 %v3854, %v3858
    %3891 = vadd.xlane.f32.xlu0 %v3859
    %v3892 = vpop.xlane.xlu0 %3891
    %3893 = vadd.xlane.f32.xlu0 %v3860
    %v3894 = vpop.xlane.xlu0 %3893
    %3895 = vadd.xlane.f32.xlu0 %v3861
    %v3896 = vpop.xlane.xlu0 %3895
    %3897 = vadd.xlane.f32.xlu0 %v3862
    %v3898 = vpop.xlane.xlu0 %3897
    %3899 = vadd.xlane.f32.xlu0 %v3863
    %v3900 = vpop.xlane.xlu0 %3899
    %3901 = vadd.xlane.f32.xlu0 %v3864
    %v3902 = vpop.xlane.xlu0 %3901
    %3903 = vadd.xlane.f32.xlu0 %v3865
    %v3904 = vpop.xlane.xlu0 %3903
    %3905 = vadd.xlane.f32.xlu0 %v3866
    %v3906 = vpop.xlane.xlu0 %3905
    %3907 = vadd.xlane.f32.xlu0 %v3867
    %v3908 = vpop.xlane.xlu0 %3907
    %3909 = vadd.xlane.f32.xlu0 %v3868
    %v3910 = vpop.xlane.xlu0 %3909
    %3911 = vadd.xlane.f32.xlu0 %v3869
    %v3912 = vpop.xlane.xlu0 %3911
    %3913 = vadd.xlane.f32.xlu0 %v3870
    %v3914 = vpop.xlane.xlu0 %3913
    %3915 = vadd.xlane.f32.xlu0 %v3871
    %v3916 = vpop.xlane.xlu0 %3915
    %3917 = vadd.xlane.f32.xlu0 %v3872
    %v3918 = vpop.xlane.xlu0 %3917
    %3919 = vadd.xlane.f32.xlu0 %v3873
    %v3920 = vpop.xlane.xlu0 %3919
    %3921 = vadd.xlane.f32.xlu0 %v3874
    %v3922 = vpop.xlane.xlu0 %3921
    %3923 = vadd.xlane.f32.xlu0 %v3875
    %v3924 = vpop.xlane.xlu0 %3923
    %3925 = vadd.xlane.f32.xlu0 %v3876
    %v3926 = vpop.xlane.xlu0 %3925
    %3927 = vadd.xlane.f32.xlu0 %v3877
    %v3928 = vpop.xlane.xlu0 %3927
    %3929 = vadd.xlane.f32.xlu0 %v3878
    %v3930 = vpop.xlane.xlu0 %3929
    %3931 = vadd.xlane.f32.xlu0 %v3879
    %v3932 = vpop.xlane.xlu0 %3931
    %3933 = vadd.xlane.f32.xlu0 %v3880
    %v3934 = vpop.xlane.xlu0 %3933
    %3935 = vadd.xlane.f32.xlu0 %v3881
    %v3936 = vpop.xlane.xlu0 %3935
    %3937 = vadd.xlane.f32.xlu0 %v3882
    %v3938 = vpop.xlane.xlu0 %3937
    %3939 = vadd.xlane.f32.xlu0 %v3883
    %v3940 = vpop.xlane.xlu0 %3939
    %3941 = vadd.xlane.f32.xlu0 %v3884
    %v3942 = vpop.xlane.xlu0 %3941
    %3943 = vadd.xlane.f32.xlu0 %v3885
    %v3944 = vpop.xlane.xlu0 %3943
    %3945 = vadd.xlane.f32.xlu0 %v3886
    %v3946 = vpop.xlane.xlu0 %3945
    %3947 = vadd.xlane.f32.xlu0 %v3887
    %v3948 = vpop.xlane.xlu0 %3947
    %3949 = vadd.xlane.f32.xlu0 %v3888
    %v3950 = vpop.xlane.xlu0 %3949
    %3951 = vadd.xlane.f32.xlu0 %v3889
    %v3952 = vpop.xlane.xlu0 %3951
    %3953 = vadd.xlane.f32.xlu0 %v3890
    %v3954 = vpop.xlane.xlu0 %3953
    %v3955 = vadd.f32 %v3892, %v1559
    %v3956 = vadd.f32 %v3894, %v1563
    %v3957 = vadd.f32 %v3896, %v1570
    %v3958 = vadd.f32 %v3898, %v1574
    %v3959 = vadd.f32 %v3900, %v1581
    %v3960 = vadd.f32 %v3902, %v1585
    %v3961 = vadd.f32 %v3904, %v1592
    %v3962 = vadd.f32 %v3906, %v1596
    %v3963 = vadd.f32 %v3908, %v1603
    %v3964 = vadd.f32 %v3910, %v1607
    %v3965 = vadd.f32 %v3912, %v1614
    %v3966 = vadd.f32 %v3914, %v1618
    %v3967 = vadd.f32 %v3916, %v1625
    %v3968 = vadd.f32 %v3918, %v1629
    %v3969 = vadd.f32 %v3920, %v1636
    %v3970 = vadd.f32 %v3922, %v1640
    %v3971 = vadd.f32 %v3924, %v1647
    %v3972 = vadd.f32 %v3926, %v1651
    %v3973 = vadd.f32 %v3928, %v1658
    %v3974 = vadd.f32 %v3930, %v1662
    %v3975 = vadd.f32 %v3932, %v1669
    %v3976 = vadd.f32 %v3934, %v1673
    %v3977 = vadd.f32 %v3936, %v1680
    %v3978 = vadd.f32 %v3938, %v1684
    %v3979 = vadd.f32 %v3940, %v1691
    %v3980 = vadd.f32 %v3942, %v1695
    %v3981 = vadd.f32 %v3944, %v1702
    %v3982 = vadd.f32 %v3946, %v1706
    %v3983 = vadd.f32 %v3948, %v1713
    %v3984 = vadd.f32 %v3950, %v1717
    %v3985 = vadd.f32 %v3952, %v1724
    %v3986 = vadd.f32 %v3954, %v1728
    %4019 = vset.pattern.permute.xlu0 0
    %4020 = vperm.xlu0 %4019, %v3955
    %v4021 = vpop.permute.xlu0 %4020
    %4022 = vset.pattern.permute.xlu0 0
    %4023 = vperm.xlu0 %4022, %v3956
    %v4024 = vpop.permute.xlu0 %4023
    %4025 = vset.pattern.permute.xlu0 0
    %4026 = vperm.xlu0 %4025, %v3957
    %v4027 = vpop.permute.xlu0 %4026
    %4028 = vset.pattern.permute.xlu0 0
    %4029 = vperm.xlu0 %4028, %v3958
    %v4030 = vpop.permute.xlu0 %4029
    %4031 = vset.pattern.permute.xlu0 0
    %4032 = vperm.xlu0 %4031, %v3959
    %v4033 = vpop.permute.xlu0 %4032
    %4034 = vset.pattern.permute.xlu0 0
    %4035 = vperm.xlu0 %4034, %v3960
    %v4036 = vpop.permute.xlu0 %4035
    %4037 = vset.pattern.permute.xlu0 0
    %4038 = vperm.xlu0 %4037, %v3961
    %v4039 = vpop.permute.xlu0 %4038
    %4040 = vset.pattern.permute.xlu0 0
    %4041 = vperm.xlu0 %4040, %v3962
    %v4042 = vpop.permute.xlu0 %4041
    %4043 = vset.pattern.permute.xlu0 0
    %4044 = vperm.xlu0 %4043, %v3963
    %v4045 = vpop.permute.xlu0 %4044
    %4046 = vset.pattern.permute.xlu0 0
    %4047 = vperm.xlu0 %4046, %v3964
    %v4048 = vpop.permute.xlu0 %4047
    %4049 = vset.pattern.permute.xlu0 0
    %4050 = vperm.xlu0 %4049, %v3965
    %v4051 = vpop.permute.xlu0 %4050
    %4052 = vset.pattern.permute.xlu0 0
    %4053 = vperm.xlu0 %4052, %v3966
    %v4054 = vpop.permute.xlu0 %4053
    %4055 = vset.pattern.permute.xlu0 0
    %4056 = vperm.xlu0 %4055, %v3967
    %v4057 = vpop.permute.xlu0 %4056
    %4058 = vset.pattern.permute.xlu0 0
    %4059 = vperm.xlu0 %4058, %v3968
    %v4060 = vpop.permute.xlu0 %4059
    %4061 = vset.pattern.permute.xlu0 0
    %4062 = vperm.xlu0 %4061, %v3969
    %v4063 = vpop.permute.xlu0 %4062
    %4064 = vset.pattern.permute.xlu0 0
    %4065 = vperm.xlu0 %4064, %v3970
    %v4066 = vpop.permute.xlu0 %4065
    %4067 = vset.pattern.permute.xlu0 0
    %4068 = vperm.xlu0 %4067, %v3971
    %v4069 = vpop.permute.xlu0 %4068
    %4070 = vset.pattern.permute.xlu0 0
    %4071 = vperm.xlu0 %4070, %v3972
    %v4072 = vpop.permute.xlu0 %4071
    %4073 = vset.pattern.permute.xlu0 0
    %4074 = vperm.xlu0 %4073, %v3973
    %v4075 = vpop.permute.xlu0 %4074
    %4076 = vset.pattern.permute.xlu0 0
    %4077 = vperm.xlu0 %4076, %v3974
    %v4078 = vpop.permute.xlu0 %4077
    %4079 = vset.pattern.permute.xlu0 0
    %4080 = vperm.xlu0 %4079, %v3975
    %v4081 = vpop.permute.xlu0 %4080
    %4082 = vset.pattern.permute.xlu0 0
    %4083 = vperm.xlu0 %4082, %v3976
    %v4084 = vpop.permute.xlu0 %4083
    %4085 = vset.pattern.permute.xlu0 0
    %4086 = vperm.xlu0 %4085, %v3977
    %v4087 = vpop.permute.xlu0 %4086
    %4088 = vset.pattern.permute.xlu0 0
    %4089 = vperm.xlu0 %4088, %v3978
    %v4090 = vpop.permute.xlu0 %4089
    %4091 = vset.pattern.permute.xlu0 0
    %4092 = vperm.xlu0 %4091, %v3979
    %v4093 = vpop.permute.xlu0 %4092
    %4094 = vset.pattern.permute.xlu0 0
    %4095 = vperm.xlu0 %4094, %v3980
    %v4096 = vpop.permute.xlu0 %4095
    %4097 = vset.pattern.permute.xlu0 0
    %4098 = vperm.xlu0 %4097, %v3981
    %v4099 = vpop.permute.xlu0 %4098
    %4100 = vset.pattern.permute.xlu0 0
    %4101 = vperm.xlu0 %4100, %v3982
    %v4102 = vpop.permute.xlu0 %4101
    %4103 = vset.pattern.permute.xlu0 0
    %4104 = vperm.xlu0 %4103, %v3983
    %v4105 = vpop.permute.xlu0 %4104
    %4106 = vset.pattern.permute.xlu0 0
    %4107 = vperm.xlu0 %4106, %v3984
    %v4108 = vpop.permute.xlu0 %4107
    %4109 = vset.pattern.permute.xlu0 0
    %4110 = vperm.xlu0 %4109, %v3985
    %v4111 = vpop.permute.xlu0 %4110
    %4112 = vset.pattern.permute.xlu0 0
    %4113 = vperm.xlu0 %4112, %v3986
    %v4114 = vpop.permute.xlu0 %4113
    %v4115 = vlaneseq
    %v4116 = vshrl.u32 %v4115, 7
    %v4117 = vsub.s32 %v1922, %v4116
    %v4118 = vrot.slane %v4021, %v4117
    %v4119 = vlaneseq
    %v4120 = vshrl.u32 %v4119, 7
    %v4121 = vsub.s32 %v1927, %v4120
    %v4122 = vrot.slane %v4024, %v4121
    %v4123 = vsel %vm1932, %v4122, %v4118
    %v4124 = vlaneseq
    %v4125 = vshrl.u32 %v4124, 7
    %v4126 = vsub.s32 %v1922, %v4125
    %v4127 = vrot.slane %v4027, %v4126
    %v4128 = vlaneseq
    %v4129 = vshrl.u32 %v4128, 7
    %v4130 = vsub.s32 %v1927, %v4129
    %v4131 = vrot.slane %v4030, %v4130
    %v4132 = vsel %vm1932, %v4131, %v4127
    %v4133 = vlaneseq
    %v4134 = vshrl.u32 %v4133, 7
    %v4135 = vsub.s32 %v1922, %v4134
    %v4136 = vrot.slane %v4033, %v4135
    %v4137 = vlaneseq
    %v4138 = vshrl.u32 %v4137, 7
    %v4139 = vsub.s32 %v1927, %v4138
    %v4140 = vrot.slane %v4036, %v4139
    %v4141 = vsel %vm1932, %v4140, %v4136
    %v4142 = vlaneseq
    %v4143 = vshrl.u32 %v4142, 7
    %v4144 = vsub.s32 %v1922, %v4143
    %v4145 = vrot.slane %v4039, %v4144
    %v4146 = vlaneseq
    %v4147 = vshrl.u32 %v4146, 7
    %v4148 = vsub.s32 %v1927, %v4147
    %v4149 = vrot.slane %v4042, %v4148
    %v4150 = vsel %vm1932, %v4149, %v4145
    %v4151 = vlaneseq
    %v4152 = vshrl.u32 %v4151, 7
    %v4153 = vsub.s32 %v1922, %v4152
    %v4154 = vrot.slane %v4045, %v4153
    %v4155 = vlaneseq
    %v4156 = vshrl.u32 %v4155, 7
    %v4157 = vsub.s32 %v1927, %v4156
    %v4158 = vrot.slane %v4048, %v4157
    %v4159 = vsel %vm1932, %v4158, %v4154
    %v4160 = vlaneseq
    %v4161 = vshrl.u32 %v4160, 7
    %v4162 = vsub.s32 %v1922, %v4161
    %v4163 = vrot.slane %v4051, %v4162
    %v4164 = vlaneseq
    %v4165 = vshrl.u32 %v4164, 7
    %v4166 = vsub.s32 %v1927, %v4165
    %v4167 = vrot.slane %v4054, %v4166
    %v4168 = vsel %vm1932, %v4167, %v4163
    %v4169 = vlaneseq
    %v4170 = vshrl.u32 %v4169, 7
    %v4171 = vsub.s32 %v1922, %v4170
    %v4172 = vrot.slane %v4057, %v4171
    %v4173 = vlaneseq
    %v4174 = vshrl.u32 %v4173, 7
    %v4175 = vsub.s32 %v1927, %v4174
    %v4176 = vrot.slane %v4060, %v4175
    %v4177 = vsel %vm1932, %v4176, %v4172
    %v4178 = vlaneseq
    %v4179 = vshrl.u32 %v4178, 7
    %v4180 = vsub.s32 %v1922, %v4179
    %v4181 = vrot.slane %v4063, %v4180
    %v4182 = vlaneseq
    %v4183 = vshrl.u32 %v4182, 7
    %v4184 = vsub.s32 %v1927, %v4183
    %v4185 = vrot.slane %v4066, %v4184
    %v4186 = vsel %vm1932, %v4185, %v4181
    %v4187 = vlaneseq
    %v4188 = vshrl.u32 %v4187, 7
    %v4189 = vsub.s32 %v1922, %v4188
    %v4190 = vrot.slane %v4069, %v4189
    %v4191 = vlaneseq
    %v4192 = vshrl.u32 %v4191, 7
    %v4193 = vsub.s32 %v1927, %v4192
    %v4194 = vrot.slane %v4072, %v4193
    %v4195 = vsel %vm1932, %v4194, %v4190
    %v4196 = vlaneseq
    %v4197 = vshrl.u32 %v4196, 7
    %v4198 = vsub.s32 %v1922, %v4197
    %v4199 = vrot.slane %v4075, %v4198
    %v4200 = vlaneseq
    %v4201 = vshrl.u32 %v4200, 7
    %v4202 = vsub.s32 %v1927, %v4201
    %v4203 = vrot.slane %v4078, %v4202
    %v4204 = vsel %vm1932, %v4203, %v4199
    %v4205 = vlaneseq
    %v4206 = vshrl.u32 %v4205, 7
    %v4207 = vsub.s32 %v1922, %v4206
    %v4208 = vrot.slane %v4081, %v4207
    %v4209 = vlaneseq
    %v4210 = vshrl.u32 %v4209, 7
    %v4211 = vsub.s32 %v1927, %v4210
    %v4212 = vrot.slane %v4084, %v4211
    %v4213 = vsel %vm1932, %v4212, %v4208
    %v4214 = vlaneseq
    %v4215 = vshrl.u32 %v4214, 7
    %v4216 = vsub.s32 %v1922, %v4215
    %v4217 = vrot.slane %v4087, %v4216
    %v4218 = vlaneseq
    %v4219 = vshrl.u32 %v4218, 7
    %v4220 = vsub.s32 %v1927, %v4219
    %v4221 = vrot.slane %v4090, %v4220
    %v4222 = vsel %vm1932, %v4221, %v4217
    %v4223 = vlaneseq
    %v4224 = vshrl.u32 %v4223, 7
    %v4225 = vsub.s32 %v1922, %v4224
    %v4226 = vrot.slane %v4093, %v4225
    %v4227 = vlaneseq
    %v4228 = vshrl.u32 %v4227, 7
    %v4229 = vsub.s32 %v1927, %v4228
    %v4230 = vrot.slane %v4096, %v4229
    %v4231 = vsel %vm1932, %v4230, %v4226
    %v4232 = vlaneseq
    %v4233 = vshrl.u32 %v4232, 7
    %v4234 = vsub.s32 %v1922, %v4233
    %v4235 = vrot.slane %v4099, %v4234
    %v4236 = vlaneseq
    %v4237 = vshrl.u32 %v4236, 7
    %v4238 = vsub.s32 %v1927, %v4237
    %v4239 = vrot.slane %v4102, %v4238
    %v4240 = vsel %vm1932, %v4239, %v4235
    %v4241 = vlaneseq
    %v4242 = vshrl.u32 %v4241, 7
    %v4243 = vsub.s32 %v1922, %v4242
    %v4244 = vrot.slane %v4105, %v4243
    %v4245 = vlaneseq
    %v4246 = vshrl.u32 %v4245, 7
    %v4247 = vsub.s32 %v1927, %v4246
    %v4248 = vrot.slane %v4108, %v4247
    %v4249 = vsel %vm1932, %v4248, %v4244
    %v4250 = vlaneseq
    %v4251 = vshrl.u32 %v4250, 7
    %v4252 = vsub.s32 %v1922, %v4251
    %v4253 = vrot.slane %v4111, %v4252
    %v4254 = vlaneseq
    %v4255 = vshrl.u32 %v4254, 7
    %v4256 = vsub.s32 %v1927, %v4255
    %v4257 = vrot.slane %v4114, %v4256
    %v4258 = vsel %vm1932, %v4257, %v4253
    %v4259 = vsel %vm2069, %v4132, %v4123
    %v4260 = vsel %vm2071, %v4141, %v4259
    %v4261 = vsel %vm2073, %v4150, %v4260
    %v4262 = vsel %vm2075, %v4159, %v4261
    %v4263 = vsel %vm2077, %v4168, %v4262
    %v4264 = vsel %vm2079, %v4177, %v4263
    %v4265 = vsel %vm2081, %v4186, %v4264
    %v4266 = vsel %vm2069, %v4204, %v4195
    %v4267 = vsel %vm2071, %v4213, %v4266
    %v4268 = vsel %vm2073, %v4222, %v4267
    %v4269 = vsel %vm2075, %v4231, %v4268
    %v4270 = vsel %vm2077, %v4240, %v4269
    %v4271 = vsel %vm2079, %v4249, %v4270
    %v4272 = vsel %vm2081, %v4258, %v4271
    %v4275 = vsel %vm2092, %v4265, -inf
    %4276 = vmax.xlane.f32.xlu0 %v4275
    %v4277 = vpop.xlane.xlu0 %4276
    %v4278 = vsel %vm2092, %v4272, -inf
    %4279 = vmax.xlane.f32.xlu0 %v4278
    %v4280 = vpop.xlane.xlu0 %4279
    %v4283 = vlaneseq
    %v4284 = vshrl.u32 %v4283, 7
    %v4285 = vsub.s32 0, %v4284
    %v4286 = vrot.slane %v4277, %v4285
    %v4287 = vlaneseq
    %v4288 = vshrl.u32 %v4287, 7
    %v4289 = vsub.s32 1, %v4288
    %v4290 = vrot.slane %v4277, %v4289
    %v4291 = vlaneseq
    %v4292 = vshrl.u32 %v4291, 7
    %v4293 = vsub.s32 2, %v4292
    %v4294 = vrot.slane %v4277, %v4293
    %v4295 = vlaneseq
    %v4296 = vshrl.u32 %v4295, 7
    %v4297 = vsub.s32 3, %v4296
    %v4298 = vrot.slane %v4277, %v4297
    %v4299 = vlaneseq
    %v4300 = vshrl.u32 %v4299, 7
    %v4301 = vsub.s32 4, %v4300
    %v4302 = vrot.slane %v4277, %v4301
    %v4303 = vlaneseq
    %v4304 = vshrl.u32 %v4303, 7
    %v4305 = vsub.s32 5, %v4304
    %v4306 = vrot.slane %v4277, %v4305
    %v4307 = vlaneseq
    %v4308 = vshrl.u32 %v4307, 7
    %v4309 = vsub.s32 6, %v4308
    %v4310 = vrot.slane %v4277, %v4309
    %v4311 = vlaneseq
    %v4312 = vshrl.u32 %v4311, 7
    %v4313 = vsub.s32 7, %v4312
    %v4314 = vrot.slane %v4277, %v4313
    %v4315 = vlaneseq
    %v4316 = vshrl.u32 %v4315, 7
    %v4317 = vsub.s32 0, %v4316
    %v4318 = vrot.slane %v4280, %v4317
    %v4319 = vlaneseq
    %v4320 = vshrl.u32 %v4319, 7
    %v4321 = vsub.s32 1, %v4320
    %v4322 = vrot.slane %v4280, %v4321
    %v4323 = vlaneseq
    %v4324 = vshrl.u32 %v4323, 7
    %v4325 = vsub.s32 2, %v4324
    %v4326 = vrot.slane %v4280, %v4325
    %v4327 = vlaneseq
    %v4328 = vshrl.u32 %v4327, 7
    %v4329 = vsub.s32 3, %v4328
    %v4330 = vrot.slane %v4280, %v4329
    %v4331 = vlaneseq
    %v4332 = vshrl.u32 %v4331, 7
    %v4333 = vsub.s32 4, %v4332
    %v4334 = vrot.slane %v4280, %v4333
    %v4335 = vlaneseq
    %v4336 = vshrl.u32 %v4335, 7
    %v4337 = vsub.s32 5, %v4336
    %v4338 = vrot.slane %v4280, %v4337
    %v4339 = vlaneseq
    %v4340 = vshrl.u32 %v4339, 7
    %v4341 = vsub.s32 6, %v4340
    %v4342 = vrot.slane %v4280, %v4341
    %v4343 = vlaneseq
    %v4344 = vshrl.u32 %v4343, 7
    %v4345 = vsub.s32 7, %v4344
    %v4346 = vrot.slane %v4280, %v4345
    %v4363 = vsub.f32 %v3955, %v4286
    %v4364 = vsub.f32 %v3956, %v4286
    %v4365 = vsub.f32 %v3957, %v4290
    %v4366 = vsub.f32 %v3958, %v4290
    %v4367 = vsub.f32 %v3959, %v4294
    %v4368 = vsub.f32 %v3960, %v4294
    %v4369 = vsub.f32 %v3961, %v4298
    %v4370 = vsub.f32 %v3962, %v4298
    %v4371 = vsub.f32 %v3963, %v4302
    %v4372 = vsub.f32 %v3964, %v4302
    %v4373 = vsub.f32 %v3965, %v4306
    %v4374 = vsub.f32 %v3966, %v4306
    %v4375 = vsub.f32 %v3967, %v4310
    %v4376 = vsub.f32 %v3968, %v4310
    %v4377 = vsub.f32 %v3969, %v4314
    %v4378 = vsub.f32 %v3970, %v4314
    %v4379 = vsub.f32 %v3971, %v4318
    %v4380 = vsub.f32 %v3972, %v4318
    %v4381 = vsub.f32 %v3973, %v4322
    %v4382 = vsub.f32 %v3974, %v4322
    %v4383 = vsub.f32 %v3975, %v4326
    %v4384 = vsub.f32 %v3976, %v4326
    %v4385 = vsub.f32 %v3977, %v4330
    %v4386 = vsub.f32 %v3978, %v4330
    %v4387 = vsub.f32 %v3979, %v4334
    %v4388 = vsub.f32 %v3980, %v4334
    %v4389 = vsub.f32 %v3981, %v4338
    %v4390 = vsub.f32 %v3982, %v4338
    %v4391 = vsub.f32 %v3983, %v4342
    %v4392 = vsub.f32 %v3984, %v4342
    %v4393 = vsub.f32 %v3985, %v4346
    %v4394 = vsub.f32 %v3986, %v4346
    %v4395 = vmul.f32 %v4363, 1.442695
    %v4396 = vpow.pop %v4395
    %v4397 = vmul.f32 %v4364, 1.442695
    %v4398 = vpow.pop %v4397
    %v4399 = vmul.f32 %v4365, 1.442695
    %v4400 = vpow.pop %v4399
    %v4401 = vmul.f32 %v4366, 1.442695
    %v4402 = vpow.pop %v4401
    %v4403 = vmul.f32 %v4367, 1.442695
    %v4404 = vpow.pop %v4403
    %v4405 = vmul.f32 %v4368, 1.442695
    %v4406 = vpow.pop %v4405
    %v4407 = vmul.f32 %v4369, 1.442695
    %v4408 = vpow.pop %v4407
    %v4409 = vmul.f32 %v4370, 1.442695
    %v4410 = vpow.pop %v4409
    %v4411 = vmul.f32 %v4371, 1.442695
    %v4412 = vpow.pop %v4411
    %v4413 = vmul.f32 %v4372, 1.442695
    %v4414 = vpow.pop %v4413
    %v4415 = vmul.f32 %v4373, 1.442695
    %v4416 = vpow.pop %v4415
    %v4417 = vmul.f32 %v4374, 1.442695
    %v4418 = vpow.pop %v4417
    %v4419 = vmul.f32 %v4375, 1.442695
    %v4420 = vpow.pop %v4419
    %v4421 = vmul.f32 %v4376, 1.442695
    %v4422 = vpow.pop %v4421
    %v4423 = vmul.f32 %v4377, 1.442695
    %v4424 = vpow.pop %v4423
    %v4425 = vmul.f32 %v4378, 1.442695
    %v4426 = vpow.pop %v4425
    %v4427 = vmul.f32 %v4379, 1.442695
    %v4428 = vpow.pop %v4427
    %v4429 = vmul.f32 %v4380, 1.442695
    %v4430 = vpow.pop %v4429
    %v4431 = vmul.f32 %v4381, 1.442695
    %v4432 = vpow.pop %v4431
    %v4433 = vmul.f32 %v4382, 1.442695
    %v4434 = vpow.pop %v4433
    %v4435 = vmul.f32 %v4383, 1.442695
    %v4436 = vpow.pop %v4435
    %v4437 = vmul.f32 %v4384, 1.442695
    %v4438 = vpow.pop %v4437
    %v4439 = vmul.f32 %v4385, 1.442695
    %v4440 = vpow.pop %v4439
    %v4441 = vmul.f32 %v4386, 1.442695
    %v4442 = vpow.pop %v4441
    %v4443 = vmul.f32 %v4387, 1.442695
    %v4444 = vpow.pop %v4443
    %v4445 = vmul.f32 %v4388, 1.442695
    %v4446 = vpow.pop %v4445
    %v4447 = vmul.f32 %v4389, 1.442695
    %v4448 = vpow.pop %v4447
    %v4449 = vmul.f32 %v4390, 1.442695
    %v4450 = vpow.pop %v4449
    %v4451 = vmul.f32 %v4391, 1.442695
    %v4452 = vpow.pop %v4451
    %v4453 = vmul.f32 %v4392, 1.442695
    %v4454 = vpow.pop %v4453
    %v4455 = vmul.f32 %v4393, 1.442695
    %v4456 = vpow.pop %v4455
    %v4457 = vmul.f32 %v4394, 1.442695
    %v4458 = vpow.pop %v4457
    %4491 = vset.pattern.permute.xlu0 0
    %4492 = vperm.xlu0 %4491, %v4396
    %v4493 = vpop.permute.xlu0 %4492
    %4494 = vset.pattern.permute.xlu0 0
    %4495 = vperm.xlu0 %4494, %v4398
    %v4496 = vpop.permute.xlu0 %4495
    %4497 = vset.pattern.permute.xlu0 0
    %4498 = vperm.xlu0 %4497, %v4400
    %v4499 = vpop.permute.xlu0 %4498
    %4500 = vset.pattern.permute.xlu0 0
    %4501 = vperm.xlu0 %4500, %v4402
    %v4502 = vpop.permute.xlu0 %4501
    %4503 = vset.pattern.permute.xlu0 0
    %4504 = vperm.xlu0 %4503, %v4404
    %v4505 = vpop.permute.xlu0 %4504
    %4506 = vset.pattern.permute.xlu0 0
    %4507 = vperm.xlu0 %4506, %v4406
    %v4508 = vpop.permute.xlu0 %4507
    %4509 = vset.pattern.permute.xlu0 0
    %4510 = vperm.xlu0 %4509, %v4408
    %v4511 = vpop.permute.xlu0 %4510
    %4512 = vset.pattern.permute.xlu0 0
    %4513 = vperm.xlu0 %4512, %v4410
    %v4514 = vpop.permute.xlu0 %4513
    %4515 = vset.pattern.permute.xlu0 0
    %4516 = vperm.xlu0 %4515, %v4412
    %v4517 = vpop.permute.xlu0 %4516
    %4518 = vset.pattern.permute.xlu0 0
    %4519 = vperm.xlu0 %4518, %v4414
    %v4520 = vpop.permute.xlu0 %4519
    %4521 = vset.pattern.permute.xlu0 0
    %4522 = vperm.xlu0 %4521, %v4416
    %v4523 = vpop.permute.xlu0 %4522
    %4524 = vset.pattern.permute.xlu0 0
    %4525 = vperm.xlu0 %4524, %v4418
    %v4526 = vpop.permute.xlu0 %4525
    %4527 = vset.pattern.permute.xlu0 0
    %4528 = vperm.xlu0 %4527, %v4420
    %v4529 = vpop.permute.xlu0 %4528
    %4530 = vset.pattern.permute.xlu0 0
    %4531 = vperm.xlu0 %4530, %v4422
    %v4532 = vpop.permute.xlu0 %4531
    %4533 = vset.pattern.permute.xlu0 0
    %4534 = vperm.xlu0 %4533, %v4424
    %v4535 = vpop.permute.xlu0 %4534
    %4536 = vset.pattern.permute.xlu0 0
    %4537 = vperm.xlu0 %4536, %v4426
    %v4538 = vpop.permute.xlu0 %4537
    %4539 = vset.pattern.permute.xlu0 0
    %4540 = vperm.xlu0 %4539, %v4428
    %v4541 = vpop.permute.xlu0 %4540
    %4542 = vset.pattern.permute.xlu0 0
    %4543 = vperm.xlu0 %4542, %v4430
    %v4544 = vpop.permute.xlu0 %4543
    %4545 = vset.pattern.permute.xlu0 0
    %4546 = vperm.xlu0 %4545, %v4432
    %v4547 = vpop.permute.xlu0 %4546
    %4548 = vset.pattern.permute.xlu0 0
    %4549 = vperm.xlu0 %4548, %v4434
    %v4550 = vpop.permute.xlu0 %4549
    %4551 = vset.pattern.permute.xlu0 0
    %4552 = vperm.xlu0 %4551, %v4436
    %v4553 = vpop.permute.xlu0 %4552
    %4554 = vset.pattern.permute.xlu0 0
    %4555 = vperm.xlu0 %4554, %v4438
    %v4556 = vpop.permute.xlu0 %4555
    %4557 = vset.pattern.permute.xlu0 0
    %4558 = vperm.xlu0 %4557, %v4440
    %v4559 = vpop.permute.xlu0 %4558
    %4560 = vset.pattern.permute.xlu0 0
    %4561 = vperm.xlu0 %4560, %v4442
    %v4562 = vpop.permute.xlu0 %4561
    %4563 = vset.pattern.permute.xlu0 0
    %4564 = vperm.xlu0 %4563, %v4444
    %v4565 = vpop.permute.xlu0 %4564
    %4566 = vset.pattern.permute.xlu0 0
    %4567 = vperm.xlu0 %4566, %v4446
    %v4568 = vpop.permute.xlu0 %4567
    %4569 = vset.pattern.permute.xlu0 0
    %4570 = vperm.xlu0 %4569, %v4448
    %v4571 = vpop.permute.xlu0 %4570
    %4572 = vset.pattern.permute.xlu0 0
    %4573 = vperm.xlu0 %4572, %v4450
    %v4574 = vpop.permute.xlu0 %4573
    %4575 = vset.pattern.permute.xlu0 0
    %4576 = vperm.xlu0 %4575, %v4452
    %v4577 = vpop.permute.xlu0 %4576
    %4578 = vset.pattern.permute.xlu0 0
    %4579 = vperm.xlu0 %4578, %v4454
    %v4580 = vpop.permute.xlu0 %4579
    %4581 = vset.pattern.permute.xlu0 0
    %4582 = vperm.xlu0 %4581, %v4456
    %v4583 = vpop.permute.xlu0 %4582
    %4584 = vset.pattern.permute.xlu0 0
    %4585 = vperm.xlu0 %4584, %v4458
    %v4586 = vpop.permute.xlu0 %4585
    %v4587 = vlaneseq
    %v4588 = vshrl.u32 %v4587, 7
    %v4589 = vsub.s32 %v1922, %v4588
    %v4590 = vrot.slane %v4493, %v4589
    %v4591 = vlaneseq
    %v4592 = vshrl.u32 %v4591, 7
    %v4593 = vsub.s32 %v1927, %v4592
    %v4594 = vrot.slane %v4496, %v4593
    %v4595 = vsel %vm1932, %v4594, %v4590
    %v4596 = vlaneseq
    %v4597 = vshrl.u32 %v4596, 7
    %v4598 = vsub.s32 %v1922, %v4597
    %v4599 = vrot.slane %v4499, %v4598
    %v4600 = vlaneseq
    %v4601 = vshrl.u32 %v4600, 7
    %v4602 = vsub.s32 %v1927, %v4601
    %v4603 = vrot.slane %v4502, %v4602
    %v4604 = vsel %vm1932, %v4603, %v4599
    %v4605 = vlaneseq
    %v4606 = vshrl.u32 %v4605, 7
    %v4607 = vsub.s32 %v1922, %v4606
    %v4608 = vrot.slane %v4505, %v4607
    %v4609 = vlaneseq
    %v4610 = vshrl.u32 %v4609, 7
    %v4611 = vsub.s32 %v1927, %v4610
    %v4612 = vrot.slane %v4508, %v4611
    %v4613 = vsel %vm1932, %v4612, %v4608
    %v4614 = vlaneseq
    %v4615 = vshrl.u32 %v4614, 7
    %v4616 = vsub.s32 %v1922, %v4615
    %v4617 = vrot.slane %v4511, %v4616
    %v4618 = vlaneseq
    %v4619 = vshrl.u32 %v4618, 7
    %v4620 = vsub.s32 %v1927, %v4619
    %v4621 = vrot.slane %v4514, %v4620
    %v4622 = vsel %vm1932, %v4621, %v4617
    %v4623 = vlaneseq
    %v4624 = vshrl.u32 %v4623, 7
    %v4625 = vsub.s32 %v1922, %v4624
    %v4626 = vrot.slane %v4517, %v4625
    %v4627 = vlaneseq
    %v4628 = vshrl.u32 %v4627, 7
    %v4629 = vsub.s32 %v1927, %v4628
    %v4630 = vrot.slane %v4520, %v4629
    %v4631 = vsel %vm1932, %v4630, %v4626
    %v4632 = vlaneseq
    %v4633 = vshrl.u32 %v4632, 7
    %v4634 = vsub.s32 %v1922, %v4633
    %v4635 = vrot.slane %v4523, %v4634
    %v4636 = vlaneseq
    %v4637 = vshrl.u32 %v4636, 7
    %v4638 = vsub.s32 %v1927, %v4637
    %v4639 = vrot.slane %v4526, %v4638
    %v4640 = vsel %vm1932, %v4639, %v4635
    %v4641 = vlaneseq
    %v4642 = vshrl.u32 %v4641, 7
    %v4643 = vsub.s32 %v1922, %v4642
    %v4644 = vrot.slane %v4529, %v4643
    %v4645 = vlaneseq
    %v4646 = vshrl.u32 %v4645, 7
    %v4647 = vsub.s32 %v1927, %v4646
    %v4648 = vrot.slane %v4532, %v4647
    %v4649 = vsel %vm1932, %v4648, %v4644
    %v4650 = vlaneseq
    %v4651 = vshrl.u32 %v4650, 7
    %v4652 = vsub.s32 %v1922, %v4651
    %v4653 = vrot.slane %v4535, %v4652
    %v4654 = vlaneseq
    %v4655 = vshrl.u32 %v4654, 7
    %v4656 = vsub.s32 %v1927, %v4655
    %v4657 = vrot.slane %v4538, %v4656
    %v4658 = vsel %vm1932, %v4657, %v4653
    %v4659 = vlaneseq
    %v4660 = vshrl.u32 %v4659, 7
    %v4661 = vsub.s32 %v1922, %v4660
    %v4662 = vrot.slane %v4541, %v4661
    %v4663 = vlaneseq
    %v4664 = vshrl.u32 %v4663, 7
    %v4665 = vsub.s32 %v1927, %v4664
    %v4666 = vrot.slane %v4544, %v4665
    %v4667 = vsel %vm1932, %v4666, %v4662
    %v4668 = vlaneseq
    %v4669 = vshrl.u32 %v4668, 7
    %v4670 = vsub.s32 %v1922, %v4669
    %v4671 = vrot.slane %v4547, %v4670
    %v4672 = vlaneseq
    %v4673 = vshrl.u32 %v4672, 7
    %v4674 = vsub.s32 %v1927, %v4673
    %v4675 = vrot.slane %v4550, %v4674
    %v4676 = vsel %vm1932, %v4675, %v4671
    %v4677 = vlaneseq
    %v4678 = vshrl.u32 %v4677, 7
    %v4679 = vsub.s32 %v1922, %v4678
    %v4680 = vrot.slane %v4553, %v4679
    %v4681 = vlaneseq
    %v4682 = vshrl.u32 %v4681, 7
    %v4683 = vsub.s32 %v1927, %v4682
    %v4684 = vrot.slane %v4556, %v4683
    %v4685 = vsel %vm1932, %v4684, %v4680
    %v4686 = vlaneseq
    %v4687 = vshrl.u32 %v4686, 7
    %v4688 = vsub.s32 %v1922, %v4687
    %v4689 = vrot.slane %v4559, %v4688
    %v4690 = vlaneseq
    %v4691 = vshrl.u32 %v4690, 7
    %v4692 = vsub.s32 %v1927, %v4691
    %v4693 = vrot.slane %v4562, %v4692
    %v4694 = vsel %vm1932, %v4693, %v4689
    %v4695 = vlaneseq
    %v4696 = vshrl.u32 %v4695, 7
    %v4697 = vsub.s32 %v1922, %v4696
    %v4698 = vrot.slane %v4565, %v4697
    %v4699 = vlaneseq
    %v4700 = vshrl.u32 %v4699, 7
    %v4701 = vsub.s32 %v1927, %v4700
    %v4702 = vrot.slane %v4568, %v4701
    %v4703 = vsel %vm1932, %v4702, %v4698
    %v4704 = vlaneseq
    %v4705 = vshrl.u32 %v4704, 7
    %v4706 = vsub.s32 %v1922, %v4705
    %v4707 = vrot.slane %v4571, %v4706
    %v4708 = vlaneseq
    %v4709 = vshrl.u32 %v4708, 7
    %v4710 = vsub.s32 %v1927, %v4709
    %v4711 = vrot.slane %v4574, %v4710
    %v4712 = vsel %vm1932, %v4711, %v4707
    %v4713 = vlaneseq
    %v4714 = vshrl.u32 %v4713, 7
    %v4715 = vsub.s32 %v1922, %v4714
    %v4716 = vrot.slane %v4577, %v4715
    %v4717 = vlaneseq
    %v4718 = vshrl.u32 %v4717, 7
    %v4719 = vsub.s32 %v1927, %v4718
    %v4720 = vrot.slane %v4580, %v4719
    %v4721 = vsel %vm1932, %v4720, %v4716
    %v4722 = vlaneseq
    %v4723 = vshrl.u32 %v4722, 7
    %v4724 = vsub.s32 %v1922, %v4723
    %v4725 = vrot.slane %v4583, %v4724
    %v4726 = vlaneseq
    %v4727 = vshrl.u32 %v4726, 7
    %v4728 = vsub.s32 %v1927, %v4727
    %v4729 = vrot.slane %v4586, %v4728
    %v4730 = vsel %vm1932, %v4729, %v4725
    %v4731 = vsel %vm2069, %v4604, %v4595
    %v4732 = vsel %vm2071, %v4613, %v4731
    %v4733 = vsel %vm2073, %v4622, %v4732
    %v4734 = vsel %vm2075, %v4631, %v4733
    %v4735 = vsel %vm2077, %v4640, %v4734
    %v4736 = vsel %vm2079, %v4649, %v4735
    %v4737 = vsel %vm2081, %v4658, %v4736
    %v4738 = vsel %vm2069, %v4676, %v4667
    %v4739 = vsel %vm2071, %v4685, %v4738
    %v4740 = vsel %vm2073, %v4694, %v4739
    %v4741 = vsel %vm2075, %v4703, %v4740
    %v4742 = vsel %vm2077, %v4712, %v4741
    %v4743 = vsel %vm2079, %v4721, %v4742
    %v4744 = vsel %vm2081, %v4730, %v4743
    %v4747 = vsel %vm2092, %v4737, 0.0
    %4748 = vadd.xlane.f32.xlu0 %v4747
    %v4749 = vpop.xlane.xlu0 %4748
    %v4750 = vsel %vm2092, %v4744, 0.0
    %4751 = vadd.xlane.f32.xlu0 %v4750
    %v4752 = vpop.xlane.xlu0 %4751
    %v4753 = vrcp.pop %v4749
    %v4754 = vrcp.pop %v4752
    %v4757 = vlaneseq
    %v4758 = vshrl.u32 %v4757, 7
    %v4759 = vsub.s32 0, %v4758
    %v4760 = vrot.slane %v4753, %v4759
    %v4761 = vlaneseq
    %v4762 = vshrl.u32 %v4761, 7
    %v4763 = vsub.s32 1, %v4762
    %v4764 = vrot.slane %v4753, %v4763
    %v4765 = vlaneseq
    %v4766 = vshrl.u32 %v4765, 7
    %v4767 = vsub.s32 2, %v4766
    %v4768 = vrot.slane %v4753, %v4767
    %v4769 = vlaneseq
    %v4770 = vshrl.u32 %v4769, 7
    %v4771 = vsub.s32 3, %v4770
    %v4772 = vrot.slane %v4753, %v4771
    %v4773 = vlaneseq
    %v4774 = vshrl.u32 %v4773, 7
    %v4775 = vsub.s32 4, %v4774
    %v4776 = vrot.slane %v4753, %v4775
    %v4777 = vlaneseq
    %v4778 = vshrl.u32 %v4777, 7
    %v4779 = vsub.s32 5, %v4778
    %v4780 = vrot.slane %v4753, %v4779
    %v4781 = vlaneseq
    %v4782 = vshrl.u32 %v4781, 7
    %v4783 = vsub.s32 6, %v4782
    %v4784 = vrot.slane %v4753, %v4783
    %v4785 = vlaneseq
    %v4786 = vshrl.u32 %v4785, 7
    %v4787 = vsub.s32 7, %v4786
    %v4788 = vrot.slane %v4753, %v4787
    %v4789 = vlaneseq
    %v4790 = vshrl.u32 %v4789, 7
    %v4791 = vsub.s32 0, %v4790
    %v4792 = vrot.slane %v4754, %v4791
    %v4793 = vlaneseq
    %v4794 = vshrl.u32 %v4793, 7
    %v4795 = vsub.s32 1, %v4794
    %v4796 = vrot.slane %v4754, %v4795
    %v4797 = vlaneseq
    %v4798 = vshrl.u32 %v4797, 7
    %v4799 = vsub.s32 2, %v4798
    %v4800 = vrot.slane %v4754, %v4799
    %v4801 = vlaneseq
    %v4802 = vshrl.u32 %v4801, 7
    %v4803 = vsub.s32 3, %v4802
    %v4804 = vrot.slane %v4754, %v4803
    %v4805 = vlaneseq
    %v4806 = vshrl.u32 %v4805, 7
    %v4807 = vsub.s32 4, %v4806
    %v4808 = vrot.slane %v4754, %v4807
    %v4809 = vlaneseq
    %v4810 = vshrl.u32 %v4809, 7
    %v4811 = vsub.s32 5, %v4810
    %v4812 = vrot.slane %v4754, %v4811
    %v4813 = vlaneseq
    %v4814 = vshrl.u32 %v4813, 7
    %v4815 = vsub.s32 6, %v4814
    %v4816 = vrot.slane %v4754, %v4815
    %v4817 = vlaneseq
    %v4818 = vshrl.u32 %v4817, 7
    %v4819 = vsub.s32 7, %v4818
    %v4820 = vrot.slane %v4754, %v4819
    %v4837 = vmul.f32 %v4396, %v4760
    %v4838 = vmul.f32 %v4398, %v4760
    %v4839 = vmul.f32 %v4400, %v4764
    %v4840 = vmul.f32 %v4402, %v4764
    %v4841 = vmul.f32 %v4404, %v4768
    %v4842 = vmul.f32 %v4406, %v4768
    %v4843 = vmul.f32 %v4408, %v4772
    %v4844 = vmul.f32 %v4410, %v4772
    %v4845 = vmul.f32 %v4412, %v4776
    %v4846 = vmul.f32 %v4414, %v4776
    %v4847 = vmul.f32 %v4416, %v4780
    %v4848 = vmul.f32 %v4418, %v4780
    %v4849 = vmul.f32 %v4420, %v4784
    %v4850 = vmul.f32 %v4422, %v4784
    %v4851 = vmul.f32 %v4424, %v4788
    %v4852 = vmul.f32 %v4426, %v4788
    %v4853 = vmul.f32 %v4428, %v4792
    %v4854 = vmul.f32 %v4430, %v4792
    %v4855 = vmul.f32 %v4432, %v4796
    %v4856 = vmul.f32 %v4434, %v4796
    %v4857 = vmul.f32 %v4436, %v4800
    %v4858 = vmul.f32 %v4438, %v4800
    %v4859 = vmul.f32 %v4440, %v4804
    %v4860 = vmul.f32 %v4442, %v4804
    %v4861 = vmul.f32 %v4444, %v4808
    %v4862 = vmul.f32 %v4446, %v4808
    %v4863 = vmul.f32 %v4448, %v4812
    %v4864 = vmul.f32 %v4450, %v4812
    %v4865 = vmul.f32 %v4452, %v4816
    %v4866 = vmul.f32 %v4454, %v4816
    %v4867 = vmul.f32 %v4456, %v4820
    %v4868 = vmul.f32 %v4458, %v4820
    %4901 = vset.pattern.permute.xlu0 0
    %4902 = vperm.xlu0 %4901, %v4837
    %v4903 = vpop.permute.xlu0 %4902
    %4904 = vset.pattern.permute.xlu0 0
    %4905 = vperm.xlu0 %4904, %v4838
    %v4906 = vpop.permute.xlu0 %4905
    %4907 = vset.pattern.permute.xlu0 0
    %4908 = vperm.xlu0 %4907, %v4839
    %v4909 = vpop.permute.xlu0 %4908
    %4910 = vset.pattern.permute.xlu0 0
    %4911 = vperm.xlu0 %4910, %v4840
    %v4912 = vpop.permute.xlu0 %4911
    %4913 = vset.pattern.permute.xlu0 0
    %4914 = vperm.xlu0 %4913, %v4841
    %v4915 = vpop.permute.xlu0 %4914
    %4916 = vset.pattern.permute.xlu0 0
    %4917 = vperm.xlu0 %4916, %v4842
    %v4918 = vpop.permute.xlu0 %4917
    %4919 = vset.pattern.permute.xlu0 0
    %4920 = vperm.xlu0 %4919, %v4843
    %v4921 = vpop.permute.xlu0 %4920
    %4922 = vset.pattern.permute.xlu0 0
    %4923 = vperm.xlu0 %4922, %v4844
    %v4924 = vpop.permute.xlu0 %4923
    %4925 = vset.pattern.permute.xlu0 0
    %4926 = vperm.xlu0 %4925, %v4845
    %v4927 = vpop.permute.xlu0 %4926
    %4928 = vset.pattern.permute.xlu0 0
    %4929 = vperm.xlu0 %4928, %v4846
    %v4930 = vpop.permute.xlu0 %4929
    %4931 = vset.pattern.permute.xlu0 0
    %4932 = vperm.xlu0 %4931, %v4847
    %v4933 = vpop.permute.xlu0 %4932
    %4934 = vset.pattern.permute.xlu0 0
    %4935 = vperm.xlu0 %4934, %v4848
    %v4936 = vpop.permute.xlu0 %4935
    %4937 = vset.pattern.permute.xlu0 0
    %4938 = vperm.xlu0 %4937, %v4849
    %v4939 = vpop.permute.xlu0 %4938
    %4940 = vset.pattern.permute.xlu0 0
    %4941 = vperm.xlu0 %4940, %v4850
    %v4942 = vpop.permute.xlu0 %4941
    %4943 = vset.pattern.permute.xlu0 0
    %4944 = vperm.xlu0 %4943, %v4851
    %v4945 = vpop.permute.xlu0 %4944
    %4946 = vset.pattern.permute.xlu0 0
    %4947 = vperm.xlu0 %4946, %v4852
    %v4948 = vpop.permute.xlu0 %4947
    %4949 = vset.pattern.permute.xlu0 0
    %4950 = vperm.xlu0 %4949, %v4853
    %v4951 = vpop.permute.xlu0 %4950
    %4952 = vset.pattern.permute.xlu0 0
    %4953 = vperm.xlu0 %4952, %v4854
    %v4954 = vpop.permute.xlu0 %4953
    %4955 = vset.pattern.permute.xlu0 0
    %4956 = vperm.xlu0 %4955, %v4855
    %v4957 = vpop.permute.xlu0 %4956
    %4958 = vset.pattern.permute.xlu0 0
    %4959 = vperm.xlu0 %4958, %v4856
    %v4960 = vpop.permute.xlu0 %4959
    %4961 = vset.pattern.permute.xlu0 0
    %4962 = vperm.xlu0 %4961, %v4857
    %v4963 = vpop.permute.xlu0 %4962
    %4964 = vset.pattern.permute.xlu0 0
    %4965 = vperm.xlu0 %4964, %v4858
    %v4966 = vpop.permute.xlu0 %4965
    %4967 = vset.pattern.permute.xlu0 0
    %4968 = vperm.xlu0 %4967, %v4859
    %v4969 = vpop.permute.xlu0 %4968
    %4970 = vset.pattern.permute.xlu0 0
    %4971 = vperm.xlu0 %4970, %v4860
    %v4972 = vpop.permute.xlu0 %4971
    %4973 = vset.pattern.permute.xlu0 0
    %4974 = vperm.xlu0 %4973, %v4861
    %v4975 = vpop.permute.xlu0 %4974
    %4976 = vset.pattern.permute.xlu0 0
    %4977 = vperm.xlu0 %4976, %v4862
    %v4978 = vpop.permute.xlu0 %4977
    %4979 = vset.pattern.permute.xlu0 0
    %4980 = vperm.xlu0 %4979, %v4863
    %v4981 = vpop.permute.xlu0 %4980
    %4982 = vset.pattern.permute.xlu0 0
    %4983 = vperm.xlu0 %4982, %v4864
    %v4984 = vpop.permute.xlu0 %4983
    %4985 = vset.pattern.permute.xlu0 0
    %4986 = vperm.xlu0 %4985, %v4865
    %v4987 = vpop.permute.xlu0 %4986
    %4988 = vset.pattern.permute.xlu0 0
    %4989 = vperm.xlu0 %4988, %v4866
    %v4990 = vpop.permute.xlu0 %4989
    %4991 = vset.pattern.permute.xlu0 0
    %4992 = vperm.xlu0 %4991, %v4867
    %v4993 = vpop.permute.xlu0 %4992
    %4994 = vset.pattern.permute.xlu0 0
    %4995 = vperm.xlu0 %4994, %v4868
    %v4996 = vpop.permute.xlu0 %4995
    %v4997 = vlaneseq
    %v4998 = vshrl.u32 %v4997, 7
    %v4999 = vsub.s32 %v1922, %v4998
    %v5000 = vrot.slane %v4903, %v4999
    %v5001 = vlaneseq
    %v5002 = vshrl.u32 %v5001, 7
    %v5003 = vsub.s32 %v1927, %v5002
    %v5004 = vrot.slane %v4906, %v5003
    %v5005 = vsel %vm1932, %v5004, %v5000
    %v5006 = vlaneseq
    %v5007 = vshrl.u32 %v5006, 7
    %v5008 = vsub.s32 %v1922, %v5007
    %v5009 = vrot.slane %v4909, %v5008
    %v5010 = vlaneseq
    %v5011 = vshrl.u32 %v5010, 7
    %v5012 = vsub.s32 %v1927, %v5011
    %v5013 = vrot.slane %v4912, %v5012
    %v5014 = vsel %vm1932, %v5013, %v5009
    %v5015 = vlaneseq
    %v5016 = vshrl.u32 %v5015, 7
    %v5017 = vsub.s32 %v1922, %v5016
    %v5018 = vrot.slane %v4915, %v5017
    %v5019 = vlaneseq
    %v5020 = vshrl.u32 %v5019, 7
    %v5021 = vsub.s32 %v1927, %v5020
    %v5022 = vrot.slane %v4918, %v5021
    %v5023 = vsel %vm1932, %v5022, %v5018
    %v5024 = vlaneseq
    %v5025 = vshrl.u32 %v5024, 7
    %v5026 = vsub.s32 %v1922, %v5025
    %v5027 = vrot.slane %v4921, %v5026
    %v5028 = vlaneseq
    %v5029 = vshrl.u32 %v5028, 7
    %v5030 = vsub.s32 %v1927, %v5029
    %v5031 = vrot.slane %v4924, %v5030
    %v5032 = vsel %vm1932, %v5031, %v5027
    %v5033 = vlaneseq
    %v5034 = vshrl.u32 %v5033, 7
    %v5035 = vsub.s32 %v1922, %v5034
    %v5036 = vrot.slane %v4927, %v5035
    %v5037 = vlaneseq
    %v5038 = vshrl.u32 %v5037, 7
    %v5039 = vsub.s32 %v1927, %v5038
    %v5040 = vrot.slane %v4930, %v5039
    %v5041 = vsel %vm1932, %v5040, %v5036
    %v5042 = vlaneseq
    %v5043 = vshrl.u32 %v5042, 7
    %v5044 = vsub.s32 %v1922, %v5043
    %v5045 = vrot.slane %v4933, %v5044
    %v5046 = vlaneseq
    %v5047 = vshrl.u32 %v5046, 7
    %v5048 = vsub.s32 %v1927, %v5047
    %v5049 = vrot.slane %v4936, %v5048
    %v5050 = vsel %vm1932, %v5049, %v5045
    %v5051 = vlaneseq
    %v5052 = vshrl.u32 %v5051, 7
    %v5053 = vsub.s32 %v1922, %v5052
    %v5054 = vrot.slane %v4939, %v5053
    %v5055 = vlaneseq
    %v5056 = vshrl.u32 %v5055, 7
    %v5057 = vsub.s32 %v1927, %v5056
    %v5058 = vrot.slane %v4942, %v5057
    %v5059 = vsel %vm1932, %v5058, %v5054
    %v5060 = vlaneseq
    %v5061 = vshrl.u32 %v5060, 7
    %v5062 = vsub.s32 %v1922, %v5061
    %v5063 = vrot.slane %v4945, %v5062
    %v5064 = vlaneseq
    %v5065 = vshrl.u32 %v5064, 7
    %v5066 = vsub.s32 %v1927, %v5065
    %v5067 = vrot.slane %v4948, %v5066
    %v5068 = vsel %vm1932, %v5067, %v5063
    %v5069 = vlaneseq
    %v5070 = vshrl.u32 %v5069, 7
    %v5071 = vsub.s32 %v1922, %v5070
    %v5072 = vrot.slane %v4951, %v5071
    %v5073 = vlaneseq
    %v5074 = vshrl.u32 %v5073, 7
    %v5075 = vsub.s32 %v1927, %v5074
    %v5076 = vrot.slane %v4954, %v5075
    %v5077 = vsel %vm1932, %v5076, %v5072
    %v5078 = vlaneseq
    %v5079 = vshrl.u32 %v5078, 7
    %v5080 = vsub.s32 %v1922, %v5079
    %v5081 = vrot.slane %v4957, %v5080
    %v5082 = vlaneseq
    %v5083 = vshrl.u32 %v5082, 7
    %v5084 = vsub.s32 %v1927, %v5083
    %v5085 = vrot.slane %v4960, %v5084
    %v5086 = vsel %vm1932, %v5085, %v5081
    %v5087 = vlaneseq
    %v5088 = vshrl.u32 %v5087, 7
    %v5089 = vsub.s32 %v1922, %v5088
    %v5090 = vrot.slane %v4963, %v5089
    %v5091 = vlaneseq
    %v5092 = vshrl.u32 %v5091, 7
    %v5093 = vsub.s32 %v1927, %v5092
    %v5094 = vrot.slane %v4966, %v5093
    %v5095 = vsel %vm1932, %v5094, %v5090
    %v5096 = vlaneseq
    %v5097 = vshrl.u32 %v5096, 7
    %v5098 = vsub.s32 %v1922, %v5097
    %v5099 = vrot.slane %v4969, %v5098
    %v5100 = vlaneseq
    %v5101 = vshrl.u32 %v5100, 7
    %v5102 = vsub.s32 %v1927, %v5101
    %v5103 = vrot.slane %v4972, %v5102
    %v5104 = vsel %vm1932, %v5103, %v5099
    %v5105 = vlaneseq
    %v5106 = vshrl.u32 %v5105, 7
    %v5107 = vsub.s32 %v1922, %v5106
    %v5108 = vrot.slane %v4975, %v5107
    %v5109 = vlaneseq
    %v5110 = vshrl.u32 %v5109, 7
    %v5111 = vsub.s32 %v1927, %v5110
    %v5112 = vrot.slane %v4978, %v5111
    %v5113 = vsel %vm1932, %v5112, %v5108
    %v5114 = vlaneseq
    %v5115 = vshrl.u32 %v5114, 7
    %v5116 = vsub.s32 %v1922, %v5115
    %v5117 = vrot.slane %v4981, %v5116
    %v5118 = vlaneseq
    %v5119 = vshrl.u32 %v5118, 7
    %v5120 = vsub.s32 %v1927, %v5119
    %v5121 = vrot.slane %v4984, %v5120
    %v5122 = vsel %vm1932, %v5121, %v5117
    %v5123 = vlaneseq
    %v5124 = vshrl.u32 %v5123, 7
    %v5125 = vsub.s32 %v1922, %v5124
    %v5126 = vrot.slane %v4987, %v5125
    %v5127 = vlaneseq
    %v5128 = vshrl.u32 %v5127, 7
    %v5129 = vsub.s32 %v1927, %v5128
    %v5130 = vrot.slane %v4990, %v5129
    %v5131 = vsel %vm1932, %v5130, %v5126
    %v5132 = vlaneseq
    %v5133 = vshrl.u32 %v5132, 7
    %v5134 = vsub.s32 %v1922, %v5133
    %v5135 = vrot.slane %v4993, %v5134
    %v5136 = vlaneseq
    %v5137 = vshrl.u32 %v5136, 7
    %v5138 = vsub.s32 %v1927, %v5137
    %v5139 = vrot.slane %v4996, %v5138
    %v5140 = vsel %vm1932, %v5139, %v5135
    %v5141 = vsel %vm2069, %v5014, %v5005
    %v5142 = vsel %vm2071, %v5023, %v5141
    %v5143 = vsel %vm2073, %v5032, %v5142
    %v5144 = vsel %vm2075, %v5041, %v5143
    %v5145 = vsel %vm2077, %v5050, %v5144
    %v5146 = vsel %vm2079, %v5059, %v5145
    %v5147 = vsel %vm2081, %v5068, %v5146
    %v5148 = vsel %vm2069, %v5086, %v5077
    %v5149 = vsel %vm2071, %v5095, %v5148
    %v5150 = vsel %vm2073, %v5104, %v5149
    %v5151 = vsel %vm2075, %v5113, %v5150
    %v5152 = vsel %vm2077, %v5122, %v5151
    %v5153 = vsel %vm2079, %v5131, %v5152
    %v5154 = vsel %vm2081, %v5140, %v5153
    %v5155 = vsel %vm2092, %v5147, 0
    %v5157 = vsel %vm2092, %v5154, 0
    %5159 = vmatprep.subr.mxu0 0.0
    %5160 = vmatpush1.msra.mxu0 %v3314
    %5161 = vmatprep.subr.mxu0 0.0
    %5162 = vmatpush1.msra.mxu0 %v3315
    %5163 = vmatprep.subr.mxu0 0.0
    %5164 = vmatpush1.msra.mxu0 0.0
    %5165 = vmatprep.subr.mxu0 0.0
    %5166 = vmatpush1.msra.mxu0 0.0
    %5167 = vmatprep.subr.mxu0 0.0
    %5168 = vmatpush1.msra.mxu0 0.0
    %5169 = vmatprep.subr.mxu0 0.0
    %5170 = vmatpush1.msra.mxu0 0.0
    %5171 = vmatprep.subr.mxu0 0.0
    %5172 = vmatpush1.msra.mxu0 0.0
    %5173 = vmatprep.subr.mxu0 0.0
    %5174 = vmatpush1.msra.mxu0 0.0
    %5175 = vmatprep.subr.mxu0 0.0
    %5176 = vmatpush1.msra.mxu0 0.0
    %5177 = vmatprep.subr.mxu0 0.0
    %5178 = vmatpush1.msra.mxu0 0.0
    %5179 = vmatprep.subr.mxu0 0.0
    %5180 = vmatpush1.msra.mxu0 0.0
    %5181 = vmatprep.subr.mxu0 0.0
    %5182 = vmatpush1.msra.mxu0 0.0
    %5183 = vmatprep.subr.mxu0 0.0
    %5184 = vmatpush1.msra.mxu0 0.0
    %5185 = vmatprep.subr.mxu0 0.0
    %5186 = vmatpush1.msra.mxu0 0.0
    %5187 = vmatprep.subr.mxu0 0.0
    %5188 = vmatpush1.msra.mxu0 0.0
    %5189 = vmatprep.subr.mxu0 0.0
    %5190 = vmatpush1.msra.mxu0 0.0
    %5191 = vmatprep.subr.mxu0 0.0
    %5192 = vmatpush1.msra.mxu0 0.0
    %5193 = vmatprep.subr.mxu0 0.0
    %5194 = vmatpush1.msra.mxu0 0.0
    %5195 = vmatprep.subr.mxu0 0.0
    %5196 = vmatpush1.msra.mxu0 0.0
    %5197 = vmatprep.subr.mxu0 0.0
    %5198 = vmatpush1.msra.mxu0 0.0
    %5199 = vmatprep.subr.mxu0 0.0
    %5200 = vmatpush1.msra.mxu0 0.0
    %5201 = vmatprep.subr.mxu0 0.0
    %5202 = vmatpush1.msra.mxu0 0.0
    %5203 = vmatprep.subr.mxu0 0.0
    %5204 = vmatpush1.msra.mxu0 0.0
    %5205 = vmatprep.subr.mxu0 0.0
    %5206 = vmatpush1.msra.mxu0 0.0
    %5207 = vmatprep.subr.mxu0 0.0
    %5208 = vmatpush1.msra.mxu0 0.0
    %5209 = vmatprep.subr.mxu0 0.0
    %5210 = vmatpush1.msra.mxu0 0.0
    %5211 = vmatprep.subr.mxu0 0.0
    %5212 = vmatpush1.msra.mxu0 0.0
    %5213 = vmatprep.subr.mxu0 0.0
    %5214 = vmatpush1.msra.mxu0 0.0
    %5215 = vmatprep.subr.mxu0 0.0
    %5216 = vmatpush1.msra.mxu0 0.0
    %5217 = vmatprep.subr.mxu0 0.0
    %5218 = vmatpush1.msra.mxu0 0.0
    %5219 = vmatprep.subr.mxu0 0.0
    %5220 = vmatpush1.msra.mxu0 0.0
    %5221 = vmatprep.subr.mxu0 0.0
    %5222 = vmatpush1.msra.mxu0 0.0
    %5223 = vmatprep.mubr.f32.mxu0 0.0
    %5224 = vmatmul.mubr.f32.gmra.mrb[0].mxu0 %v5155
    %v5225 = vpop.f32.mrb[0].mxu0
    %v5226 = vadd.f32 %v3304, %v5225
    %v5227 = vpop.f32.mrb[0].mxu0
    %5228 = vmatprep.mubr.f32.mxu0 0.0
    %5229 = vmatmul.mubr.f32.gmra.mrb[0].mxu0 %v5157
    %v5230 = vpop.f32.mrb[0].mxu0
    %v5231 = vadd.f32 %v3307, %v5230
    %v5232 = vpop.f32.mrb[0].mxu0
    %5233 = vdwg.mxu0
    %v5234 = vlaneseq
    %v5235 = vshrl.u32 %v5234, 7
    %v5236 = vsub.s32 1, %v5235
    %v5237 = vrot.slane %v83, %v5236
    %v5238 = vadd.f32 %v5226, %v5237
    %v5239 = vadd.f32 %v5231, %v5237
    %s5240 = scalar_lea.vmem [#allocation6], 128
    %v5241 = vld [vmem:[%s5240] sm:$0xf]
    %v5242 = vld [vmem:[%s5240 + $0x4] sm:$0xf]
    %v5243 = vld [vmem:[%s5240 + $0x8] sm:$0xf]
    %v5244 = vld [vmem:[%s5240 + $0xc] sm:$0xf]
    %v5245 = vld [vmem:[%s5240 + $0x10] sm:$0xf]
    %v5246 = vld [vmem:[%s5240 + $0x14] sm:$0xf]
    %v5247 = vld [vmem:[%s5240 + $0x18] sm:$0xf]
    %v5248 = vld [vmem:[%s5240 + $0x1c] sm:$0xf]
    %v5249 = vld [vmem:[%s5240 + $0x20] sm:$0xf]
    %v5250 = vld [vmem:[%s5240 + $0x24] sm:$0xf]
    %v5251 = vld [vmem:[%s5240 + $0x28] sm:$0xf]
    %v5252 = vld [vmem:[%s5240 + $0x2c] sm:$0xf]
    %v5253 = vld [vmem:[%s5240 + $0x30] sm:$0xf]
    %v5254 = vld [vmem:[%s5240 + $0x34] sm:$0xf]
    %v5255 = vld [vmem:[%s5240 + $0x38] sm:$0xf]
    %v5256 = vld [vmem:[%s5240 + $0x3c] sm:$0xf]
    %v5257 = vpack.c.bf16 %v5239, %v5238
    %v5258 = vlaneseq
    %v5259 = vshrl.u32 %v5258, 7
    %v5260 = vsub.s32 2, %v5259
    %v5261 = vrot.slane %v82, %v5260
    %v5278 = vunpack.c.l.b16 %v5241
    %v5279 = vunpack.c.l.b16 %v5242
    %v5280 = vunpack.c.l.b16 %v5243
    %v5281 = vunpack.c.l.b16 %v5244
    %v5282 = vunpack.c.l.b16 %v5245
    %v5283 = vunpack.c.l.b16 %v5246
    %v5284 = vunpack.c.l.b16 %v5247
    %v5285 = vunpack.c.l.b16 %v5248
    %v5286 = vunpack.c.l.b16 %v5249
    %v5287 = vunpack.c.l.b16 %v5250
    %v5288 = vunpack.c.l.b16 %v5251
    %v5289 = vunpack.c.l.b16 %v5252
    %v5290 = vunpack.c.l.b16 %v5253
    %v5291 = vunpack.c.l.b16 %v5254
    %v5292 = vunpack.c.l.b16 %v5255
    %v5293 = vunpack.c.l.b16 %v5256
    %v5294 = vpack.c.b16 %v5279, %v5278
    %v5295 = vpack.c.b16 %v5281, %v5280
    %v5296 = vpack.c.b16 %v5283, %v5282
    %v5297 = vpack.c.b16 %v5285, %v5284
    %v5298 = vpack.c.b16 %v5287, %v5286
    %v5299 = vpack.c.b16 %v5289, %v5288
    %v5300 = vpack.c.b16 %v5291, %v5290
    %v5301 = vpack.c.b16 %v5293, %v5292
    %5310 = vmatprep.subr.bf16.mxu0 0
    %5311 = vmatpush1.bf16.msra.mxu0 %v5294
    %5312 = vmatprep.subr.bf16.mxu0 0
    %5313 = vmatpush1.bf16.msra.mxu0 %v5295
    %5314 = vmatprep.subr.bf16.mxu0 0
    %5315 = vmatpush1.bf16.msra.mxu0 %v5296
    %5316 = vmatprep.subr.bf16.mxu0 0
    %5317 = vmatpush1.bf16.msra.mxu0 %v5297
    %5318 = vmatprep.subr.bf16.mxu0 0
    %5319 = vmatpush1.bf16.msra.mxu0 %v5298
    %5320 = vmatprep.subr.bf16.mxu0 0
    %5321 = vmatpush1.bf16.msra.mxu0 %v5299
    %5322 = vmatprep.subr.bf16.mxu0 0
    %5323 = vmatpush1.bf16.msra.mxu0 %v5300
    %5324 = vmatprep.subr.bf16.mxu0 0
    %5325 = vmatpush1.bf16.msra.mxu0 %v5301
    %5326 = vmatprep.subr.bf16.mxu0 0
    %5327 = vmatpush1.bf16.msra.mxu0 0
    %5328 = vmatprep.subr.bf16.mxu0 0
    %5329 = vmatpush1.bf16.msra.mxu0 0
    %5330 = vmatprep.subr.bf16.mxu0 0
    %5331 = vmatpush1.bf16.msra.mxu0 0
    %5332 = vmatprep.subr.bf16.mxu0 0
    %5333 = vmatpush1.bf16.msra.mxu0 0
    %5334 = vmatprep.subr.bf16.mxu0 0
    %5335 = vmatpush1.bf16.msra.mxu0 0
    %5336 = vmatprep.subr.bf16.mxu0 0
    %5337 = vmatpush1.bf16.msra.mxu0 0
    %5338 = vmatprep.subr.bf16.mxu0 0
    %5339 = vmatpush1.bf16.msra.mxu0 0
    %5340 = vmatprep.subr.bf16.mxu0 0
    %5341 = vmatpush1.bf16.msra.mxu0 0
    %5342 = vmatprep.mubr.bf16.mxu0 0
    %5343 = vmatmul.mubr.bf16.gmra.mrb[0].mxu0 %v5257
    %v5344 = vpop.f32.mrb[0].mxu0
    %v5345 = vadd.f32 %v5261, %v5344
    %v5346 = vpop.f32.mrb[0].mxu0
    %v5347 = vpop.f32.mrb[0].mxu0
    %v5348 = vadd.f32 %v5261, %v5347
    %v5349 = vpop.f32.mrb[0].mxu0
    %5350 = vdwg.mxu0
    %5351 = vst [vmem:[%s7] sm:$0xff] %v5345
    %5352 = vst [vmem:[%s7 + $0x8] sm:$0xff] %v5348
    // Predicated region
    $region46: #{gnn_forward.1} parent=1 // pred_check
      _
    $region47: #{gnn_forward.1} parent=1 // pred_check_branch
      %5354 = sbr.rel (0) target = $region49
    $region48: #{gnn_forward.1} parent=1 // pred_region
      _
    $region49: #{gnn_forward.1} parent=1 // pred_fallthru
      _
    // Predicated region
    $region50: #{gnn_forward.1} parent=1 // pred_check
      _
    $region51: #{gnn_forward.1} parent=1 // pred_check_branch
      %5356 = sbr.rel (0) target = $region53
    $region52: #{gnn_forward.1} parent=1 // pred_region
      _
    $region53: #{gnn_forward.1} parent=1 // pred_fallthru
      _
    %5357 = vsyncpa [#allocation3], 1
    %5358 = vsyncpa [#allocation5], 1
    %5359 = vsyncpa [#allocation8], 1

</llo_original>
